<compile_context>
chip_gen: v6e
topology: v6e:2x2x1
jax: 0.10.0
libtpu: 0.0.40
codegen_flags: <defaults>
</compile_context>

<pallas_src>
import math
from functools import partial

import jax
import jax.numpy as jnp
from jax.experimental import pallas as pl
from jax.experimental.pallas import tpu as pltpu


# --------------------------------- Pallas kernel --------------------------------- #

def _modconv_act_kernel(x_ref, w_ref, s_ref, d_ref, b_ref, o_ref, pad_ref, *,
                        th, W, gain, slope):
    # x_ref  : (1, H, W, Cin)    whole UNPADDED sample (resident across cout/row tiles)
    # w_ref  : (3, 3, Cin, tco)  shared EqualLR-scaled weight tile (resident across rows)
    # s_ref  : (1, 1, Cin)       per-sample style modulation (f32)
    # d_ref  : (1, 1, tco)       per-sample demodulation scale (f32)
    # b_ref  : (1, 1, tco)       conv bias (f32)
    # o_ref  : (1, th, W, tco)   output row band
    # pad_ref: (th+2, W+2, Cin)  VMEM scratch: zero-padded, modulated, compute-dtype slab
    Cin = x_ref.shape[-1]
    tco = o_ref.shape[-1]

    t = pl.program_id(2)                      # row-band index
    nT = pl.num_programs(2)
    r0 = pl.multiple_of(t * th, th)           # first output row of this band
    sca = s_ref[0, 0]                         # (Cin,) f32 style scale

    # ---- build the zero-padded, style-modulated slab (cast to MXU dtype ONCE) ----
    zero_col = jnp.zeros((th + 2, 1, Cin), pad_ref.dtype)
    pad_ref[:, 0:1, :] = zero_col                         # left halo column
    pad_ref[:, W + 1:W + 2, :] = zero_col                 # right halo column

    @pl.when(t == 0)                                      # image row -1 is zero padding
    def _():
        pad_ref[0:1, :, :] = jnp.zeros((1, W + 2, Cin), pad_ref.dtype)

    @pl.when(t == nT - 1)                                 # image row H is zero padding
    def _():
        pad_ref[th + 1:th + 2, :, :] = jnp.zeros((1, W + 2, Cin), pad_ref.dtype)

    # main th rows (always valid): slab rows 1..th <- image rows r0 .. r0+th-1
    xm = x_ref[0, pl.ds(r0, th), :, :].astype(jnp.float32) * sca
    pad_ref[1:th + 1, 1:W + 1, :] = xm.astype(pad_ref.dtype)

    @pl.when(t > 0)                                       # top halo row: image row r0-1
    def _():
        top = x_ref[0, pl.ds(r0 - 1, 1), :, :].astype(jnp.float32) * sca
        pad_ref[0:1, 1:W + 1, :] = top.astype(pad_ref.dtype)

    @pl.when(t < nT - 1)                                  # bottom halo row: image row r0+th
    def _():
        bot = x_ref[0, pl.ds(r0 + th, 1), :, :].astype(jnp.float32) * sca
        pad_ref[th + 1:th + 2, 1:W + 1, :] = bot.astype(pad_ref.dtype)

    # ---- 3x3 conv as nine MXU matmuls; kx shifts hoisted to 3 slab reads per step ----
    acc = jnp.zeros((th * W, tco), jnp.float32)
    for kx in range(3):
        xk = pad_ref[:, kx:kx + W, :]                     # (th+2, W, Cin)
        for ky in range(3):
            tap = xk[ky:ky + th].reshape(th * W, Cin)     # leading-axis slice: no relayout
            acc = acc + jnp.dot(tap, w_ref[ky, kx],
                                preferred_element_type=jnp.float32)

    # ---- demodulate, bias, LeakyReLU(0.2) with the sqrt(2) gain folded into the select ----
    y = acc * d_ref[0, 0] + b_ref[0, 0]
    y = y * jnp.where(y >= 0.0, gain, slope * gain)
    o_ref[0] = y.reshape(th, W, tco).astype(o_ref.dtype)


# --------------------------- ModulatedConv2d + activation ------------------------- #

def _largest_divisor_leq(n, cap):
    cap = max(1, min(n, cap))
    for c in range(cap, 0, -1):
        if n % c == 0:
            return c
    return 1


def _tpu_hw():
    """Returns (vmem_capacity_bytes, wide_mxu). Conservative fallback if unavailable."""
    vmem = 64 * 1024 * 1024     # v7x per-core VMEM — smallest of v5e/v6e/v7x
    wide_mxu = True             # v6e/v7x have 256-wide MXUs
    try:
        info = pltpu.get_tpu_info()
        vmem = int(getattr(info, "vmem_capacity_bytes", vmem))
        if "5" in str(getattr(info, "chip_version", "")):
            wide_mxu = False    # v5e MXU is 128 wide: prefer tco=128
    except Exception:
        pass
    return vmem, wide_mxu


def styled_modulated_conv(x_nhwc, latent, conv_w, conv_b, mlp_w, mlp_b, *,
                          gain, slope, compute_dtype=jnp.float32,
                          row_tile=None, cout_tile=None):
    """One ModulatedConv2d(kernel=3, zero pad, demodulate=True) + LeakyReLU(0.2)*gain."""
    B, H, W, Cin = x_nhwc.shape
    Cout, _, k, _ = conv_w.shape
    assert k == 3
    L = latent.shape[1]

    # ---- tiny parameter-side glue (plain jnp; negligible next to the conv) ----------
    # EqualLinear style MLP: s = latent @ (mlp_w * sqrt(2/L)).T + mlp_b
    s = (latent.astype(jnp.float32) @ (mlp_w.astype(jnp.float32).T * math.sqrt(2.0 / L))
         + mlp_b.astype(jnp.float32))                                    # (B, Cin)
    # EqualLR conv scale; shared weight in (ky, kx, Cin, Cout) layout.
    w = conv_w.astype(jnp.float32) * math.sqrt(2.0 / (Cin * k * k))       # (Cout, Cin, 3, 3)
    w_khwio = jnp.transpose(w, (2, 3, 1, 0))                              # (3, 3, Cin, Cout)
    # Exact demodulation of the modulate-input refactor:
    #   d[b, co] = rsqrt( sum_ci s[b,ci]^2 * sum_kk w[co,ci,kk]^2 + 1e-5 )
    wsq = jnp.sum(w * w, axis=(2, 3))                                     # (Cout, Cin)
    d = jax.lax.rsqrt((s * s) @ wsq.T + 1e-5)                             # (B, Cout)
    bias = conv_b.reshape(1, 1, Cout).astype(jnp.float32)

    # ---- per-generation sizing --------------------------------------------------------
    vmem_cap, wide_mxu = _tpu_hw()
    vmem_limit = max(16 << 20, min(int(vmem_cap * 3 // 4), vmem_cap - (8 << 20)))

    if cout_tile is not None:
        tco = cout_tile
    elif Cout % 256 == 0 and wide_mxu:
        tco = 256                        # matches v6e/v7x 256-wide MXU
    elif Cout % 128 == 0:
        tco = 128                        # lane-dense; right size for v5e
    else:
        tco = Cout

    cb = jnp.dtype(compute_dtype).itemsize
    xb = jnp.dtype(x_nhwc.dtype).itemsize
    if row_tile is not None:
        th = row_tile
    else:
        # Budget: resident sample + weight (double-buffered by the pipeline) vs per-row
        # cost of the padded slab scratch, the double-buffered output band and the f32 acc.
        resident = 2 * H * W * Cin * xb + 2 * 9 * Cin * tco * cb + (2 << 20)
        per_row = (W + 2) * Cin * cb + 2 * W * tco * cb + W * tco * 4 + W * Cin * 4
        row_cap = max(1, (vmem_limit - resident) // per_row)
        th = _largest_divisor_leq(H, min(int(row_cap), 512))
    assert H % th == 0 and Cout % tco == 0

    kernel = partial(_modconv_act_kernel, th=th, W=W, gain=gain, slope=slope)
    out = pl.pallas_call(
        kernel,
        out_shape=jax.ShapeDtypeStruct((B, H, W, Cout), compute_dtype),
        grid_spec=pltpu.PrefetchScalarGridSpec(
            num_scalar_prefetch=0,
            # Grid order (batch, cout-tiles, row-bands): the sample is DMA'd once per batch
            # index, the weight tile once per (batch, cout-tile) — never per row band.
            grid=(B, Cout // tco, H // th),
            in_specs=[
                pl.BlockSpec((1, H, W, Cin),   lambda b, c, t: (b, 0, 0, 0)),
                pl.BlockSpec((3, 3, Cin, tco), lambda b, c, t: (0, 0, 0, c)),
                pl.BlockSpec((1, 1, Cin),      lambda b, c, t: (b, 0, 0)),
                pl.BlockSpec((1, 1, tco),      lambda b, c, t: (b, 0, c)),
                pl.BlockSpec((1, 1, tco),      lambda b, c, t: (0, 0, c)),
            ],
            out_specs=pl.BlockSpec((1, th, W, tco), lambda b, c, t: (b, t, 0, c)),
            scratch_shapes=[pltpu.VMEM((th + 2, W + 2, Cin), compute_dtype)],
        ),
        compiler_params=pltpu.CompilerParams(
            # Stateless per step (the pad scratch is fully rewritten each step), so all
            # axes are "parallel": v7x's two TensorCores share work even when B == 1.
            dimension_semantics=("parallel", "parallel", "parallel"),
            vmem_limit_bytes=int(vmem_limit),
        ),
    )(x_nhwc, w_khwio.astype(compute_dtype), s.reshape(B, 1, Cin),
      d.reshape(B, 1, Cout), bias)
    return out


def styled_conv_block(x_nchw, latent, params, *, compute_dtype=jnp.float32, row_tile=None):
    """StyledConvBlock.forward with modulated_conv=True, actvn='lrelu', padding='zero'."""
    gain = math.sqrt(2.0)    # actvn_gain for modulated_conv
    slope = 0.2              # LeakyReLU negative slope
    # NCHW <-> NHWC only at the block boundary; intermediates stay NHWC and UNPADDED
    # (the zero halo is handled inside the kernel, no inter-layer pad pass).
    x = jnp.transpose(x_nchw, (0, 2, 3, 1))
    out = styled_modulated_conv(x, latent, params['w0'], params['b0'],
                                params['mlp_w0'], params['mlp_b0'],
                                gain=gain, slope=slope,
                                compute_dtype=compute_dtype, row_tile=row_tile)
    out = styled_modulated_conv(out, latent, params['w1'], params['b1'],
                                params['mlp_w1'], params['mlp_b1'],
                                gain=gain, slope=slope,
                                compute_dtype=compute_dtype, row_tile=row_tile)
    return jnp.transpose(out, (0, 3, 1, 2)).astype(x_nchw.dtype)


# --------------------------------- pure-JAX reference ------------------------------ #

def ref_forward(x_nchw, latent, params):
    gain, slope = math.sqrt(2.0), 0.2

    def layer(x, cw, cb, mw, mb):
        B, C, H, W = x.shape
        Cout = cw.shape[0]
        L = latent.shape[1]
        s = latent @ (mw * math.sqrt(2.0 / L)).T + mb
        w = cw * math.sqrt(2.0 / (C * 9))
        w = s[:, None, :, None, None] * w[None]
        d = jax.lax.rsqrt(jnp.sum(w * w, axis=(2, 3, 4)) + 1e-5)
        w = d[:, :, None, None, None] * w                     # (B, Cout, Cin, 3, 3)
        outs = []
        for b in range(B):
            o = jax.lax.conv_general_dilated(
                x[b:b + 1], w[b], (1, 1), ((1, 1), (1, 1)),
                dimension_numbers=('NCHW', 'OIHW', 'NCHW'))
            outs.append(o)
        o = jnp.concatenate(outs, 0) + cb.reshape(1, Cout, 1, 1)
        return jnp.where(o >= 0, o, slope * o) * gain

    o = layer(x_nchw, params['w0'], params['b0'], params['mlp_w0'], params['mlp_b0'])
    o = layer(o, params['w1'], params['b1'], params['mlp_w1'], params['mlp_b1'])
    return o


# ---------------------------------------- main ------------------------------------- #

if __name__ == "__main__":
    key = jax.random.PRNGKey(0)
    B, fin, fout, H, W, L = 2, 4, 8, 16, 16, 32
    ks = jax.random.split(key, 10)

    x = jax.random.normal(ks[0], (B, fin, H, W), jnp.float32)
    latent = jax.random.normal(ks[1], (B, L), jnp.float32)

    # Non-zero biases so the bias paths are actually exercised (module inits them to zero,
    # but the math is identical).
    params = {
        'w0': jax.random.normal(ks[2], (fout, fin, 3, 3), jnp.float32),
        'b0': 0.1 * jax.random.normal(ks[3], (1, fout, 1, 1), jnp.float32),
        'mlp_w0': jax.random.normal(ks[4], (fin, L), jnp.float32),
        'mlp_b0': 0.1 * jax.random.normal(ks[5], (fin,), jnp.float32),
        'w1': jax.random.normal(ks[6], (fout, fout, 3, 3), jnp.float32),
        'b1': 0.1 * jax.random.normal(ks[7], (1, fout, 1, 1), jnp.float32),
        'mlp_w1': jax.random.normal(ks[8], (fout, L), jnp.float32),
        'mlp_b1': 0.1 * jax.random.normal(ks[9], (fout,), jnp.float32),
    }

    ref = ref_forward(x, latent, params)

    # f32 path over several row-band configurations: first/last halo branches (rt=8),
    # interior bands (rt=4) and the single-band / auto-tiling path (rt=None).
    for rt in (8, 4, None):
        fwd = jax.jit(partial(styled_conv_block, row_tile=rt))
        out = jax.block_until_ready(fwd(x, latent, params))
        assert out.shape == (B, fout, H, W)
        max_err = float(jnp.max(jnp.abs(out - ref)))
        assert jnp.allclose(out, ref, atol=1e-4, rtol=1e-4), (rt, max_err)

    # bf16 MXU path: bf16 operands, f32 modulation/demod/accumulation/activation — loose check.
    fwd_bf16 = jax.jit(partial(styled_conv_block, compute_dtype=jnp.bfloat16, row_tile=8))
    out_bf16 = jax.block_until_ready(fwd_bf16(x, latent, params))
    rel = float(jnp.max(jnp.abs(out_bf16 - ref)) / (jnp.max(jnp.abs(ref)) + 1e-6))
    assert rel < 0.1, rel

    print("KERNEL_OK")
</pallas_src>

<mosaic_0001>
module attributes {stable_mosaic.version = 11 : i64} {
  func.func @_modconv_act_kernel(%arg0: i32, %arg1: i32, %arg2: i32, %arg3: memref<1x16x16x4xf32, #tpu.memory_space<vmem>>, %arg4: memref<3x3x4x8xf32, #tpu.memory_space<vmem>>, %arg5: memref<1x1x4xf32, #tpu.memory_space<vmem>>, %arg6: memref<1x1x8xf32, #tpu.memory_space<vmem>>, %arg7: memref<1x1x8xf32, #tpu.memory_space<vmem>>, %arg8: memref<1x8x16x8xf32, #tpu.memory_space<vmem>>, %arg9: memref<10x18x4xf32, #tpu.memory_space<vmem>>) attributes {dimension_semantics = [#tpu.dimension_semantics<parallel>, #tpu.dimension_semantics<parallel>, #tpu.dimension_semantics<parallel>], iteration_bounds = array<i64: 2, 1, 2>, scalar_prefetch = 0 : i64, scratch_operands = 1 : i64, tpu.core_type = #tpu.core_type<tc>, window_params = [{transform_indices = @transform_0, window_bounds = array<i64: 1, 16, 16, 4>}, {transform_indices = @transform_1, window_bounds = array<i64: 3, 3, 4, 8>}, {transform_indices = @transform_2, window_bounds = array<i64: 1, 1, 4>}, {transform_indices = @transform_3, window_bounds = array<i64: 1, 1, 8>}, {transform_indices = @transform_4, window_bounds = array<i64: 1, 1, 8>}, {transform_indices = @transform_5, window_bounds = array<i64: 1, 8, 16, 8>}]} {
    %c8_i32 = arith.constant 8 : i32
    %0 = arith.muli %arg2, %c8_i32 : i32
    %1 = tpu.assume_multiple %0, 8 : i32
    %c0 = arith.constant 0 : index
    %c0_0 = arith.constant 0 : index
    %c0_1 = arith.constant 0 : index
    %2 = vector.load %arg5[%c0, %c0_0, %c0_1] : memref<1x1x4xf32, #tpu.memory_space<vmem>>, vector<1x1x4xf32>
    %3 = vector.shape_cast %2 : vector<1x1x4xf32> to vector<4xf32>
    %cst = arith.constant 0.000000e+00 : f32
    %4 = vector.broadcast %cst : f32 to vector<10x1x4xf32>
    %c0_2 = arith.constant 0 : index
    %c0_3 = arith.constant 0 : index
    %c0_4 = arith.constant 0 : index
    %5 = vector.load %arg9[%c0_2, %c0_3, %c0_4] : memref<10x18x4xf32, #tpu.memory_space<vmem>>, vector<10x1x4xf32>
    tpu.vector_store %arg9[%c0_2, %c0_3, %c0_4], %4 {strides = array<i32>} : memref<10x18x4xf32, #tpu.memory_space<vmem>>, vector<10x1x4xf32>,
    %c0_5 = arith.constant 0 : index
    %c17 = arith.constant 17 : index
    %c0_6 = arith.constant 0 : index
    %6 = vector.load %arg9[%c0_5, %c17, %c0_6] : memref<10x18x4xf32, #tpu.memory_space<vmem>>, vector<10x1x4xf32>
    tpu.vector_store %arg9[%c0_5, %c17, %c0_6], %4 {strides = array<i32>} : memref<10x18x4xf32, #tpu.memory_space<vmem>>, vector<10x1x4xf32>,
    %c0_i32 = arith.constant 0 : i32
    %7 = arith.cmpi eq, %arg2, %c0_i32 : i32
    %8 = arith.extui %7 : i1 to i32
    %c0_i32_7 = arith.constant 0 : i32
    %9 = arith.cmpi ne, %8, %c0_i32_7 : i32
    scf.if %9 {
      %cst_85 = arith.constant 0.000000e+00 : f32
      %104 = vector.broadcast %cst_85 : f32 to vector<1x18x4xf32>
      %c0_86 = arith.constant 0 : index
      %c0_87 = arith.constant 0 : index
      %c0_88 = arith.constant 0 : index
      %105 = vector.load %arg9[%c0_86, %c0_87, %c0_88] : memref<10x18x4xf32, #tpu.memory_space<vmem>>, vector<1x18x4xf32>
      tpu.vector_store %arg9[%c0_86, %c0_87, %c0_88], %104 {strides = array<i32>} : memref<10x18x4xf32, #tpu.memory_space<vmem>>, vector<1x18x4xf32>,
    } else {
    }
    %c1_i32 = arith.constant 1 : i32
    %10 = arith.cmpi eq, %arg2, %c1_i32 : i32
    %11 = arith.extui %10 : i1 to i32
    %c0_i32_8 = arith.constant 0 : i32
    %12 = arith.cmpi ne, %11, %c0_i32_8 : i32
    scf.if %12 {
      %cst_85 = arith.constant 0.000000e+00 : f32
      %104 = vector.broadcast %cst_85 : f32 to vector<1x18x4xf32>
      %c9 = arith.constant 9 : index
      %c0_86 = arith.constant 0 : index
      %c0_87 = arith.constant 0 : index
      %105 = vector.load %arg9[%c9, %c0_86, %c0_87] : memref<10x18x4xf32, #tpu.memory_space<vmem>>, vector<1x18x4xf32>
      tpu.vector_store %arg9[%c9, %c0_86, %c0_87], %104 {strides = array<i32>} : memref<10x18x4xf32, #tpu.memory_space<vmem>>, vector<1x18x4xf32>,
    } else {
    }
    %c0_9 = arith.constant 0 : index
    %13 = arith.index_cast %1 : i32 to index
    %c0_10 = arith.constant 0 : index
    %c0_11 = arith.constant 0 : index
    %14 = vector.load %arg3[%c0_9, %13, %c0_10, %c0_11] : memref<1x16x16x4xf32, #tpu.memory_space<vmem>>, vector<1x8x16x4xf32>
    %15 = vector.shape_cast %14 : vector<1x8x16x4xf32> to vector<8x16x4xf32>
    %16 = vector.shape_cast %3 : vector<4xf32> to vector<1x1x4xf32>
    %17 = vector.broadcast %16 : vector<1x1x4xf32> to vector<8x16x4xf32>
    %18 = arith.mulf %15, %17 : vector<8x16x4xf32>
    %c1 = arith.constant 1 : index
    %c1_12 = arith.constant 1 : index
    %c0_13 = arith.constant 0 : index
    %19 = vector.load %arg9[%c1, %c1_12, %c0_13] : memref<10x18x4xf32, #tpu.memory_space<vmem>>, vector<8x16x4xf32>
    tpu.vector_store %arg9[%c1, %c1_12, %c0_13], %18 {strides = array<i32>} : memref<10x18x4xf32, #tpu.memory_space<vmem>>, vector<8x16x4xf32>,
    %c0_i32_14 = arith.constant 0 : i32
    %20 = arith.cmpi sgt, %arg2, %c0_i32_14 : i32
    %21 = arith.extui %20 : i1 to i32
    %c0_i32_15 = arith.constant 0 : i32
    %22 = arith.cmpi ne, %21, %c0_i32_15 : i32
    scf.if %22 {
      %c1_i32_85 = arith.constant 1 : i32
      %104 = arith.subi %1, %c1_i32_85 : i32
      %c0_86 = arith.constant 0 : index
      %105 = arith.index_cast %104 : i32 to index
      %c0_87 = arith.constant 0 : index
      %c0_88 = arith.constant 0 : index
      %106 = vector.load %arg3[%c0_86, %105, %c0_87, %c0_88] : memref<1x16x16x4xf32, #tpu.memory_space<vmem>>, vector<1x1x16x4xf32>
      %107 = vector.shape_cast %106 : vector<1x1x16x4xf32> to vector<1x16x4xf32>
      %108 = vector.shape_cast %3 : vector<4xf32> to vector<1x1x4xf32>
      %109 = vector.broadcast %108 : vector<1x1x4xf32> to vector<1x16x4xf32>
      %110 = arith.mulf %107, %109 : vector<1x16x4xf32>
      %c0_89 = arith.constant 0 : index
      %c1_90 = arith.constant 1 : index
      %c0_91 = arith.constant 0 : index
      %111 = vector.load %arg9[%c0_89, %c1_90, %c0_91] : memref<10x18x4xf32, #tpu.memory_space<vmem>>, vector<1x16x4xf32>
      tpu.vector_store %arg9[%c0_89, %c1_90, %c0_91], %110 {strides = array<i32>} : memref<10x18x4xf32, #tpu.memory_space<vmem>>, vector<1x16x4xf32>,
    } else {
    }
    %c1_i32_16 = arith.constant 1 : i32
    %23 = arith.cmpi slt, %arg2, %c1_i32_16 : i32
    %24 = arith.extui %23 : i1 to i32
    %c0_i32_17 = arith.constant 0 : i32
    %25 = arith.cmpi ne, %24, %c0_i32_17 : i32
    scf.if %25 {
      %c8_i32_85 = arith.constant 8 : i32
      %104 = arith.addi %1, %c8_i32_85 : i32
      %c0_86 = arith.constant 0 : index
      %105 = arith.index_cast %104 : i32 to index
      %c0_87 = arith.constant 0 : index
      %c0_88 = arith.constant 0 : index
      %106 = vector.load %arg3[%c0_86, %105, %c0_87, %c0_88] : memref<1x16x16x4xf32, #tpu.memory_space<vmem>>, vector<1x1x16x4xf32>
      %107 = vector.shape_cast %106 : vector<1x1x16x4xf32> to vector<1x16x4xf32>
      %108 = vector.shape_cast %3 : vector<4xf32> to vector<1x1x4xf32>
      %109 = vector.broadcast %108 : vector<1x1x4xf32> to vector<1x16x4xf32>
      %110 = arith.mulf %107, %109 : vector<1x16x4xf32>
      %c9 = arith.constant 9 : index
      %c1_89 = arith.constant 1 : index
      %c0_90 = arith.constant 0 : index
      %111 = vector.load %arg9[%c9, %c1_89, %c0_90] : memref<10x18x4xf32, #tpu.memory_space<vmem>>, vector<1x16x4xf32>
      tpu.vector_store %arg9[%c9, %c1_89, %c0_90], %110 {strides = array<i32>} : memref<10x18x4xf32, #tpu.memory_space<vmem>>, vector<1x16x4xf32>,
    } else {
    }
    %cst_18 = arith.constant 0.000000e+00 : f32
    %26 = vector.broadcast %cst_18 : f32 to vector<128x8xf32>
    %c0_19 = arith.constant 0 : index
    %c0_20 = arith.constant 0 : index
    %c0_21 = arith.constant 0 : index
    %27 = vector.load %arg9[%c0_19, %c0_20, %c0_21] : memref<10x18x4xf32, #tpu.memory_space<vmem>>, vector<10x16x4xf32>
    %28 = vector.extract_strided_slice %27 {offsets = [0, 0, 0], sizes = [8, 16, 4], strides = [1, 1, 1]} : vector<10x16x4xf32> to vector<8x16x4xf32>
    %29 = vector.shape_cast %28 : vector<8x16x4xf32> to vector<128x4xf32>
    %c0_22 = arith.constant 0 : index
    %c0_23 = arith.constant 0 : index
    %c0_24 = arith.constant 0 : index
    %c0_25 = arith.constant 0 : index
    %30 = vector.load %arg4[%c0_22, %c0_23, %c0_24, %c0_25] : memref<3x3x4x8xf32, #tpu.memory_space<vmem>>, vector<1x1x4x8xf32>
    %31 = vector.shape_cast %30 : vector<1x1x4x8xf32> to vector<4x8xf32>
    %cst_26 = arith.constant dense<0.000000e+00> : vector<128x8xf32>
    %32 = tpu.matmul %29, %31, %cst_26 {dimension_numbers = #tpu.dot_dimension_numbers<[1], [0], [0], [1], [0, 0, 1, 1], [], []>} : vector<128x4xf32>, vector<4x8xf32>, vector<128x8xf32> -> vector<128x8xf32>
    %33 = arith.addf %26, %32 : vector<128x8xf32>
    %34 = vector.extract_strided_slice %27 {offsets = [1, 0, 0], sizes = [8, 16, 4], strides = [1, 1, 1]} : vector<10x16x4xf32> to vector<8x16x4xf32>
    %35 = vector.shape_cast %34 : vector<8x16x4xf32> to vector<128x4xf32>
    %c1_27 = arith.constant 1 : index
    %c0_28 = arith.constant 0 : index
    %c0_29 = arith.constant 0 : index
    %c0_30 = arith.constant 0 : index
    %36 = vector.load %arg4[%c1_27, %c0_28, %c0_29, %c0_30] : memref<3x3x4x8xf32, #tpu.memory_space<vmem>>, vector<1x1x4x8xf32>
    %37 = vector.shape_cast %36 : vector<1x1x4x8xf32> to vector<4x8xf32>
    %cst_31 = arith.constant dense<0.000000e+00> : vector<128x8xf32>
    %38 = tpu.matmul %35, %37, %cst_31 {dimension_numbers = #tpu.dot_dimension_numbers<[1], [0], [0], [1], [0, 0, 1, 1], [], []>} : vector<128x4xf32>, vector<4x8xf32>, vector<128x8xf32> -> vector<128x8xf32>
    %39 = arith.addf %33, %38 : vector<128x8xf32>
    %40 = vector.extract_strided_slice %27 {offsets = [2, 0, 0], sizes = [8, 16, 4], strides = [1, 1, 1]} : vector<10x16x4xf32> to vector<8x16x4xf32>
    %41 = vector.shape_cast %40 : vector<8x16x4xf32> to vector<128x4xf32>
    %c2 = arith.constant 2 : index
    %c0_32 = arith.constant 0 : index
    %c0_33 = arith.constant 0 : index
    %c0_34 = arith.constant 0 : index
    %42 = vector.load %arg4[%c2, %c0_32, %c0_33, %c0_34] : memref<3x3x4x8xf32, #tpu.memory_space<vmem>>, vector<1x1x4x8xf32>
    %43 = vector.shape_cast %42 : vector<1x1x4x8xf32> to vector<4x8xf32>
    %cst_35 = arith.constant dense<0.000000e+00> : vector<128x8xf32>
    %44 = tpu.matmul %41, %43, %cst_35 {dimension_numbers = #tpu.dot_dimension_numbers<[1], [0], [0], [1], [0, 0, 1, 1], [], []>} : vector<128x4xf32>, vector<4x8xf32>, vector<128x8xf32> -> vector<128x8xf32>
    %45 = arith.addf %39, %44 : vector<128x8xf32>
    %c0_36 = arith.constant 0 : index
    %c1_37 = arith.constant 1 : index
    %c0_38 = arith.constant 0 : index
    %46 = vector.load %arg9[%c0_36, %c1_37, %c0_38] : memref<10x18x4xf32, #tpu.memory_space<vmem>>, vector<10x16x4xf32>
    %47 = vector.extract_strided_slice %46 {offsets = [0, 0, 0], sizes = [8, 16, 4], strides = [1, 1, 1]} : vector<10x16x4xf32> to vector<8x16x4xf32>
    %48 = vector.shape_cast %47 : vector<8x16x4xf32> to vector<128x4xf32>
    %c0_39 = arith.constant 0 : index
    %c1_40 = arith.constant 1 : index
    %c0_41 = arith.constant 0 : index
    %c0_42 = arith.constant 0 : index
    %49 = vector.load %arg4[%c0_39, %c1_40, %c0_41, %c0_42] : memref<3x3x4x8xf32, #tpu.memory_space<vmem>>, vector<1x1x4x8xf32>
    %50 = vector.shape_cast %49 : vector<1x1x4x8xf32> to vector<4x8xf32>
    %cst_43 = arith.constant dense<0.000000e+00> : vector<128x8xf32>
    %51 = tpu.matmul %48, %50, %cst_43 {dimension_numbers = #tpu.dot_dimension_numbers<[1], [0], [0], [1], [0, 0, 1, 1], [], []>} : vector<128x4xf32>, vector<4x8xf32>, vector<128x8xf32> -> vector<128x8xf32>
    %52 = arith.addf %45, %51 : vector<128x8xf32>
    %53 = vector.extract_strided_slice %46 {offsets = [1, 0, 0], sizes = [8, 16, 4], strides = [1, 1, 1]} : vector<10x16x4xf32> to vector<8x16x4xf32>
    %54 = vector.shape_cast %53 : vector<8x16x4xf32> to vector<128x4xf32>
    %c1_44 = arith.constant 1 : index
    %c1_45 = arith.constant 1 : index
    %c0_46 = arith.constant 0 : index
    %c0_47 = arith.constant 0 : index
    %55 = vector.load %arg4[%c1_44, %c1_45, %c0_46, %c0_47] : memref<3x3x4x8xf32, #tpu.memory_space<vmem>>, vector<1x1x4x8xf32>
    %56 = vector.shape_cast %55 : vector<1x1x4x8xf32> to vector<4x8xf32>
    %cst_48 = arith.constant dense<0.000000e+00> : vector<128x8xf32>
    %57 = tpu.matmul %54, %56, %cst_48 {dimension_numbers = #tpu.dot_dimension_numbers<[1], [0], [0], [1], [0, 0, 1, 1], [], []>} : vector<128x4xf32>, vector<4x8xf32>, vector<128x8xf32> -> vector<128x8xf32>
    %58 = arith.addf %52, %57 : vector<128x8xf32>
    %59 = vector.extract_strided_slice %46 {offsets = [2, 0, 0], sizes = [8, 16, 4], strides = [1, 1, 1]} : vector<10x16x4xf32> to vector<8x16x4xf32>
    %60 = vector.shape_cast %59 : vector<8x16x4xf32> to vector<128x4xf32>
    %c2_49 = arith.constant 2 : index
    %c1_50 = arith.constant 1 : index
    %c0_51 = arith.constant 0 : index
    %c0_52 = arith.constant 0 : index
    %61 = vector.load %arg4[%c2_49, %c1_50, %c0_51, %c0_52] : memref<3x3x4x8xf32, #tpu.memory_space<vmem>>, vector<1x1x4x8xf32>
    %62 = vector.shape_cast %61 : vector<1x1x4x8xf32> to vector<4x8xf32>
    %cst_53 = arith.constant dense<0.000000e+00> : vector<128x8xf32>
    %63 = tpu.matmul %60, %62, %cst_53 {dimension_numbers = #tpu.dot_dimension_numbers<[1], [0], [0], [1], [0, 0, 1, 1], [], []>} : vector<128x4xf32>, vector<4x8xf32>, vector<128x8xf32> -> vector<128x8xf32>
    %64 = arith.addf %58, %63 : vector<128x8xf32>
    %c0_54 = arith.constant 0 : index
    %c2_55 = arith.constant 2 : index
    %c0_56 = arith.constant 0 : index
    %65 = vector.load %arg9[%c0_54, %c2_55, %c0_56] : memref<10x18x4xf32, #tpu.memory_space<vmem>>, vector<10x16x4xf32>
    %66 = vector.extract_strided_slice %65 {offsets = [0, 0, 0], sizes = [8, 16, 4], strides = [1, 1, 1]} : vector<10x16x4xf32> to vector<8x16x4xf32>
    %67 = vector.shape_cast %66 : vector<8x16x4xf32> to vector<128x4xf32>
    %c0_57 = arith.constant 0 : index
    %c2_58 = arith.constant 2 : index
    %c0_59 = arith.constant 0 : index
    %c0_60 = arith.constant 0 : index
    %68 = vector.load %arg4[%c0_57, %c2_58, %c0_59, %c0_60] : memref<3x3x4x8xf32, #tpu.memory_space<vmem>>, vector<1x1x4x8xf32>
    %69 = vector.shape_cast %68 : vector<1x1x4x8xf32> to vector<4x8xf32>
    %cst_61 = arith.constant dense<0.000000e+00> : vector<128x8xf32>
    %70 = tpu.matmul %67, %69, %cst_61 {dimension_numbers = #tpu.dot_dimension_numbers<[1], [0], [0], [1], [0, 0, 1, 1], [], []>} : vector<128x4xf32>, vector<4x8xf32>, vector<128x8xf32> -> vector<128x8xf32>
    %71 = arith.addf %64, %70 : vector<128x8xf32>
    %72 = vector.extract_strided_slice %65 {offsets = [1, 0, 0], sizes = [8, 16, 4], strides = [1, 1, 1]} : vector<10x16x4xf32> to vector<8x16x4xf32>
    %73 = vector.shape_cast %72 : vector<8x16x4xf32> to vector<128x4xf32>
    %c1_62 = arith.constant 1 : index
    %c2_63 = arith.constant 2 : index
    %c0_64 = arith.constant 0 : index
    %c0_65 = arith.constant 0 : index
    %74 = vector.load %arg4[%c1_62, %c2_63, %c0_64, %c0_65] : memref<3x3x4x8xf32, #tpu.memory_space<vmem>>, vector<1x1x4x8xf32>
    %75 = vector.shape_cast %74 : vector<1x1x4x8xf32> to vector<4x8xf32>
    %cst_66 = arith.constant dense<0.000000e+00> : vector<128x8xf32>
    %76 = tpu.matmul %73, %75, %cst_66 {dimension_numbers = #tpu.dot_dimension_numbers<[1], [0], [0], [1], [0, 0, 1, 1], [], []>} : vector<128x4xf32>, vector<4x8xf32>, vector<128x8xf32> -> vector<128x8xf32>
    %77 = arith.addf %71, %76 : vector<128x8xf32>
    %78 = vector.extract_strided_slice %65 {offsets = [2, 0, 0], sizes = [8, 16, 4], strides = [1, 1, 1]} : vector<10x16x4xf32> to vector<8x16x4xf32>
    %79 = vector.shape_cast %78 : vector<8x16x4xf32> to vector<128x4xf32>
    %c2_67 = arith.constant 2 : index
    %c2_68 = arith.constant 2 : index
    %c0_69 = arith.constant 0 : index
    %c0_70 = arith.constant 0 : index
    %80 = vector.load %arg4[%c2_67, %c2_68, %c0_69, %c0_70] : memref<3x3x4x8xf32, #tpu.memory_space<vmem>>, vector<1x1x4x8xf32>
    %81 = vector.shape_cast %80 : vector<1x1x4x8xf32> to vector<4x8xf32>
    %cst_71 = arith.constant dense<0.000000e+00> : vector<128x8xf32>
    %82 = tpu.matmul %79, %81, %cst_71 {dimension_numbers = #tpu.dot_dimension_numbers<[1], [0], [0], [1], [0, 0, 1, 1], [], []>} : vector<128x4xf32>, vector<4x8xf32>, vector<128x8xf32> -> vector<128x8xf32>
    %83 = arith.addf %77, %82 : vector<128x8xf32>
    %c0_72 = arith.constant 0 : index
    %c0_73 = arith.constant 0 : index
    %c0_74 = arith.constant 0 : index
    %84 = vector.load %arg6[%c0_72, %c0_73, %c0_74] : memref<1x1x8xf32, #tpu.memory_space<vmem>>, vector<1x1x8xf32>
    %85 = vector.shape_cast %84 : vector<1x1x8xf32> to vector<8xf32>
    %86 = vector.shape_cast %85 : vector<8xf32> to vector<1x8xf32>
    %87 = vector.broadcast %86 : vector<1x8xf32> to vector<128x8xf32>
    %88 = arith.mulf %83, %87 : vector<128x8xf32>
    %c0_75 = arith.constant 0 : index
    %c0_76 = arith.constant 0 : index
    %c0_77 = arith.constant 0 : index
    %89 = vector.load %arg7[%c0_75, %c0_76, %c0_77] : memref<1x1x8xf32, #tpu.memory_space<vmem>>, vector<1x1x8xf32>
    %90 = vector.shape_cast %89 : vector<1x1x8xf32> to vector<8xf32>
    %91 = vector.shape_cast %90 : vector<8xf32> to vector<1x8xf32>
    %92 = vector.broadcast %91 : vector<1x8xf32> to vector<128x8xf32>
    %93 = arith.addf %88, %92 : vector<128x8xf32>
    %cst_78 = arith.constant 0.000000e+00 : f32
    %94 = vector.broadcast %cst_78 : f32 to vector<128x8xf32>
    %95 = arith.cmpf oge, %93, %94 : vector<128x8xf32>
    %cst_79 = arith.constant 1.41421354 : f32
    %cst_80 = arith.constant 0.282842726 : f32
    %96 = vector.broadcast %cst_79 : f32 to vector<128x8xf32>
    %97 = vector.broadcast %cst_80 : f32 to vector<128x8xf32>
    %98 = arith.select %95, %96, %97 : vector<128x8xi1>, vector<128x8xf32>
    %99 = arith.mulf %93, %98 : vector<128x8xf32>
    %100 = vector.shape_cast %99 : vector<128x8xf32> to vector<8x16x8xf32>
    %c0_81 = arith.constant 0 : index
    %c0_82 = arith.constant 0 : index
    %c0_83 = arith.constant 0 : index
    %c0_84 = arith.constant 0 : index
    %101 = vector.load %arg8[%c0_81, %c0_82, %c0_83, %c0_84] : memref<1x8x16x8xf32, #tpu.memory_space<vmem>>, vector<1x8x16x8xf32>
    %102 = vector.shape_cast %101 : vector<1x8x16x8xf32> to vector<8x16x8xf32>
    %103 = vector.shape_cast %100 : vector<8x16x8xf32> to vector<1x8x16x8xf32>
    tpu.vector_store %arg8[%c0_81, %c0_82, %c0_83, %c0_84], %103 {strides = array<i32>} : memref<1x8x16x8xf32, #tpu.memory_space<vmem>>, vector<1x8x16x8xf32>,
    return
  }
  func.func @transform_0(%arg0: i32, %arg1: i32, %arg2: i32) -> (i32, i32, i32, i32) {
    %c0_i32 = arith.constant 0 : i32
    %c0_i32_0 = arith.constant 0 : i32
    %c0_i32_1 = arith.constant 0 : i32
    %c0_i32_2 = arith.constant 0 : i32
    return %arg0, %c0_i32, %c0_i32_0, %c0_i32_1 : i32, i32, i32, i32
  }
  func.func @transform_1(%arg0: i32, %arg1: i32, %arg2: i32) -> (i32, i32, i32, i32) {
    %c0_i32 = arith.constant 0 : i32
    %c0_i32_0 = arith.constant 0 : i32
    %c0_i32_1 = arith.constant 0 : i32
    %c0_i32_2 = arith.constant 0 : i32
    return %c0_i32, %c0_i32_0, %c0_i32_1, %arg1 : i32, i32, i32, i32
  }
  func.func @transform_2(%arg0: i32, %arg1: i32, %arg2: i32) -> (i32, i32, i32) {
    %c0_i32 = arith.constant 0 : i32
    %c0_i32_0 = arith.constant 0 : i32
    %c0_i32_1 = arith.constant 0 : i32
    return %arg0, %c0_i32, %c0_i32_0 : i32, i32, i32
  }
  func.func @transform_3(%arg0: i32, %arg1: i32, %arg2: i32) -> (i32, i32, i32) {
    %c0_i32 = arith.constant 0 : i32
    %c0_i32_0 = arith.constant 0 : i32
    return %arg0, %c0_i32, %arg1 : i32, i32, i32
  }
  func.func @transform_4(%arg0: i32, %arg1: i32, %arg2: i32) -> (i32, i32, i32) {
    %c0_i32 = arith.constant 0 : i32
    %c0_i32_0 = arith.constant 0 : i32
    %c0_i32_1 = arith.constant 0 : i32
    return %c0_i32, %c0_i32_0, %arg1 : i32, i32, i32
  }
  func.func @transform_5(%arg0: i32, %arg1: i32, %arg2: i32) -> (i32, i32, i32, i32) {
    %c0_i32 = arith.constant 0 : i32
    %c0_i32_0 = arith.constant 0 : i32
    return %arg0, %arg2, %c0_i32, %arg1 : i32, i32, i32, i32
  }
}

module attributes {stable_mosaic.version = 11 : i64} {
  func.func @_modconv_act_kernel(%arg0: i32, %arg1: i32, %arg2: i32, %arg3: memref<1x16x16x8xf32, #tpu.memory_space<vmem>>, %arg4: memref<3x3x8x8xf32, #tpu.memory_space<vmem>>, %arg5: memref<1x1x8xf32, #tpu.memory_space<vmem>>, %arg6: memref<1x1x8xf32, #tpu.memory_space<vmem>>, %arg7: memref<1x1x8xf32, #tpu.memory_space<vmem>>, %arg8: memref<1x8x16x8xf32, #tpu.memory_space<vmem>>, %arg9: memref<10x18x8xf32, #tpu.memory_space<vmem>>) attributes {dimension_semantics = [#tpu.dimension_semantics<parallel>, #tpu.dimension_semantics<parallel>, #tpu.dimension_semantics<parallel>], iteration_bounds = array<i64: 2, 1, 2>, scalar_prefetch = 0 : i64, scratch_operands = 1 : i64, tpu.core_type = #tpu.core_type<tc>, window_params = [{transform_indices = @transform_0, window_bounds = array<i64: 1, 16, 16, 8>}, {transform_indices = @transform_1, window_bounds = array<i64: 3, 3, 8, 8>}, {transform_indices = @transform_2, window_bounds = array<i64: 1, 1, 8>}, {transform_indices = @transform_3, window_bounds = array<i64: 1, 1, 8>}, {transform_indices = @transform_4, window_bounds = array<i64: 1, 1, 8>}, {transform_indices = @transform_5, window_bounds = array<i64: 1, 8, 16, 8>}]} {
    %c8_i32 = arith.constant 8 : i32
    %0 = arith.muli %arg2, %c8_i32 : i32
    %1 = tpu.assume_multiple %0, 8 : i32
    %c0 = arith.constant 0 : index
    %c0_0 = arith.constant 0 : index
    %c0_1 = arith.constant 0 : index
    %2 = vector.load %arg5[%c0, %c0_0, %c0_1] : memref<1x1x8xf32, #tpu.memory_space<vmem>>, vector<1x1x8xf32>
    %3 = vector.shape_cast %2 : vector<1x1x8xf32> to vector<8xf32>
    %cst = arith.constant 0.000000e+00 : f32
    %4 = vector.broadcast %cst : f32 to vector<10x1x8xf32>
    %c0_2 = arith.constant 0 : index
    %c0_3 = arith.constant 0 : index
    %c0_4 = arith.constant 0 : index
    %5 = vector.load %arg9[%c0_2, %c0_3, %c0_4] : memref<10x18x8xf32, #tpu.memory_space<vmem>>, vector<10x1x8xf32>
    tpu.vector_store %arg9[%c0_2, %c0_3, %c0_4], %4 {strides = array<i32>} : memref<10x18x8xf32, #tpu.memory_space<vmem>>, vector<10x1x8xf32>,
    %c0_5 = arith.constant 0 : index
    %c17 = arith.constant 17 : index
    %c0_6 = arith.constant 0 : index
    %6 = vector.load %arg9[%c0_5, %c17, %c0_6] : memref<10x18x8xf32, #tpu.memory_space<vmem>>, vector<10x1x8xf32>
    tpu.vector_store %arg9[%c0_5, %c17, %c0_6], %4 {strides = array<i32>} : memref<10x18x8xf32, #tpu.memory_space<vmem>>, vector<10x1x8xf32>,
    %c0_i32 = arith.constant 0 : i32
    %7 = arith.cmpi eq, %arg2, %c0_i32 : i32
    %8 = arith.extui %7 : i1 to i32
    %c0_i32_7 = arith.constant 0 : i32
    %9 = arith.cmpi ne, %8, %c0_i32_7 : i32
    scf.if %9 {
      %cst_85 = arith.constant 0.000000e+00 : f32
      %104 = vector.broadcast %cst_85 : f32 to vector<1x18x8xf32>
      %c0_86 = arith.constant 0 : index
      %c0_87 = arith.constant 0 : index
      %c0_88 = arith.constant 0 : index
      %105 = vector.load %arg9[%c0_86, %c0_87, %c0_88] : memref<10x18x8xf32, #tpu.memory_space<vmem>>, vector<1x18x8xf32>
      tpu.vector_store %arg9[%c0_86, %c0_87, %c0_88], %104 {strides = array<i32>} : memref<10x18x8xf32, #tpu.memory_space<vmem>>, vector<1x18x8xf32>,
    } else {
    }
    %c1_i32 = arith.constant 1 : i32
    %10 = arith.cmpi eq, %arg2, %c1_i32 : i32
    %11 = arith.extui %10 : i1 to i32
    %c0_i32_8 = arith.constant 0 : i32
    %12 = arith.cmpi ne, %11, %c0_i32_8 : i32
    scf.if %12 {
      %cst_85 = arith.constant 0.000000e+00 : f32
      %104 = vector.broadcast %cst_85 : f32 to vector<1x18x8xf32>
      %c9 = arith.constant 9 : index
      %c0_86 = arith.constant 0 : index
      %c0_87 = arith.constant 0 : index
      %105 = vector.load %arg9[%c9, %c0_86, %c0_87] : memref<10x18x8xf32, #tpu.memory_space<vmem>>, vector<1x18x8xf32>
      tpu.vector_store %arg9[%c9, %c0_86, %c0_87], %104 {strides = array<i32>} : memref<10x18x8xf32, #tpu.memory_space<vmem>>, vector<1x18x8xf32>,
    } else {
    }
    %c0_9 = arith.constant 0 : index
    %13 = arith.index_cast %1 : i32 to index
    %c0_10 = arith.constant 0 : index
    %c0_11 = arith.constant 0 : index
    %14 = vector.load %arg3[%c0_9, %13, %c0_10, %c0_11] : memref<1x16x16x8xf32, #tpu.memory_space<vmem>>, vector<1x8x16x8xf32>
    %15 = vector.shape_cast %14 : vector<1x8x16x8xf32> to vector<8x16x8xf32>
    %16 = vector.shape_cast %3 : vector<8xf32> to vector<1x1x8xf32>
    %17 = vector.broadcast %16 : vector<1x1x8xf32> to vector<8x16x8xf32>
    %18 = arith.mulf %15, %17 : vector<8x16x8xf32>
    %c1 = arith.constant 1 : index
    %c1_12 = arith.constant 1 : index
    %c0_13 = arith.constant 0 : index
    %19 = vector.load %arg9[%c1, %c1_12, %c0_13] : memref<10x18x8xf32, #tpu.memory_space<vmem>>, vector<8x16x8xf32>
    tpu.vector_store %arg9[%c1, %c1_12, %c0_13], %18 {strides = array<i32>} : memref<10x18x8xf32, #tpu.memory_space<vmem>>, vector<8x16x8xf32>,
    %c0_i32_14 = arith.constant 0 : i32
    %20 = arith.cmpi sgt, %arg2, %c0_i32_14 : i32
    %21 = arith.extui %20 : i1 to i32
    %c0_i32_15 = arith.constant 0 : i32
    %22 = arith.cmpi ne, %21, %c0_i32_15 : i32
    scf.if %22 {
      %c1_i32_85 = arith.constant 1 : i32
      %104 = arith.subi %1, %c1_i32_85 : i32
      %c0_86 = arith.constant 0 : index
      %105 = arith.index_cast %104 : i32 to index
      %c0_87 = arith.constant 0 : index
      %c0_88 = arith.constant 0 : index
      %106 = vector.load %arg3[%c0_86, %105, %c0_87, %c0_88] : memref<1x16x16x8xf32, #tpu.memory_space<vmem>>, vector<1x1x16x8xf32>
      %107 = vector.shape_cast %106 : vector<1x1x16x8xf32> to vector<1x16x8xf32>
      %108 = vector.shape_cast %3 : vector<8xf32> to vector<1x1x8xf32>
      %109 = vector.broadcast %108 : vector<1x1x8xf32> to vector<1x16x8xf32>
      %110 = arith.mulf %107, %109 : vector<1x16x8xf32>
      %c0_89 = arith.constant 0 : index
      %c1_90 = arith.constant 1 : index
      %c0_91 = arith.constant 0 : index
      %111 = vector.load %arg9[%c0_89, %c1_90, %c0_91] : memref<10x18x8xf32, #tpu.memory_space<vmem>>, vector<1x16x8xf32>
      tpu.vector_store %arg9[%c0_89, %c1_90, %c0_91], %110 {strides = array<i32>} : memref<10x18x8xf32, #tpu.memory_space<vmem>>, vector<1x16x8xf32>,
    } else {
    }
    %c1_i32_16 = arith.constant 1 : i32
    %23 = arith.cmpi slt, %arg2, %c1_i32_16 : i32
    %24 = arith.extui %23 : i1 to i32
    %c0_i32_17 = arith.constant 0 : i32
    %25 = arith.cmpi ne, %24, %c0_i32_17 : i32
    scf.if %25 {
      %c8_i32_85 = arith.constant 8 : i32
      %104 = arith.addi %1, %c8_i32_85 : i32
      %c0_86 = arith.constant 0 : index
      %105 = arith.index_cast %104 : i32 to index
      %c0_87 = arith.constant 0 : index
      %c0_88 = arith.constant 0 : index
      %106 = vector.load %arg3[%c0_86, %105, %c0_87, %c0_88] : memref<1x16x16x8xf32, #tpu.memory_space<vmem>>, vector<1x1x16x8xf32>
      %107 = vector.shape_cast %106 : vector<1x1x16x8xf32> to vector<1x16x8xf32>
      %108 = vector.shape_cast %3 : vector<8xf32> to vector<1x1x8xf32>
      %109 = vector.broadcast %108 : vector<1x1x8xf32> to vector<1x16x8xf32>
      %110 = arith.mulf %107, %109 : vector<1x16x8xf32>
      %c9 = arith.constant 9 : index
      %c1_89 = arith.constant 1 : index
      %c0_90 = arith.constant 0 : index
      %111 = vector.load %arg9[%c9, %c1_89, %c0_90] : memref<10x18x8xf32, #tpu.memory_space<vmem>>, vector<1x16x8xf32>
      tpu.vector_store %arg9[%c9, %c1_89, %c0_90], %110 {strides = array<i32>} : memref<10x18x8xf32, #tpu.memory_space<vmem>>, vector<1x16x8xf32>,
    } else {
    }
    %cst_18 = arith.constant 0.000000e+00 : f32
    %26 = vector.broadcast %cst_18 : f32 to vector<128x8xf32>
    %c0_19 = arith.constant 0 : index
    %c0_20 = arith.constant 0 : index
    %c0_21 = arith.constant 0 : index
    %27 = vector.load %arg9[%c0_19, %c0_20, %c0_21] : memref<10x18x8xf32, #tpu.memory_space<vmem>>, vector<10x16x8xf32>
    %28 = vector.extract_strided_slice %27 {offsets = [0, 0, 0], sizes = [8, 16, 8], strides = [1, 1, 1]} : vector<10x16x8xf32> to vector<8x16x8xf32>
    %29 = vector.shape_cast %28 : vector<8x16x8xf32> to vector<128x8xf32>
    %c0_22 = arith.constant 0 : index
    %c0_23 = arith.constant 0 : index
    %c0_24 = arith.constant 0 : index
    %c0_25 = arith.constant 0 : index
    %30 = vector.load %arg4[%c0_22, %c0_23, %c0_24, %c0_25] : memref<3x3x8x8xf32, #tpu.memory_space<vmem>>, vector<1x1x8x8xf32>
    %31 = vector.shape_cast %30 : vector<1x1x8x8xf32> to vector<8x8xf32>
    %cst_26 = arith.constant dense<0.000000e+00> : vector<128x8xf32>
    %32 = tpu.matmul %29, %31, %cst_26 {dimension_numbers = #tpu.dot_dimension_numbers<[1], [0], [0], [1], [0, 0, 1, 1], [], []>} : vector<128x8xf32>, vector<8x8xf32>, vector<128x8xf32> -> vector<128x8xf32>
    %33 = arith.addf %26, %32 : vector<128x8xf32>
    %34 = vector.extract_strided_slice %27 {offsets = [1, 0, 0], sizes = [8, 16, 8], strides = [1, 1, 1]} : vector<10x16x8xf32> to vector<8x16x8xf32>
    %35 = vector.shape_cast %34 : vector<8x16x8xf32> to vector<128x8xf32>
    %c1_27 = arith.constant 1 : index
    %c0_28 = arith.constant 0 : index
    %c0_29 = arith.constant 0 : index
    %c0_30 = arith.constant 0 : index
    %36 = vector.load %arg4[%c1_27, %c0_28, %c0_29, %c0_30] : memref<3x3x8x8xf32, #tpu.memory_space<vmem>>, vector<1x1x8x8xf32>
    %37 = vector.shape_cast %36 : vector<1x1x8x8xf32> to vector<8x8xf32>
    %cst_31 = arith.constant dense<0.000000e+00> : vector<128x8xf32>
    %38 = tpu.matmul %35, %37, %cst_31 {dimension_numbers = #tpu.dot_dimension_numbers<[1], [0], [0], [1], [0, 0, 1, 1], [], []>} : vector<128x8xf32>, vector<8x8xf32>, vector<128x8xf32> -> vector<128x8xf32>
    %39 = arith.addf %33, %38 : vector<128x8xf32>
    %40 = vector.extract_strided_slice %27 {offsets = [2, 0, 0], sizes = [8, 16, 8], strides = [1, 1, 1]} : vector<10x16x8xf32> to vector<8x16x8xf32>
    %41 = vector.shape_cast %40 : vector<8x16x8xf32> to vector<128x8xf32>
    %c2 = arith.constant 2 : index
    %c0_32 = arith.constant 0 : index
    %c0_33 = arith.constant 0 : index
    %c0_34 = arith.constant 0 : index
    %42 = vector.load %arg4[%c2, %c0_32, %c0_33, %c0_34] : memref<3x3x8x8xf32, #tpu.memory_space<vmem>>, vector<1x1x8x8xf32>
    %43 = vector.shape_cast %42 : vector<1x1x8x8xf32> to vector<8x8xf32>
    %cst_35 = arith.constant dense<0.000000e+00> : vector<128x8xf32>
    %44 = tpu.matmul %41, %43, %cst_35 {dimension_numbers = #tpu.dot_dimension_numbers<[1], [0], [0], [1], [0, 0, 1, 1], [], []>} : vector<128x8xf32>, vector<8x8xf32>, vector<128x8xf32> -> vector<128x8xf32>
    %45 = arith.addf %39, %44 : vector<128x8xf32>
    %c0_36 = arith.constant 0 : index
    %c1_37 = arith.constant 1 : index
    %c0_38 = arith.constant 0 : index
    %46 = vector.load %arg9[%c0_36, %c1_37, %c0_38] : memref<10x18x8xf32, #tpu.memory_space<vmem>>, vector<10x16x8xf32>
    %47 = vector.extract_strided_slice %46 {offsets = [0, 0, 0], sizes = [8, 16, 8], strides = [1, 1, 1]} : vector<10x16x8xf32> to vector<8x16x8xf32>
    %48 = vector.shape_cast %47 : vector<8x16x8xf32> to vector<128x8xf32>
    %c0_39 = arith.constant 0 : index
    %c1_40 = arith.constant 1 : index
    %c0_41 = arith.constant 0 : index
    %c0_42 = arith.constant 0 : index
    %49 = vector.load %arg4[%c0_39, %c1_40, %c0_41, %c0_42] : memref<3x3x8x8xf32, #tpu.memory_space<vmem>>, vector<1x1x8x8xf32>
    %50 = vector.shape_cast %49 : vector<1x1x8x8xf32> to vector<8x8xf32>
    %cst_43 = arith.constant dense<0.000000e+00> : vector<128x8xf32>
    %51 = tpu.matmul %48, %50, %cst_43 {dimension_numbers = #tpu.dot_dimension_numbers<[1], [0], [0], [1], [0, 0, 1, 1], [], []>} : vector<128x8xf32>, vector<8x8xf32>, vector<128x8xf32> -> vector<128x8xf32>
    %52 = arith.addf %45, %51 : vector<128x8xf32>
    %53 = vector.extract_strided_slice %46 {offsets = [1, 0, 0], sizes = [8, 16, 8], strides = [1, 1, 1]} : vector<10x16x8xf32> to vector<8x16x8xf32>
    %54 = vector.shape_cast %53 : vector<8x16x8xf32> to vector<128x8xf32>
    %c1_44 = arith.constant 1 : index
    %c1_45 = arith.constant 1 : index
    %c0_46 = arith.constant 0 : index
    %c0_47 = arith.constant 0 : index
    %55 = vector.load %arg4[%c1_44, %c1_45, %c0_46, %c0_47] : memref<3x3x8x8xf32, #tpu.memory_space<vmem>>, vector<1x1x8x8xf32>
    %56 = vector.shape_cast %55 : vector<1x1x8x8xf32> to vector<8x8xf32>
    %cst_48 = arith.constant dense<0.000000e+00> : vector<128x8xf32>
    %57 = tpu.matmul %54, %56, %cst_48 {dimension_numbers = #tpu.dot_dimension_numbers<[1], [0], [0], [1], [0, 0, 1, 1], [], []>} : vector<128x8xf32>, vector<8x8xf32>, vector<128x8xf32> -> vector<128x8xf32>
    %58 = arith.addf %52, %57 : vector<128x8xf32>
    %59 = vector.extract_strided_slice %46 {offsets = [2, 0, 0], sizes = [8, 16, 8], strides = [1, 1, 1]} : vector<10x16x8xf32> to vector<8x16x8xf32>
    %60 = vector.shape_cast %59 : vector<8x16x8xf32> to vector<128x8xf32>
    %c2_49 = arith.constant 2 : index
    %c1_50 = arith.constant 1 : index
    %c0_51 = arith.constant 0 : index
    %c0_52 = arith.constant 0 : index
    %61 = vector.load %arg4[%c2_49, %c1_50, %c0_51, %c0_52] : memref<3x3x8x8xf32, #tpu.memory_space<vmem>>, vector<1x1x8x8xf32>
    %62 = vector.shape_cast %61 : vector<1x1x8x8xf32> to vector<8x8xf32>
    %cst_53 = arith.constant dense<0.000000e+00> : vector<128x8xf32>
    %63 = tpu.matmul %60, %62, %cst_53 {dimension_numbers = #tpu.dot_dimension_numbers<[1], [0], [0], [1], [0, 0, 1, 1], [], []>} : vector<128x8xf32>, vector<8x8xf32>, vector<128x8xf32> -> vector<128x8xf32>
    %64 = arith.addf %58, %63 : vector<128x8xf32>
    %c0_54 = arith.constant 0 : index
    %c2_55 = arith.constant 2 : index
    %c0_56 = arith.constant 0 : index
    %65 = vector.load %arg9[%c0_54, %c2_55, %c0_56] : memref<10x18x8xf32, #tpu.memory_space<vmem>>, vector<10x16x8xf32>
    %66 = vector.extract_strided_slice %65 {offsets = [0, 0, 0], sizes = [8, 16, 8], strides = [1, 1, 1]} : vector<10x16x8xf32> to vector<8x16x8xf32>
    %67 = vector.shape_cast %66 : vector<8x16x8xf32> to vector<128x8xf32>
    %c0_57 = arith.constant 0 : index
    %c2_58 = arith.constant 2 : index
    %c0_59 = arith.constant 0 : index
    %c0_60 = arith.constant 0 : index
    %68 = vector.load %arg4[%c0_57, %c2_58, %c0_59, %c0_60] : memref<3x3x8x8xf32, #tpu.memory_space<vmem>>, vector<1x1x8x8xf32>
    %69 = vector.shape_cast %68 : vector<1x1x8x8xf32> to vector<8x8xf32>
    %cst_61 = arith.constant dense<0.000000e+00> : vector<128x8xf32>
    %70 = tpu.matmul %67, %69, %cst_61 {dimension_numbers = #tpu.dot_dimension_numbers<[1], [0], [0], [1], [0, 0, 1, 1], [], []>} : vector<128x8xf32>, vector<8x8xf32>, vector<128x8xf32> -> vector<128x8xf32>
    %71 = arith.addf %64, %70 : vector<128x8xf32>
    %72 = vector.extract_strided_slice %65 {offsets = [1, 0, 0], sizes = [8, 16, 8], strides = [1, 1, 1]} : vector<10x16x8xf32> to vector<8x16x8xf32>
    %73 = vector.shape_cast %72 : vector<8x16x8xf32> to vector<128x8xf32>
    %c1_62 = arith.constant 1 : index
    %c2_63 = arith.constant 2 : index
    %c0_64 = arith.constant 0 : index
    %c0_65 = arith.constant 0 : index
    %74 = vector.load %arg4[%c1_62, %c2_63, %c0_64, %c0_65] : memref<3x3x8x8xf32, #tpu.memory_space<vmem>>, vector<1x1x8x8xf32>
    %75 = vector.shape_cast %74 : vector<1x1x8x8xf32> to vector<8x8xf32>
    %cst_66 = arith.constant dense<0.000000e+00> : vector<128x8xf32>
    %76 = tpu.matmul %73, %75, %cst_66 {dimension_numbers = #tpu.dot_dimension_numbers<[1], [0], [0], [1], [0, 0, 1, 1], [], []>} : vector<128x8xf32>, vector<8x8xf32>, vector<128x8xf32> -> vector<128x8xf32>
    %77 = arith.addf %71, %76 : vector<128x8xf32>
    %78 = vector.extract_strided_slice %65 {offsets = [2, 0, 0], sizes = [8, 16, 8], strides = [1, 1, 1]} : vector<10x16x8xf32> to vector<8x16x8xf32>
    %79 = vector.shape_cast %78 : vector<8x16x8xf32> to vector<128x8xf32>
    %c2_67 = arith.constant 2 : index
    %c2_68 = arith.constant 2 : index
    %c0_69 = arith.constant 0 : index
    %c0_70 = arith.constant 0 : index
    %80 = vector.load %arg4[%c2_67, %c2_68, %c0_69, %c0_70] : memref<3x3x8x8xf32, #tpu.memory_space<vmem>>, vector<1x1x8x8xf32>
    %81 = vector.shape_cast %80 : vector<1x1x8x8xf32> to vector<8x8xf32>
    %cst_71 = arith.constant dense<0.000000e+00> : vector<128x8xf32>
    %82 = tpu.matmul %79, %81, %cst_71 {dimension_numbers = #tpu.dot_dimension_numbers<[1], [0], [0], [1], [0, 0, 1, 1], [], []>} : vector<128x8xf32>, vector<8x8xf32>, vector<128x8xf32> -> vector<128x8xf32>
    %83 = arith.addf %77, %82 : vector<128x8xf32>
    %c0_72 = arith.constant 0 : index
    %c0_73 = arith.constant 0 : index
    %c0_74 = arith.constant 0 : index
    %84 = vector.load %arg6[%c0_72, %c0_73, %c0_74] : memref<1x1x8xf32, #tpu.memory_space<vmem>>, vector<1x1x8xf32>
    %85 = vector.shape_cast %84 : vector<1x1x8xf32> to vector<8xf32>
    %86 = vector.shape_cast %85 : vector<8xf32> to vector<1x8xf32>
    %87 = vector.broadcast %86 : vector<1x8xf32> to vector<128x8xf32>
    %88 = arith.mulf %83, %87 : vector<128x8xf32>
    %c0_75 = arith.constant 0 : index
    %c0_76 = arith.constant 0 : index
    %c0_77 = arith.constant 0 : index
    %89 = vector.load %arg7[%c0_75, %c0_76, %c0_77] : memref<1x1x8xf32, #tpu.memory_space<vmem>>, vector<1x1x8xf32>
    %90 = vector.shape_cast %89 : vector<1x1x8xf32> to vector<8xf32>
    %91 = vector.shape_cast %90 : vector<8xf32> to vector<1x8xf32>
    %92 = vector.broadcast %91 : vector<1x8xf32> to vector<128x8xf32>
    %93 = arith.addf %88, %92 : vector<128x8xf32>
    %cst_78 = arith.constant 0.000000e+00 : f32
    %94 = vector.broadcast %cst_78 : f32 to vector<128x8xf32>
    %95 = arith.cmpf oge, %93, %94 : vector<128x8xf32>
    %cst_79 = arith.constant 1.41421354 : f32
    %cst_80 = arith.constant 0.282842726 : f32
    %96 = vector.broadcast %cst_79 : f32 to vector<128x8xf32>
    %97 = vector.broadcast %cst_80 : f32 to vector<128x8xf32>
    %98 = arith.select %95, %96, %97 : vector<128x8xi1>, vector<128x8xf32>
    %99 = arith.mulf %93, %98 : vector<128x8xf32>
    %100 = vector.shape_cast %99 : vector<128x8xf32> to vector<8x16x8xf32>
    %c0_81 = arith.constant 0 : index
    %c0_82 = arith.constant 0 : index
    %c0_83 = arith.constant 0 : index
    %c0_84 = arith.constant 0 : index
    %101 = vector.load %arg8[%c0_81, %c0_82, %c0_83, %c0_84] : memref<1x8x16x8xf32, #tpu.memory_space<vmem>>, vector<1x8x16x8xf32>
    %102 = vector.shape_cast %101 : vector<1x8x16x8xf32> to vector<8x16x8xf32>
    %103 = vector.shape_cast %100 : vector<8x16x8xf32> to vector<1x8x16x8xf32>
    tpu.vector_store %arg8[%c0_81, %c0_82, %c0_83, %c0_84], %103 {strides = array<i32>} : memref<1x8x16x8xf32, #tpu.memory_space<vmem>>, vector<1x8x16x8xf32>,
    return
  }
  func.func @transform_0(%arg0: i32, %arg1: i32, %arg2: i32) -> (i32, i32, i32, i32) {
    %c0_i32 = arith.constant 0 : i32
    %c0_i32_0 = arith.constant 0 : i32
    %c0_i32_1 = arith.constant 0 : i32
    %c0_i32_2 = arith.constant 0 : i32
    return %arg0, %c0_i32, %c0_i32_0, %c0_i32_1 : i32, i32, i32, i32
  }
  func.func @transform_1(%arg0: i32, %arg1: i32, %arg2: i32) -> (i32, i32, i32, i32) {
    %c0_i32 = arith.constant 0 : i32
    %c0_i32_0 = arith.constant 0 : i32
    %c0_i32_1 = arith.constant 0 : i32
    %c0_i32_2 = arith.constant 0 : i32
    return %c0_i32, %c0_i32_0, %c0_i32_1, %arg1 : i32, i32, i32, i32
  }
  func.func @transform_2(%arg0: i32, %arg1: i32, %arg2: i32) -> (i32, i32, i32) {
    %c0_i32 = arith.constant 0 : i32
    %c0_i32_0 = arith.constant 0 : i32
    %c0_i32_1 = arith.constant 0 : i32
    return %arg0, %c0_i32, %c0_i32_0 : i32, i32, i32
  }
  func.func @transform_3(%arg0: i32, %arg1: i32, %arg2: i32) -> (i32, i32, i32) {
    %c0_i32 = arith.constant 0 : i32
    %c0_i32_0 = arith.constant 0 : i32
    return %arg0, %c0_i32, %arg1 : i32, i32, i32
  }
  func.func @transform_4(%arg0: i32, %arg1: i32, %arg2: i32) -> (i32, i32, i32) {
    %c0_i32 = arith.constant 0 : i32
    %c0_i32_0 = arith.constant 0 : i32
    %c0_i32_1 = arith.constant 0 : i32
    return %c0_i32, %c0_i32_0, %arg1 : i32, i32, i32
  }
  func.func @transform_5(%arg0: i32, %arg1: i32, %arg2: i32) -> (i32, i32, i32, i32) {
    %c0_i32 = arith.constant 0 : i32
    %c0_i32_0 = arith.constant 0 : i32
    return %arg0, %arg2, %c0_i32, %arg1 : i32, i32, i32, i32
  }
}

</mosaic_0001>

<llo_original>
// kernel: styled_conv_block.3
$region0: #{styled_conv_block.3}
  #allocation0 [shape = 'u32[]', space=smem, size = 0x4, offset = 0x4, fixed_abs, tag = 'smem constant byte address 0x4 - core index']
  #allocation1 [shape = 'u32[144,128]{1,0:T(1,128)}', space=vmem, size = 0x12000, scoped, tag = 'internal scratch']
  #allocation2 [shape = 'f32[10,18,8]{2,1,0:T(8,128)}', space=vmem, size = 0x1e000, scoped, tag = 'scratch operand']
  %s0 = inlined_call_operand.vmem [shape: f32[2,16,16,8], index: 0, kind: input, shape index: {}]
  %s1 = inlined_call_operand.vmem [shape: f32[3,3,8,8], index: 1, kind: input, shape index: {}]
  %s2 = inlined_call_operand.vmem [shape: f32[2,1,8], index: 2, kind: input, shape index: {}]
  %s3 = inlined_call_operand.vmem [shape: f32[2,1,8], index: 3, kind: input, shape index: {}]
  %s4 = inlined_call_operand.vmem [shape: f32[1,1,8], index: 4, kind: input, shape index: {}]
  %s5 = inlined_call_operand.vmem [shape: f32[2,16,16,8], index: 5, kind: output, shape index: {}]
  %s6 = sld [smem:[#allocation0]]
  $region69: #{styled_conv_block.3} parent=0
    _
  %s8 = ssub.s32 1, %s6
  %s9 = scalar_select 0, %s8, %s6
  loop: start=0, step=1, limit=6
  $region2: #{styled_conv_block.3} parent=0 // loop_pre_header
    _
  $region3: #{styled_conv_block.3} parent=0 // loop_header
    %s11 = sphi 0, %s15
    %p12 = scmp.ge.s32.totalorder %s11, 6
    %s18 = sphi 0, %s37
    %s19 = sphi 0, %s33
    %s20 = sphi 0, %s29
    %s21 = sphi 0, %s18
    %s22 = sphi 0, %s19
    %s23 = sphi 0, %s20
    %s24 = sphi 0, %s21
    %s25 = sphi 0, %s22
    %s26 = sphi 0, %s23
    %s40 = sphi 0, %s42
    %s43 = sphi 0, %s40
    %s44 = sphi 0, %s43
    %s60 = sphi 0, %s44
    %s66 = sphi 0, %s68
    %s69 = sphi 0, %s66
    %s70 = sphi 0, %s69
    %s86 = sphi 0, %s70
    %s92 = sphi 0, %s94
    %s95 = sphi 0, %s92
    %s96 = sphi 0, %s95
    %s112 = sphi 0, %s96
    %s120 = sphi 0, %s122
    %s123 = sphi 0, %s120
    %s124 = sphi 0, %s123
    %s140 = sphi 0, %s124
    %s146 = sphi 0, %s148
    %s149 = sphi 0, %s146
    %s150 = sphi 0, %s149
    %s166 = sphi 0, %s150
    %s176 = sphi 0, %s178
    %s179 = sphi 0, %s176
    %s180 = sphi 0, %s179
    %s196 = sphi 0, %s180
  $region4: #{styled_conv_block.3} parent=0 // loop_header_branch
    %14 = sbr.rel (%p12) target = $region8
  $region5: #{styled_conv_block.3} parent=0 // loop_body
    %s16 = ssub.s32 %s11, 1
    %s17 = ssub.s32 %s11, 2
    %s27 = sadd.s32 1, %s20
    %p28 = scmp.ge.s32.totalorder %s27, 2
    %s29 = scalar_select %p28, 0, %s27
    %s30 = sadd.s32 1, %s19
    %s31 = scalar_select %p28, %s30, %s19
    %p32 = scmp.ge.s32.totalorder %s31, 1
    %s33 = scalar_select %p32, 0, %s31
    %s34 = sadd.s32 1, %s18
    %s35 = scalar_select %p32, %s34, %s18
    %p36 = scmp.ge.s32.totalorder %s35, 2
    %s37 = scalar_select %p36, 0, %s35
    %s38 = ssub.s32 %s18, %s37
    %p39 = scmp.eq.s32.totalorder %s38, 0
    %s41 = sadd.s32 %s40, 1
    %s42 = scalar_select %p39, %s40, %s41
    %p45 = pneg %p39
    %p46 = scmp.eq.s32.totalorder %s11, 3
    %p47 = por %p45, %p46
    %p48 = scmp.ne.s32.totalorder %s40, %s43
    %p49 = scmp.eq.s32.totalorder %s11, 0
    %p50 = por %p48, %p49
    %p51 = scmp.ne.s32.totalorder %s40, %s43
    %p52 = scmp.eq.s32.totalorder %s16, 3
    %p53 = por %p51, %p52
    %p54 = scmp.ne.s32.totalorder %s43, %s44
    %p55 = scmp.eq.s32.totalorder %s16, 0
    %p56 = por %p54, %p55
    %p57 = scmp.ne.s32.totalorder %s43, %s44
    %p58 = scmp.eq.s32.totalorder %s17, 3
    %p59 = por %p57, %p58
    %p61 = scmp.ne.s32.totalorder %s44, %s60
    %p62 = scmp.eq.s32.totalorder %s17, 0
    %p63 = por %p61, %p62
    %s64 = ssub.s32 %s19, %s33
    %p65 = scmp.eq.s32.totalorder %s64, 0
    %s67 = sadd.s32 %s66, 1
    %s68 = scalar_select %p65, %s66, %s67
    %p71 = pneg %p65
    %p72 = scmp.eq.s32.totalorder %s11, 3
    %p73 = por %p71, %p72
    %p74 = scmp.ne.s32.totalorder %s66, %s69
    %p75 = scmp.eq.s32.totalorder %s11, 0
    %p76 = por %p74, %p75
    %p77 = scmp.ne.s32.totalorder %s66, %s69
    %p78 = scmp.eq.s32.totalorder %s16, 3
    %p79 = por %p77, %p78
    %p80 = scmp.ne.s32.totalorder %s69, %s70
    %p81 = scmp.eq.s32.totalorder %s16, 0
    %p82 = por %p80, %p81
    %p83 = scmp.ne.s32.totalorder %s69, %s70
    %p84 = scmp.eq.s32.totalorder %s17, 3
    %p85 = por %p83, %p84
    %p87 = scmp.ne.s32.totalorder %s70, %s86
    %p88 = scmp.eq.s32.totalorder %s17, 0
    %p89 = por %p87, %p88
    %s90 = ssub.s32 %s18, %s37
    %p91 = scmp.eq.s32.totalorder %s90, 0
    %s93 = sadd.s32 %s92, 1
    %s94 = scalar_select %p91, %s92, %s93
    %p97 = pneg %p91
    %p98 = scmp.eq.s32.totalorder %s11, 3
    %p99 = por %p97, %p98
    %p100 = scmp.ne.s32.totalorder %s92, %s95
    %p101 = scmp.eq.s32.totalorder %s11, 0
    %p102 = por %p100, %p101
    %p103 = scmp.ne.s32.totalorder %s92, %s95
    %p104 = scmp.eq.s32.totalorder %s16, 3
    %p105 = por %p103, %p104
    %p106 = scmp.ne.s32.totalorder %s95, %s96
    %p107 = scmp.eq.s32.totalorder %s16, 0
    %p108 = por %p106, %p107
    %p109 = scmp.ne.s32.totalorder %s95, %s96
    %p110 = scmp.eq.s32.totalorder %s17, 3
    %p111 = por %p109, %p110
    %p113 = scmp.ne.s32.totalorder %s96, %s112
    %p114 = scmp.eq.s32.totalorder %s17, 0
    %p115 = por %p113, %p114
    %s116 = ssub.s32 %s18, %s37
    %s117 = ssub.s32 %s19, %s33
    %s118 = sor.u32 %s116, %s117
    %p119 = scmp.eq.s32.totalorder %s118, 0
    %s121 = sadd.s32 %s120, 1
    %s122 = scalar_select %p119, %s120, %s121
    %p125 = pneg %p119
    %p126 = scmp.eq.s32.totalorder %s11, 3
    %p127 = por %p125, %p126
    %p128 = scmp.ne.s32.totalorder %s120, %s123
    %p129 = scmp.eq.s32.totalorder %s11, 0
    %p130 = por %p128, %p129
    %p131 = scmp.ne.s32.totalorder %s120, %s123
    %p132 = scmp.eq.s32.totalorder %s16, 3
    %p133 = por %p131, %p132
    %p134 = scmp.ne.s32.totalorder %s123, %s124
    %p135 = scmp.eq.s32.totalorder %s16, 0
    %p136 = por %p134, %p135
    %p137 = scmp.ne.s32.totalorder %s123, %s124
    %p138 = scmp.eq.s32.totalorder %s17, 3
    %p139 = por %p137, %p138
    %p141 = scmp.ne.s32.totalorder %s124, %s140
    %p142 = scmp.eq.s32.totalorder %s17, 0
    %p143 = por %p141, %p142
    %s144 = ssub.s32 %s19, %s33
    %p145 = scmp.eq.s32.totalorder %s144, 0
    %s147 = sadd.s32 %s146, 1
    %s148 = scalar_select %p145, %s146, %s147
    %p151 = pneg %p145
    %p152 = scmp.eq.s32.totalorder %s11, 3
    %p153 = por %p151, %p152
    %p154 = scmp.ne.s32.totalorder %s146, %s149
    %p155 = scmp.eq.s32.totalorder %s11, 0
    %p156 = por %p154, %p155
    %p157 = scmp.ne.s32.totalorder %s146, %s149
    %p158 = scmp.eq.s32.totalorder %s16, 3
    %p159 = por %p157, %p158
    %p160 = scmp.ne.s32.totalorder %s149, %s150
    %p161 = scmp.eq.s32.totalorder %s16, 0
    %p162 = por %p160, %p161
    %p163 = scmp.ne.s32.totalorder %s149, %s150
    %p164 = scmp.eq.s32.totalorder %s17, 3
    %p165 = por %p163, %p164
    %p167 = scmp.ne.s32.totalorder %s150, %s166
    %p168 = scmp.eq.s32.totalorder %s17, 0
    %p169 = por %p167, %p168
    %s170 = ssub.s32 %s18, %s37
    %s171 = ssub.s32 %s20, %s29
    %s172 = sor.u32 %s170, %s171
    %s173 = ssub.s32 %s19, %s33
    %s174 = sor.u32 %s172, %s173
    %p175 = scmp.eq.s32.totalorder %s174, 0
    %s177 = sadd.s32 %s176, 1
    %s178 = scalar_select %p175, %s176, %s177
    %p181 = pneg %p175
    %p182 = scmp.eq.s32.totalorder %s11, 3
    %p183 = por %p181, %p182
    %p184 = scmp.ne.s32.totalorder %s176, %s179
    %p185 = scmp.eq.s32.totalorder %s11, 0
    %p186 = por %p184, %p185
    %p187 = scmp.ne.s32.totalorder %s176, %s179
    %p188 = scmp.eq.s32.totalorder %s16, 3
    %p189 = por %p187, %p188
    %p190 = scmp.ne.s32.totalorder %s179, %s180
    %p191 = scmp.eq.s32.totalorder %s16, 0
    %p192 = por %p190, %p191
    %p193 = scmp.ne.s32.totalorder %s179, %s180
    %p194 = scmp.eq.s32.totalorder %s17, 3
    %p195 = por %p193, %p194
    %p197 = scmp.ne.s32.totalorder %s180, %s196
    %p198 = scmp.eq.s32.totalorder %s17, 0
    %p199 = por %p197, %p198
    %p200 = scmp.le.s32.totalorder 1, %s11
    %p201 = scmp.lt.s32.totalorder %s11, 5
    %p202 = pnand %p200, %p201
    %p203 = pneg %p202
    // Predicated region
    $region9: #{styled_conv_block.3} parent=5 // pred_check
      _
    $region10: #{styled_conv_block.3} parent=5 // pred_check_branch
      %205 = sbr.rel (%p202) target = $region12
    $region11: #{styled_conv_block.3} parent=5 // pred_region
      %s206 = ssub.s32 %s11, 1
      // Predicated region
      $region13: #{styled_conv_block.3} parent=11 // pred_check
        %p207 = pneg %p82
      $region14: #{styled_conv_block.3} parent=11 // pred_check_branch
        %209 = sbr.rel (%p207) target = $region16
      $region15: #{styled_conv_block.3} parent=11 // pred_region
        %p210 = scmp.lt.s32.totalorder %s22, 0
        %s211 = scalar_select %p210, %s22, 0
        %s212 = smul.addr %s211, 8
        %s213 = scalar_lea.vmem %s1, %s212
      $region16: #{styled_conv_block.3} parent=11 // pred_fallthru
        _
      // Predicated region
      $region17: #{styled_conv_block.3} parent=11 // pred_check
        %p214 = pneg %p162
      $region18: #{styled_conv_block.3} parent=11 // pred_check_branch
        %216 = sbr.rel (%p214) target = $region20
      $region19: #{styled_conv_block.3} parent=11 // pred_region
        %p217 = scmp.lt.s32.totalorder %s22, 0
        %s218 = scalar_select %p217, %s22, 0
        %s219 = scalar_lea.vmem %s4, %s218
      $region20: #{styled_conv_block.3} parent=11 // pred_fallthru
        _
    $region12: #{styled_conv_block.3} parent=5 // pred_fallthru
      _
    %p220 = scmp.lt.s32.totalorder %s11, 4
    // Predicated region
    $region21: #{styled_conv_block.3} parent=5 // pred_check
      %p221 = pneg %p220
    $region22: #{styled_conv_block.3} parent=5 // pred_check_branch
      %223 = sbr.rel (%p221) target = $region24
    $region23: #{styled_conv_block.3} parent=5 // pred_region
      // Predicated region
      $region25: #{styled_conv_block.3} parent=23 // pred_check
        %p224 = pneg %p50
      $region26: #{styled_conv_block.3} parent=23 // pred_check_branch
        %226 = sbr.rel (%p224) target = $region28
      $region27: #{styled_conv_block.3} parent=23 // pred_region
        %p227 = scmp.lt.s32.totalorder %s18, 1
        %s228 = scalar_select %p227, %s18, 1
        %s229 = smul.addr %s228, 32
        %s230 = smul.addr %s229, 8
        %s231 = scalar_lea.vmem %s0, %s230
      $region28: #{styled_conv_block.3} parent=23 // pred_fallthru
        _
      // Predicated region
      $region29: #{styled_conv_block.3} parent=23 // pred_check
        %p232 = pneg %p102
      $region30: #{styled_conv_block.3} parent=23 // pred_check_branch
        %234 = sbr.rel (%p232) target = $region32
      $region31: #{styled_conv_block.3} parent=23 // pred_region
        %p235 = scmp.lt.s32.totalorder %s18, 1
        %s236 = scalar_select %p235, %s18, 1
        %s237 = scalar_lea.vmem %s2, %s236
      $region32: #{styled_conv_block.3} parent=23 // pred_fallthru
        _
      // Predicated region
      $region33: #{styled_conv_block.3} parent=23 // pred_check
        %p238 = pneg %p130
      $region34: #{styled_conv_block.3} parent=23 // pred_check_branch
        %240 = sbr.rel (%p238) target = $region36
      $region35: #{styled_conv_block.3} parent=23 // pred_region
        %p241 = scmp.lt.s32.totalorder %s18, 1
        %s242 = scalar_select %p241, %s18, 1
        %p243 = scmp.lt.s32.totalorder %s19, 0
        %s244 = scalar_select %p243, %s19, 0
        %s245 = sadd.s32 %s244, %s242
        %s246 = scalar_lea.vmem %s3, %s245
      $region36: #{styled_conv_block.3} parent=23 // pred_fallthru
        _
    $region24: #{styled_conv_block.3} parent=5 // pred_fallthru
      _
    %p247 = scmp.le.s32.totalorder 1, %s11
    %p248 = scmp.lt.s32.totalorder %s11, 5
    %p249 = pnand %p247, %p248
    %p250 = pneg %p249
    // Predicated region
    $region37: #{styled_conv_block.3} parent=5 // pred_check
      _
    $region38: #{styled_conv_block.3} parent=5 // pred_check_branch
      %252 = sbr.rel (%p249) target = $region40
    $region39: #{styled_conv_block.3} parent=5 // pred_region
      %s253 = ssub.s32 %s11, 1
      %p254 = scmp.lt.s32.totalorder %s21, 1
      %s255 = scalar_select %p254, %s21, 1
      %s256 = smul.addr %s255, 32
      %s257 = smul.addr %s256, 8
      %s258 = scalar_lea.vmem %s0, %s257
      %p259 = pneg %p56
      %p260 = pneg %p53
      %p261 = scmp.lt.s32.totalorder %s22, 0
      %s262 = scalar_select %p261, %s22, 0
      %s263 = smul.addr %s262, 8
      %s264 = scalar_lea.vmem %s1, %s263
      %p265 = pneg %p82
      %p266 = pneg %p79
      %p267 = scmp.lt.s32.totalorder %s21, 1
      %s268 = scalar_select %p267, %s21, 1
      %s269 = scalar_lea.vmem %s2, %s268
      %p270 = pneg %p108
      %p271 = pneg %p105
      %p272 = scmp.lt.s32.totalorder %s21, 1
      %s273 = scalar_select %p272, %s21, 1
      %p274 = scmp.lt.s32.totalorder %s22, 0
      %s275 = scalar_select %p274, %s22, 0
      %s276 = sadd.s32 %s275, %s273
      %s277 = scalar_lea.vmem %s3, %s276
      %p278 = pneg %p136
      %p279 = pneg %p133
      %p280 = scmp.lt.s32.totalorder %s22, 0
      %s281 = scalar_select %p280, %s22, 0
      %s282 = scalar_lea.vmem %s4, %s281
      %p283 = pneg %p162
      %p284 = pneg %p159
      %p285 = pneg %p192
      %p286 = pneg %p189
      %s287 = smul.u32 8, %s23
      %p288 = scmp.lt.s32.totalorder %s21, 1
      %s289 = scalar_select %p288, %s21, 1
      %p290 = scmp.lt.s32.totalorder %s287, 15
      %s291 = scalar_select %p290, %s287, 15
      %p292 = scmp.lt.s32.totalorder %s22, 0
      %s293 = scalar_select %p292, %s22, 0
      %s294 = smul.addr %s291, 2
      %s295 = sadd.s32 %s293, %s294
      %s296 = smul.addr %s289, 32
      %s297 = sadd.s32 %s295, %s296
      %s298 = smul.addr %s297, 8
      %s299 = scalar_lea.vmem %s5, %s298
      %p300 = scmp.lt.s32.totalorder %s21, 1
      %s301 = scalar_select %p300, %s21, 1
      %s302 = smul.addr %s301, 32
      %s303 = smul.addr %s302, 8
      %s304 = scalar_lea.vmem %s0, %s303
      %p305 = scmp.lt.s32.totalorder %s22, 0
      %s306 = scalar_select %p305, %s22, 0
      %s307 = smul.addr %s306, 8
      %s308 = scalar_lea.vmem %s1, %s307
      %p309 = scmp.lt.s32.totalorder %s21, 1
      %s310 = scalar_select %p309, %s21, 1
      %s311 = scalar_lea.vmem %s2, %s310
      %p312 = scmp.lt.s32.totalorder %s21, 1
      %s313 = scalar_select %p312, %s21, 1
      %p314 = scmp.lt.s32.totalorder %s22, 0
      %s315 = scalar_select %p314, %s22, 0
      %s316 = sadd.s32 %s315, %s313
      %s317 = scalar_lea.vmem %s3, %s316
      %p318 = scmp.lt.s32.totalorder %s22, 0
      %s319 = scalar_select %p318, %s22, 0
      %s320 = scalar_lea.vmem %s4, %s319
      %s321 = smul.u32 8, %s23
      %p322 = scmp.lt.s32.totalorder %s21, 1
      %s323 = scalar_select %p322, %s21, 1
      %p324 = scmp.lt.s32.totalorder %s321, 15
      %s325 = scalar_select %p324, %s321, 15
      %p326 = scmp.lt.s32.totalorder %s22, 0
      %s327 = scalar_select %p326, %s22, 0
      %s328 = smul.addr %s325, 2
      %s329 = sadd.s32 %s327, %s328
      %s330 = smul.addr %s323, 32
      %s331 = sadd.s32 %s329, %s330
      %s332 = smul.addr %s331, 8
      %s333 = scalar_lea.vmem %s5, %s332
      %s334 = smul.u32 8, %s23
      %s335 = smul.u32 %s23, 8
      %v336 = vld [vmem:[%s311] sm:$0x1]
      %vm337 = vcmask 57344
      %338 = vst.msk [vmem:[#allocation2] sm:$0x1] %vm337, 0.0
      %339 = vst.msk [vmem:[#allocation2 + $0x18] sm:$0x1] %vm337, 0.0
      %340 = vst.msk [vmem:[#allocation2 + $0x30] sm:$0x1] %vm337, 0.0
      %341 = vst.msk [vmem:[#allocation2 + $0x48] sm:$0x1] %vm337, 0.0
      %342 = vst.msk [vmem:[#allocation2 + $0x60] sm:$0x1] %vm337, 0.0
      %343 = vst.msk [vmem:[#allocation2 + $0x78] sm:$0x1] %vm337, 0.0
      %344 = vst.msk [vmem:[#allocation2 + $0x90] sm:$0x1] %vm337, 0.0
      %345 = vst.msk [vmem:[#allocation2 + $0xa8] sm:$0x1] %vm337, 0.0
      %346 = vst.msk [vmem:[#allocation2 + $0xc0] sm:$0x1] %vm337, 0.0
      %347 = vst.msk [vmem:[#allocation2 + $0xd8] sm:$0x1] %vm337, 0.0
      %348 = vst.msk [vmem:[#allocation2 + $0x11] sm:$0x1] %vm337, 0.0
      %349 = vst.msk [vmem:[#allocation2 + $0x29] sm:$0x1] %vm337, 0.0
      %350 = vst.msk [vmem:[#allocation2 + $0x41] sm:$0x1] %vm337, 0.0
      %351 = vst.msk [vmem:[#allocation2 + $0x59] sm:$0x1] %vm337, 0.0
      %352 = vst.msk [vmem:[#allocation2 + $0x71] sm:$0x1] %vm337, 0.0
      %353 = vst.msk [vmem:[#allocation2 + $0x89] sm:$0x1] %vm337, 0.0
      %354 = vst.msk [vmem:[#allocation2 + $0xa1] sm:$0x1] %vm337, 0.0
      %355 = vst.msk [vmem:[#allocation2 + $0xb9] sm:$0x1] %vm337, 0.0
      %356 = vst.msk [vmem:[#allocation2 + $0xd1] sm:$0x1] %vm337, 0.0
      %357 = vst.msk [vmem:[#allocation2 + $0xe9] sm:$0x1] %vm337, 0.0
      %p358 = scmp.eq.s32.totalorder %s23, 0
      // Predicated region
      $region41: #{styled_conv_block.3} parent=39 // pred_check
        %p359 = pneg %p358
      $region42: #{styled_conv_block.3} parent=39 // pred_check_branch
        %361 = sbr.rel (%p359) target = $region44
      $region43: #{styled_conv_block.3} parent=39 // pred_region
        %vm362 = vcmask 64512
        %363 = vst.msk [vmem:[#allocation2] sm:$0xff] %vm362, 0.0
        %364 = vst.msk [vmem:[#allocation2 + $0x8] sm:$0xff] %vm362, 0.0
        %vm365 = vcmask 58368
        %366 = vst.msk [vmem:[#allocation2 + $0x10] sm:$0x3] %vm365, 0.0
      $region44: #{styled_conv_block.3} parent=39 // pred_fallthru
        _
      %p367 = scmp.eq.s32.totalorder %s23, 1
      // Predicated region
      $region45: #{styled_conv_block.3} parent=39 // pred_check
        %p368 = pneg %p367
      $region46: #{styled_conv_block.3} parent=39 // pred_check_branch
        %370 = sbr.rel (%p368) target = $region48
      $region47: #{styled_conv_block.3} parent=39 // pred_region
        %s371 = scalar_lea.vmem [#allocation2], 216
        %vm372 = vcmask 64512
        %373 = vst.msk [vmem:[%s371] sm:$0xff] %vm372, 0.0
        %374 = vst.msk [vmem:[%s371 + $0x8] sm:$0xff] %vm372, 0.0
        %vm375 = vcmask 58368
        %376 = vst.msk [vmem:[%s371 + $0x10] sm:$0x3] %vm375, 0.0
      $region48: #{styled_conv_block.3} parent=39 // pred_fallthru
        _
      %s377 = smul.u32 %s335, 16
      %s378 = scalar_lea.vmem %s304, %s377
      %v379 = vld [vmem:[%s378] sm:$0xff]
      %v380 = vld [vmem:[%s378 + $0x8] sm:$0xff]
      %v381 = vld [vmem:[%s378 + $0x10] sm:$0xff]
      %v382 = vld [vmem:[%s378 + $0x18] sm:$0xff]
      %v383 = vld [vmem:[%s378 + $0x20] sm:$0xff]
      %v384 = vld [vmem:[%s378 + $0x28] sm:$0xff]
      %v385 = vld [vmem:[%s378 + $0x30] sm:$0xff]
      %v386 = vld [vmem:[%s378 + $0x38] sm:$0xff]
      %v387 = vld [vmem:[%s378 + $0x40] sm:$0xff]
      %v388 = vld [vmem:[%s378 + $0x48] sm:$0xff]
      %v389 = vld [vmem:[%s378 + $0x50] sm:$0xff]
      %v390 = vld [vmem:[%s378 + $0x58] sm:$0xff]
      %v391 = vld [vmem:[%s378 + $0x60] sm:$0xff]
      %v392 = vld [vmem:[%s378 + $0x68] sm:$0xff]
      %v393 = vld [vmem:[%s378 + $0x70] sm:$0xff]
      %v394 = vld [vmem:[%s378 + $0x78] sm:$0xff]
      %v396 = vlaneseq
      %v397 = vshrl.u32 %v396, 7
      %v398 = vsub.s32 0, %v397
      %v399 = vrot.slane %v336, %v398
      %v401 = vmul.f32 %v379, %v399
      %v402 = vmul.f32 %v380, %v399
      %v403 = vmul.f32 %v381, %v399
      %v404 = vmul.f32 %v382, %v399
      %v405 = vmul.f32 %v383, %v399
      %v406 = vmul.f32 %v384, %v399
      %v407 = vmul.f32 %v385, %v399
      %v408 = vmul.f32 %v386, %v399
      %v409 = vmul.f32 %v387, %v399
      %v410 = vmul.f32 %v388, %v399
      %v411 = vmul.f32 %v389, %v399
      %v412 = vmul.f32 %v390, %v399
      %v413 = vmul.f32 %v391, %v399
      %v414 = vmul.f32 %v392, %v399
      %v415 = vmul.f32 %v393, %v399
      %v416 = vmul.f32 %v394, %v399
      %s417 = scalar_lea.vmem [#allocation2], 24
      %vm418 = vcmask 64512
      %419 = vst.msk [vmem:[%s417 + $0x1] sm:$0xff] %vm418, %v401
      %420 = vst.msk [vmem:[%s417 + $0x9] sm:$0xff] %vm418, %v402
      %421 = vst.msk [vmem:[%s417 + $0x19] sm:$0xff] %vm418, %v403
      %422 = vst.msk [vmem:[%s417 + $0x21] sm:$0xff] %vm418, %v404
      %423 = vst.msk [vmem:[%s417 + $0x31] sm:$0xff] %vm418, %v405
      %424 = vst.msk [vmem:[%s417 + $0x39] sm:$0xff] %vm418, %v406
      %425 = vst.msk [vmem:[%s417 + $0x49] sm:$0xff] %vm418, %v407
      %426 = vst.msk [vmem:[%s417 + $0x51] sm:$0xff] %vm418, %v408
      %427 = vst.msk [vmem:[%s417 + $0x61] sm:$0xff] %vm418, %v409
      %428 = vst.msk [vmem:[%s417 + $0x69] sm:$0xff] %vm418, %v410
      %429 = vst.msk [vmem:[%s417 + $0x79] sm:$0xff] %vm418, %v411
      %430 = vst.msk [vmem:[%s417 + $0x81] sm:$0xff] %vm418, %v412
      %431 = vst.msk [vmem:[%s417 + $0x91] sm:$0xff] %vm418, %v413
      %432 = vst.msk [vmem:[%s417 + $0x99] sm:$0xff] %vm418, %v414
      %433 = vst.msk [vmem:[%s417 + $0xa9] sm:$0xff] %vm418, %v415
      %434 = vst.msk [vmem:[%s417 + $0xb1] sm:$0xff] %vm418, %v416
      %p435 = scmp.gt.s32.totalorder %s23, 0
      // Predicated region
      $region49: #{styled_conv_block.3} parent=39 // pred_check
        %p436 = pneg %p435
      $region50: #{styled_conv_block.3} parent=39 // pred_check_branch
        %438 = sbr.rel (%p436) target = $region52
      $region51: #{styled_conv_block.3} parent=39 // pred_region
        %s439 = ssub.s32 %s335, 1
        %s440 = smul.u32 %s439, 16
        %s441 = scalar_lea.vmem %s304, %s440
        %v442 = vld [vmem:[%s441] sm:$0xff]
        %v443 = vld [vmem:[%s441 + $0x8] sm:$0xff]
        %v444 = vmul.f32 %v442, %v399
        %v445 = vmul.f32 %v443, %v399
        %446 = vst.msk [vmem:[#allocation2 + $0x1] sm:$0xff] %vm418, %v444
        %447 = vst.msk [vmem:[#allocation2 + $0x9] sm:$0xff] %vm418, %v445
      $region52: #{styled_conv_block.3} parent=39 // pred_fallthru
        _
      %p448 = scmp.lt.s32.totalorder %s23, 1
      // Predicated region
      $region53: #{styled_conv_block.3} parent=39 // pred_check
        %p449 = pneg %p448
      $region54: #{styled_conv_block.3} parent=39 // pred_check_branch
        %451 = sbr.rel (%p449) target = $region56
      $region55: #{styled_conv_block.3} parent=39 // pred_region
        %s452 = sadd.s32 %s335, 8
        %s453 = smul.u32 %s452, 16
        %s454 = scalar_lea.vmem %s304, %s453
        %v455 = vld [vmem:[%s454] sm:$0xff]
        %v456 = vld [vmem:[%s454 + $0x8] sm:$0xff]
        %v457 = vmul.f32 %v455, %v399
        %v458 = vmul.f32 %v456, %v399
        %s459 = scalar_lea.vmem [#allocation2], 216
        %460 = vst.msk [vmem:[%s459 + $0x1] sm:$0xff] %vm418, %v457
        %461 = vst.msk [vmem:[%s459 + $0x9] sm:$0xff] %vm418, %v458
      $region56: #{styled_conv_block.3} parent=39 // pred_fallthru
        _
      %v462 = vld [vmem:[#allocation2] sm:$0xff]
      %v463 = vld [vmem:[#allocation2 + $0x8] sm:$0xff]
      %v464 = vld [vmem:[#allocation2 + $0x18] sm:$0xff]
      %v465 = vld [vmem:[#allocation2 + $0x20] sm:$0xff]
      %v466 = vld [vmem:[#allocation2 + $0x30] sm:$0xff]
      %v467 = vld [vmem:[#allocation2 + $0x38] sm:$0xff]
      %v468 = vld [vmem:[#allocation2 + $0x48] sm:$0xff]
      %v469 = vld [vmem:[#allocation2 + $0x50] sm:$0xff]
      %v470 = vld [vmem:[#allocation2 + $0x60] sm:$0xff]
      %v471 = vld [vmem:[#allocation2 + $0x68] sm:$0xff]
      %v472 = vld [vmem:[#allocation2 + $0x78] sm:$0xff]
      %v473 = vld [vmem:[#allocation2 + $0x80] sm:$0xff]
      %v474 = vld [vmem:[#allocation2 + $0x90] sm:$0xff]
      %v475 = vld [vmem:[#allocation2 + $0x98] sm:$0xff]
      %v476 = vld [vmem:[#allocation2 + $0xa8] sm:$0xff]
      %v477 = vld [vmem:[#allocation2 + $0xb0] sm:$0xff]
      %v478 = vld [vmem:[#allocation2 + $0xc0] sm:$0xff]
      %v479 = vld [vmem:[#allocation2 + $0xc8] sm:$0xff]
      %v480 = vld [vmem:[#allocation2 + $0xd8] sm:$0xff]
      %v481 = vld [vmem:[#allocation2 + $0xe0] sm:$0xff]
      %v482 = vld [vmem:[%s308] sm:$0xff]
      %s483 = scalar_lea.vmem %s308, 24
      %v484 = vld [vmem:[%s483] sm:$0xff]
      %v486 = vsel %vm418, %v464, 0
      %v489 = vsel %vm418, %v465, 0
      %v492 = vsel %vm418, %v466, 0
      %v495 = vsel %vm418, %v467, 0
      %v498 = vsel %vm418, %v468, 0
      %v501 = vsel %vm418, %v469, 0
      %v504 = vsel %vm418, %v470, 0
      %v507 = vsel %vm418, %v471, 0
      %v510 = vsel %vm418, %v472, 0
      %v513 = vsel %vm418, %v473, 0
      %v516 = vsel %vm418, %v474, 0
      %v519 = vsel %vm418, %v475, 0
      %v522 = vsel %vm418, %v476, 0
      %v525 = vsel %vm418, %v477, 0
      %v528 = vsel %vm418, %v478, 0
      %v531 = vsel %vm418, %v479, 0
      %533 = vmatprep.subr.mxu0 0.0
      %534 = vmatpush1.msra.mxu0 0.0
      %535 = vmatprep.subr.mxu0 0.0
      %536 = vmatpush1.msra.mxu0 0.0
      %537 = vmatprep.subr.mxu0 0.0
      %538 = vmatpush1.msra.mxu0 0.0
      %539 = vmatprep.subr.mxu0 0.0
      %540 = vmatpush1.msra.mxu0 0.0
      %541 = vmatprep.subr.mxu0 0.0
      %542 = vmatpush1.msra.mxu0 0.0
      %543 = vmatprep.subr.mxu0 0.0
      %544 = vmatpush1.msra.mxu0 0.0
      %545 = vmatprep.subr.mxu0 0.0
      %546 = vmatpush1.msra.mxu0 0.0
      %547 = vmatprep.subr.mxu0 0.0
      %548 = vmatpush1.msra.mxu0 0.0
      %549 = vmatprep.subr.mxu0 0.0
      %550 = vmatpush1.msra.mxu0 0.0
      %551 = vmatprep.subr.mxu0 0.0
      %552 = vmatpush1.msra.mxu0 0.0
      %553 = vmatprep.subr.mxu0 0.0
      %554 = vmatpush1.msra.mxu0 0.0
      %555 = vmatprep.subr.mxu0 0.0
      %556 = vmatpush1.msra.mxu0 0.0
      %557 = vmatprep.subr.mxu0 0.0
      %558 = vmatpush1.msra.mxu0 0.0
      %559 = vmatprep.subr.mxu0 0.0
      %560 = vmatpush1.msra.mxu0 0.0
      %561 = vmatprep.subr.mxu0 0.0
      %562 = vmatpush1.msra.mxu0 0.0
      %563 = vmatprep.subr.mxu0 0.0
      %564 = vmatpush1.msra.mxu0 %v484
      %565 = vmatprep.subr.mxu0 0.0
      %566 = vmatpush2.msra.mxu0 0.0
      %567 = vmatprep.subr.mxu0 0.0
      %568 = vmatpush2.msra.mxu0 0.0
      %569 = vmatprep.subr.mxu0 0.0
      %570 = vmatpush2.msra.mxu0 0.0
      %571 = vmatprep.subr.mxu0 0.0
      %572 = vmatpush2.msra.mxu0 0.0
      %573 = vmatprep.subr.mxu0 0.0
      %574 = vmatpush2.msra.mxu0 0.0
      %575 = vmatprep.subr.mxu0 0.0
      %576 = vmatpush2.msra.mxu0 0.0
      %577 = vmatprep.subr.mxu0 0.0
      %578 = vmatpush2.msra.mxu0 0.0
      %579 = vmatprep.subr.mxu0 0.0
      %580 = vmatpush2.msra.mxu0 0.0
      %581 = vmatprep.subr.mxu0 0.0
      %582 = vmatpush2.msra.mxu0 0.0
      %583 = vmatprep.subr.mxu0 0.0
      %584 = vmatpush2.msra.mxu0 0.0
      %585 = vmatprep.subr.mxu0 0.0
      %586 = vmatpush2.msra.mxu0 0.0
      %587 = vmatprep.subr.mxu0 0.0
      %588 = vmatpush2.msra.mxu0 0.0
      %589 = vmatprep.subr.mxu0 0.0
      %590 = vmatpush2.msra.mxu0 0.0
      %591 = vmatprep.subr.mxu0 0.0
      %592 = vmatpush2.msra.mxu0 0.0
      %593 = vmatprep.subr.mxu0 0.0
      %594 = vmatpush2.msra.mxu0 0.0
      %595 = vmatprep.subr.mxu0 0.0
      %596 = vmatpush2.msra.mxu0 0.0
      %597 = vmatprep.mubr.f32.mxu0 0.0
      %598 = vmatmul.mubr.f32.gmra.mxu0 %v486
      %v599 = vpop.f32.mrf.mxu0
      %v600 = vadd.f32 0.0, %v599
      %v601 = vpop.f32.mrf.mxu0
      %602 = vmatprep.mubr.f32.mxu0 0.0
      %603 = vmatmul.mubr.f32.gmra.mxu0 %v489
      %v604 = vpop.f32.mrf.mxu0
      %v605 = vadd.f32 0.0, %v604
      %v606 = vpop.f32.mrf.mxu0
      %607 = vmatprep.mubr.f32.mxu0 0.0
      %608 = vmatmul.mubr.f32.gmra.mxu0 %v492
      %v609 = vpop.f32.mrf.mxu0
      %v610 = vadd.f32 0.0, %v609
      %v611 = vpop.f32.mrf.mxu0
      %612 = vmatprep.mubr.f32.mxu0 0.0
      %613 = vmatmul.mubr.f32.gmra.mxu0 %v495
      %v614 = vpop.f32.mrf.mxu0
      %v615 = vadd.f32 0.0, %v614
      %v616 = vpop.f32.mrf.mxu0
      %617 = vmatprep.mubr.f32.mxu0 0.0
      %618 = vmatmul.mubr.f32.gmra.mxu0 %v498
      %v619 = vpop.f32.mrf.mxu0
      %v620 = vadd.f32 0.0, %v619
      %v621 = vpop.f32.mrf.mxu0
      %622 = vmatprep.mubr.f32.mxu0 0.0
      %623 = vmatmul.mubr.f32.gmra.mxu0 %v501
      %v624 = vpop.f32.mrf.mxu0
      %v625 = vadd.f32 0.0, %v624
      %v626 = vpop.f32.mrf.mxu0
      %627 = vmatprep.mubr.f32.mxu0 0.0
      %628 = vmatmul.mubr.f32.gmra.mxu0 %v504
      %v629 = vpop.f32.mrf.mxu0
      %v630 = vadd.f32 0.0, %v629
      %v631 = vpop.f32.mrf.mxu0
      %632 = vmatprep.mubr.f32.mxu0 0.0
      %633 = vmatmul.mubr.f32.gmra.mxu0 %v507
      %v634 = vpop.f32.mrf.mxu0
      %v635 = vadd.f32 0.0, %v634
      %v636 = vpop.f32.mrf.mxu0
      %637 = vmatprep.mubr.f32.mxu0 0.0
      %638 = vmatmul.mubr.f32.gmra.mxu0 %v510
      %v639 = vpop.f32.mrf.mxu0
      %v640 = vadd.f32 0.0, %v639
      %v641 = vpop.f32.mrf.mxu0
      %642 = vmatprep.mubr.f32.mxu0 0.0
      %643 = vmatmul.mubr.f32.gmra.mxu0 %v513
      %v644 = vpop.f32.mrf.mxu0
      %v645 = vadd.f32 0.0, %v644
      %v646 = vpop.f32.mrf.mxu0
      %647 = vmatprep.mubr.f32.mxu0 0.0
      %648 = vmatmul.mubr.f32.gmra.mxu0 %v516
      %v649 = vpop.f32.mrf.mxu0
      %v650 = vadd.f32 0.0, %v649
      %v651 = vpop.f32.mrf.mxu0
      %652 = vmatprep.mubr.f32.mxu0 0.0
      %653 = vmatmul.mubr.f32.gmra.mxu0 %v519
      %v654 = vpop.f32.mrf.mxu0
      %v655 = vadd.f32 0.0, %v654
      %v656 = vpop.f32.mrf.mxu0
      %657 = vmatprep.mubr.f32.mxu0 0.0
      %658 = vmatmul.mubr.f32.gmra.mxu0 %v522
      %v659 = vpop.f32.mrf.mxu0
      %v660 = vadd.f32 0.0, %v659
      %v661 = vpop.f32.mrf.mxu0
      %662 = vmatprep.mubr.f32.mxu0 0.0
      %663 = vmatmul.mubr.f32.gmra.mxu0 %v525
      %v664 = vpop.f32.mrf.mxu0
      %v665 = vadd.f32 0.0, %v664
      %v666 = vpop.f32.mrf.mxu0
      %667 = vmatprep.mubr.f32.mxu0 0.0
      %668 = vmatmul.mubr.f32.gmra.mxu0 %v528
      %v669 = vpop.f32.mrf.mxu0
      %v670 = vadd.f32 0.0, %v669
      %v671 = vpop.f32.mrf.mxu0
      %672 = vmatprep.mubr.f32.mxu0 0.0
      %673 = vmatmul.mubr.f32.gmra.mxu0 %v531
      %v674 = vpop.f32.mrf.mxu0
      %v675 = vadd.f32 0.0, %v674
      %v676 = vpop.f32.mrf.mxu0
      %677 = vdwg.mxu0
      %v679 = vsel %vm418, %v462, 0
      %v682 = vsel %vm418, %v463, 0
      %684 = vmatprep.subr.mxu0 0.0
      %685 = vmatpush1.msra.mxu0 0.0
      %686 = vmatprep.subr.mxu0 0.0
      %687 = vmatpush1.msra.mxu0 0.0
      %688 = vmatprep.subr.mxu0 0.0
      %689 = vmatpush1.msra.mxu0 0.0
      %690 = vmatprep.subr.mxu0 0.0
      %691 = vmatpush1.msra.mxu0 0.0
      %692 = vmatprep.subr.mxu0 0.0
      %693 = vmatpush1.msra.mxu0 0.0
      %694 = vmatprep.subr.mxu0 0.0
      %695 = vmatpush1.msra.mxu0 0.0
      %696 = vmatprep.subr.mxu0 0.0
      %697 = vmatpush1.msra.mxu0 0.0
      %698 = vmatprep.subr.mxu0 0.0
      %699 = vmatpush1.msra.mxu0 0.0
      %700 = vmatprep.subr.mxu0 0.0
      %701 = vmatpush1.msra.mxu0 0.0
      %702 = vmatprep.subr.mxu0 0.0
      %703 = vmatpush1.msra.mxu0 0.0
      %704 = vmatprep.subr.mxu0 0.0
      %705 = vmatpush1.msra.mxu0 0.0
      %706 = vmatprep.subr.mxu0 0.0
      %707 = vmatpush1.msra.mxu0 0.0
      %708 = vmatprep.subr.mxu0 0.0
      %709 = vmatpush1.msra.mxu0 0.0
      %710 = vmatprep.subr.mxu0 0.0
      %711 = vmatpush1.msra.mxu0 0.0
      %712 = vmatprep.subr.mxu0 0.0
      %713 = vmatpush1.msra.mxu0 0.0
      %714 = vmatprep.subr.mxu0 0.0
      %715 = vmatpush1.msra.mxu0 %v482
      %716 = vmatprep.subr.mxu0 0.0
      %717 = vmatpush2.msra.mxu0 0.0
      %718 = vmatprep.subr.mxu0 0.0
      %719 = vmatpush2.msra.mxu0 0.0
      %720 = vmatprep.subr.mxu0 0.0
      %721 = vmatpush2.msra.mxu0 0.0
      %722 = vmatprep.subr.mxu0 0.0
      %723 = vmatpush2.msra.mxu0 0.0
      %724 = vmatprep.subr.mxu0 0.0
      %725 = vmatpush2.msra.mxu0 0.0
      %726 = vmatprep.subr.mxu0 0.0
      %727 = vmatpush2.msra.mxu0 0.0
      %728 = vmatprep.subr.mxu0 0.0
      %729 = vmatpush2.msra.mxu0 0.0
      %730 = vmatprep.subr.mxu0 0.0
      %731 = vmatpush2.msra.mxu0 0.0
      %732 = vmatprep.subr.mxu0 0.0
      %733 = vmatpush2.msra.mxu0 0.0
      %734 = vmatprep.subr.mxu0 0.0
      %735 = vmatpush2.msra.mxu0 0.0
      %736 = vmatprep.subr.mxu0 0.0
      %737 = vmatpush2.msra.mxu0 0.0
      %738 = vmatprep.subr.mxu0 0.0
      %739 = vmatpush2.msra.mxu0 0.0
      %740 = vmatprep.subr.mxu0 0.0
      %741 = vmatpush2.msra.mxu0 0.0
      %742 = vmatprep.subr.mxu0 0.0
      %743 = vmatpush2.msra.mxu0 0.0
      %744 = vmatprep.subr.mxu0 0.0
      %745 = vmatpush2.msra.mxu0 0.0
      %746 = vmatprep.subr.mxu0 0.0
      %747 = vmatpush2.msra.mxu0 0.0
      %748 = vmatprep.mubr.f32.mxu0 0.0
      %749 = vmatmul.mubr.f32.gmra.mxu0 %v679
      %v750 = vpop.f32.mrf.mxu0
      %v751 = vadd.f32 %v600, %v750
      %v752 = vpop.f32.mrf.mxu0
      %753 = vmatprep.mubr.f32.mxu0 0.0
      %754 = vmatmul.mubr.f32.gmra.mxu0 %v682
      %v755 = vpop.f32.mrf.mxu0
      %v756 = vadd.f32 %v605, %v755
      %v757 = vpop.f32.mrf.mxu0
      %758 = vmatprep.mubr.f32.mxu0 0.0
      %759 = vmatmul.mubr.f32.gmra.mxu0 %v486
      %v760 = vpop.f32.mrf.mxu0
      %v761 = vadd.f32 %v610, %v760
      %v762 = vpop.f32.mrf.mxu0
      %763 = vmatprep.mubr.f32.mxu0 0.0
      %764 = vmatmul.mubr.f32.gmra.mxu0 %v489
      %v765 = vpop.f32.mrf.mxu0
      %v766 = vadd.f32 %v615, %v765
      %v767 = vpop.f32.mrf.mxu0
      %768 = vmatprep.mubr.f32.mxu0 0.0
      %769 = vmatmul.mubr.f32.gmra.mxu0 %v492
      %v770 = vpop.f32.mrf.mxu0
      %v771 = vadd.f32 %v620, %v770
      %v772 = vpop.f32.mrf.mxu0
      %773 = vmatprep.mubr.f32.mxu0 0.0
      %774 = vmatmul.mubr.f32.gmra.mxu0 %v495
      %v775 = vpop.f32.mrf.mxu0
      %v776 = vadd.f32 %v625, %v775
      %v777 = vpop.f32.mrf.mxu0
      %778 = vmatprep.mubr.f32.mxu0 0.0
      %779 = vmatmul.mubr.f32.gmra.mxu0 %v498
      %v780 = vpop.f32.mrf.mxu0
      %v781 = vadd.f32 %v630, %v780
      %v782 = vpop.f32.mrf.mxu0
      %783 = vmatprep.mubr.f32.mxu0 0.0
      %784 = vmatmul.mubr.f32.gmra.mxu0 %v501
      %v785 = vpop.f32.mrf.mxu0
      %v786 = vadd.f32 %v635, %v785
      %v787 = vpop.f32.mrf.mxu0
      %788 = vmatprep.mubr.f32.mxu0 0.0
      %789 = vmatmul.mubr.f32.gmra.mxu0 %v504
      %v790 = vpop.f32.mrf.mxu0
      %v791 = vadd.f32 %v640, %v790
      %v792 = vpop.f32.mrf.mxu0
      %793 = vmatprep.mubr.f32.mxu0 0.0
      %794 = vmatmul.mubr.f32.gmra.mxu0 %v507
      %v795 = vpop.f32.mrf.mxu0
      %v796 = vadd.f32 %v645, %v795
      %v797 = vpop.f32.mrf.mxu0
      %798 = vmatprep.mubr.f32.mxu0 0.0
      %799 = vmatmul.mubr.f32.gmra.mxu0 %v510
      %v800 = vpop.f32.mrf.mxu0
      %v801 = vadd.f32 %v650, %v800
      %v802 = vpop.f32.mrf.mxu0
      %803 = vmatprep.mubr.f32.mxu0 0.0
      %804 = vmatmul.mubr.f32.gmra.mxu0 %v513
      %v805 = vpop.f32.mrf.mxu0
      %v806 = vadd.f32 %v655, %v805
      %v807 = vpop.f32.mrf.mxu0
      %808 = vmatprep.mubr.f32.mxu0 0.0
      %809 = vmatmul.mubr.f32.gmra.mxu0 %v516
      %v810 = vpop.f32.mrf.mxu0
      %v811 = vadd.f32 %v660, %v810
      %v812 = vpop.f32.mrf.mxu0
      %813 = vmatprep.mubr.f32.mxu0 0.0
      %814 = vmatmul.mubr.f32.gmra.mxu0 %v519
      %v815 = vpop.f32.mrf.mxu0
      %v816 = vadd.f32 %v665, %v815
      %v817 = vpop.f32.mrf.mxu0
      %818 = vmatprep.mubr.f32.mxu0 0.0
      %819 = vmatmul.mubr.f32.gmra.mxu0 %v522
      %v820 = vpop.f32.mrf.mxu0
      %v821 = vadd.f32 %v670, %v820
      %v822 = vpop.f32.mrf.mxu0
      %823 = vmatprep.mubr.f32.mxu0 0.0
      %824 = vmatmul.mubr.f32.gmra.mxu0 %v525
      %v825 = vpop.f32.mrf.mxu0
      %v826 = vadd.f32 %v675, %v825
      %v827 = vpop.f32.mrf.mxu0
      %828 = vdwg.mxu0
      %s829 = scalar_lea.vmem %s308, 48
      %v830 = vld [vmem:[%s829] sm:$0xff]
      %v832 = vsel %vm418, %v480, 0
      %v835 = vsel %vm418, %v481, 0
      %837 = vmatprep.subr.mxu0 0.0
      %838 = vmatpush1.msra.mxu0 0.0
      %839 = vmatprep.subr.mxu0 0.0
      %840 = vmatpush1.msra.mxu0 0.0
      %841 = vmatprep.subr.mxu0 0.0
      %842 = vmatpush1.msra.mxu0 0.0
      %843 = vmatprep.subr.mxu0 0.0
      %844 = vmatpush1.msra.mxu0 0.0
      %845 = vmatprep.subr.mxu0 0.0
      %846 = vmatpush1.msra.mxu0 0.0
      %847 = vmatprep.subr.mxu0 0.0
      %848 = vmatpush1.msra.mxu0 0.0
      %849 = vmatprep.subr.mxu0 0.0
      %850 = vmatpush1.msra.mxu0 0.0
      %851 = vmatprep.subr.mxu0 0.0
      %852 = vmatpush1.msra.mxu0 0.0
      %853 = vmatprep.subr.mxu0 0.0
      %854 = vmatpush1.msra.mxu0 0.0
      %855 = vmatprep.subr.mxu0 0.0
      %856 = vmatpush1.msra.mxu0 0.0
      %857 = vmatprep.subr.mxu0 0.0
      %858 = vmatpush1.msra.mxu0 0.0
      %859 = vmatprep.subr.mxu0 0.0
      %860 = vmatpush1.msra.mxu0 0.0
      %861 = vmatprep.subr.mxu0 0.0
      %862 = vmatpush1.msra.mxu0 0.0
      %863 = vmatprep.subr.mxu0 0.0
      %864 = vmatpush1.msra.mxu0 0.0
      %865 = vmatprep.subr.mxu0 0.0
      %866 = vmatpush1.msra.mxu0 0.0
      %867 = vmatprep.subr.mxu0 0.0
      %868 = vmatpush1.msra.mxu0 %v830
      %869 = vmatprep.subr.mxu0 0.0
      %870 = vmatpush2.msra.mxu0 0.0
      %871 = vmatprep.subr.mxu0 0.0
      %872 = vmatpush2.msra.mxu0 0.0
      %873 = vmatprep.subr.mxu0 0.0
      %874 = vmatpush2.msra.mxu0 0.0
      %875 = vmatprep.subr.mxu0 0.0
      %876 = vmatpush2.msra.mxu0 0.0
      %877 = vmatprep.subr.mxu0 0.0
      %878 = vmatpush2.msra.mxu0 0.0
      %879 = vmatprep.subr.mxu0 0.0
      %880 = vmatpush2.msra.mxu0 0.0
      %881 = vmatprep.subr.mxu0 0.0
      %882 = vmatpush2.msra.mxu0 0.0
      %883 = vmatprep.subr.mxu0 0.0
      %884 = vmatpush2.msra.mxu0 0.0
      %885 = vmatprep.subr.mxu0 0.0
      %886 = vmatpush2.msra.mxu0 0.0
      %887 = vmatprep.subr.mxu0 0.0
      %888 = vmatpush2.msra.mxu0 0.0
      %889 = vmatprep.subr.mxu0 0.0
      %890 = vmatpush2.msra.mxu0 0.0
      %891 = vmatprep.subr.mxu0 0.0
      %892 = vmatpush2.msra.mxu0 0.0
      %893 = vmatprep.subr.mxu0 0.0
      %894 = vmatpush2.msra.mxu0 0.0
      %895 = vmatprep.subr.mxu0 0.0
      %896 = vmatpush2.msra.mxu0 0.0
      %897 = vmatprep.subr.mxu0 0.0
      %898 = vmatpush2.msra.mxu0 0.0
      %899 = vmatprep.subr.mxu0 0.0
      %900 = vmatpush2.msra.mxu0 0.0
      %901 = vmatprep.mubr.f32.mxu0 0.0
      %902 = vmatmul.mubr.f32.gmra.mxu0 %v492
      %v903 = vpop.f32.mrf.mxu0
      %v904 = vadd.f32 0.0, %v903
      %v905 = vpop.f32.mrf.mxu0
      %906 = vmatprep.mubr.f32.mxu0 0.0
      %907 = vmatmul.mubr.f32.gmra.mxu0 %v495
      %v908 = vpop.f32.mrf.mxu0
      %v909 = vadd.f32 0.0, %v908
      %v910 = vpop.f32.mrf.mxu0
      %911 = vmatprep.mubr.f32.mxu0 0.0
      %912 = vmatmul.mubr.f32.gmra.mxu0 %v498
      %v913 = vpop.f32.mrf.mxu0
      %v914 = vadd.f32 0.0, %v913
      %v915 = vpop.f32.mrf.mxu0
      %916 = vmatprep.mubr.f32.mxu0 0.0
      %917 = vmatmul.mubr.f32.gmra.mxu0 %v501
      %v918 = vpop.f32.mrf.mxu0
      %v919 = vadd.f32 0.0, %v918
      %v920 = vpop.f32.mrf.mxu0
      %921 = vmatprep.mubr.f32.mxu0 0.0
      %922 = vmatmul.mubr.f32.gmra.mxu0 %v504
      %v923 = vpop.f32.mrf.mxu0
      %v924 = vadd.f32 0.0, %v923
      %v925 = vpop.f32.mrf.mxu0
      %926 = vmatprep.mubr.f32.mxu0 0.0
      %927 = vmatmul.mubr.f32.gmra.mxu0 %v507
      %v928 = vpop.f32.mrf.mxu0
      %v929 = vadd.f32 0.0, %v928
      %v930 = vpop.f32.mrf.mxu0
      %931 = vmatprep.mubr.f32.mxu0 0.0
      %932 = vmatmul.mubr.f32.gmra.mxu0 %v510
      %v933 = vpop.f32.mrf.mxu0
      %v934 = vadd.f32 0.0, %v933
      %v935 = vpop.f32.mrf.mxu0
      %936 = vmatprep.mubr.f32.mxu0 0.0
      %937 = vmatmul.mubr.f32.gmra.mxu0 %v513
      %v938 = vpop.f32.mrf.mxu0
      %v939 = vadd.f32 0.0, %v938
      %v940 = vpop.f32.mrf.mxu0
      %941 = vmatprep.mubr.f32.mxu0 0.0
      %942 = vmatmul.mubr.f32.gmra.mxu0 %v516
      %v943 = vpop.f32.mrf.mxu0
      %v944 = vadd.f32 0.0, %v943
      %v945 = vpop.f32.mrf.mxu0
      %946 = vmatprep.mubr.f32.mxu0 0.0
      %947 = vmatmul.mubr.f32.gmra.mxu0 %v519
      %v948 = vpop.f32.mrf.mxu0
      %v949 = vadd.f32 0.0, %v948
      %v950 = vpop.f32.mrf.mxu0
      %951 = vmatprep.mubr.f32.mxu0 0.0
      %952 = vmatmul.mubr.f32.gmra.mxu0 %v522
      %v953 = vpop.f32.mrf.mxu0
      %v954 = vadd.f32 0.0, %v953
      %v955 = vpop.f32.mrf.mxu0
      %956 = vmatprep.mubr.f32.mxu0 0.0
      %957 = vmatmul.mubr.f32.gmra.mxu0 %v525
      %v958 = vpop.f32.mrf.mxu0
      %v959 = vadd.f32 0.0, %v958
      %v960 = vpop.f32.mrf.mxu0
      %961 = vmatprep.mubr.f32.mxu0 0.0
      %962 = vmatmul.mubr.f32.gmra.mxu0 %v528
      %v963 = vpop.f32.mrf.mxu0
      %v964 = vadd.f32 0.0, %v963
      %v965 = vpop.f32.mrf.mxu0
      %966 = vmatprep.mubr.f32.mxu0 0.0
      %967 = vmatmul.mubr.f32.gmra.mxu0 %v531
      %v968 = vpop.f32.mrf.mxu0
      %v969 = vadd.f32 0.0, %v968
      %v970 = vpop.f32.mrf.mxu0
      %971 = vmatprep.mubr.f32.mxu0 0.0
      %972 = vmatmul.mubr.f32.gmra.mxu0 %v832
      %v973 = vpop.f32.mrf.mxu0
      %v974 = vadd.f32 0.0, %v973
      %v975 = vpop.f32.mrf.mxu0
      %976 = vmatprep.mubr.f32.mxu0 0.0
      %977 = vmatmul.mubr.f32.gmra.mxu0 %v835
      %v978 = vpop.f32.mrf.mxu0
      %v979 = vadd.f32 0.0, %v978
      %v980 = vpop.f32.mrf.mxu0
      %981 = vdwg.mxu0
      %v982 = vadd.f32 %v751, %v904
      %v983 = vadd.f32 %v756, %v909
      %v984 = vadd.f32 %v761, %v914
      %v985 = vadd.f32 %v766, %v919
      %v986 = vadd.f32 %v771, %v924
      %v987 = vadd.f32 %v776, %v929
      %v988 = vadd.f32 %v781, %v934
      %v989 = vadd.f32 %v786, %v939
      %v990 = vadd.f32 %v791, %v944
      %v991 = vadd.f32 %v796, %v949
      %v992 = vadd.f32 %v801, %v954
      %v993 = vadd.f32 %v806, %v959
      %v994 = vadd.f32 %v811, %v964
      %v995 = vadd.f32 %v816, %v969
      %v996 = vadd.f32 %v821, %v974
      %v997 = vadd.f32 %v826, %v979
      %v998 = vld [vmem:[#allocation2 + $0x1] sm:$0xff]
      %v999 = vld [vmem:[#allocation2 + $0x9] sm:$0xff]
      %v1000 = vld [vmem:[#allocation2 + $0x19] sm:$0xff]
      %v1001 = vld [vmem:[#allocation2 + $0x21] sm:$0xff]
      %v1002 = vld [vmem:[#allocation2 + $0x31] sm:$0xff]
      %v1003 = vld [vmem:[#allocation2 + $0x39] sm:$0xff]
      %v1004 = vld [vmem:[#allocation2 + $0x49] sm:$0xff]
      %v1005 = vld [vmem:[#allocation2 + $0x51] sm:$0xff]
      %v1006 = vld [vmem:[#allocation2 + $0x61] sm:$0xff]
      %v1007 = vld [vmem:[#allocation2 + $0x69] sm:$0xff]
      %v1008 = vld [vmem:[#allocation2 + $0x79] sm:$0xff]
      %v1009 = vld [vmem:[#allocation2 + $0x81] sm:$0xff]
      %v1010 = vld [vmem:[#allocation2 + $0x91] sm:$0xff]
      %v1011 = vld [vmem:[#allocation2 + $0x99] sm:$0xff]
      %v1012 = vld [vmem:[#allocation2 + $0xa9] sm:$0xff]
      %v1013 = vld [vmem:[#allocation2 + $0xb1] sm:$0xff]
      %v1014 = vld [vmem:[#allocation2 + $0xc1] sm:$0xff]
      %v1015 = vld [vmem:[#allocation2 + $0xc9] sm:$0xff]
      %v1016 = vld [vmem:[#allocation2 + $0xd9] sm:$0xff]
      %v1017 = vld [vmem:[#allocation2 + $0xe1] sm:$0xff]
      %s1018 = scalar_lea.vmem %s308, 8
      %v1019 = vld [vmem:[%s1018] sm:$0xff]
      %v1021 = vsel %vm418, %v998, 0
      %v1024 = vsel %vm418, %v999, 0
      %v1027 = vsel %vm418, %v1000, 0
      %v1030 = vsel %vm418, %v1001, 0
      %v1033 = vsel %vm418, %v1002, 0
      %v1036 = vsel %vm418, %v1003, 0
      %v1039 = vsel %vm418, %v1004, 0
      %v1042 = vsel %vm418, %v1005, 0
      %v1045 = vsel %vm418, %v1006, 0
      %v1048 = vsel %vm418, %v1007, 0
      %v1051 = vsel %vm418, %v1008, 0
      %v1054 = vsel %vm418, %v1009, 0
      %v1057 = vsel %vm418, %v1010, 0
      %v1060 = vsel %vm418, %v1011, 0
      %v1063 = vsel %vm418, %v1012, 0
      %v1066 = vsel %vm418, %v1013, 0
      %1068 = vmatprep.subr.mxu0 0.0
      %1069 = vmatpush1.msra.mxu0 0.0
      %1070 = vmatprep.subr.mxu0 0.0
      %1071 = vmatpush1.msra.mxu0 0.0
      %1072 = vmatprep.subr.mxu0 0.0
      %1073 = vmatpush1.msra.mxu0 0.0
      %1074 = vmatprep.subr.mxu0 0.0
      %1075 = vmatpush1.msra.mxu0 0.0
      %1076 = vmatprep.subr.mxu0 0.0
      %1077 = vmatpush1.msra.mxu0 0.0
      %1078 = vmatprep.subr.mxu0 0.0
      %1079 = vmatpush1.msra.mxu0 0.0
      %1080 = vmatprep.subr.mxu0 0.0
      %1081 = vmatpush1.msra.mxu0 0.0
      %1082 = vmatprep.subr.mxu0 0.0
      %1083 = vmatpush1.msra.mxu0 0.0
      %1084 = vmatprep.subr.mxu0 0.0
      %1085 = vmatpush1.msra.mxu0 0.0
      %1086 = vmatprep.subr.mxu0 0.0
      %1087 = vmatpush1.msra.mxu0 0.0
      %1088 = vmatprep.subr.mxu0 0.0
      %1089 = vmatpush1.msra.mxu0 0.0
      %1090 = vmatprep.subr.mxu0 0.0
      %1091 = vmatpush1.msra.mxu0 0.0
      %1092 = vmatprep.subr.mxu0 0.0
      %1093 = vmatpush1.msra.mxu0 0.0
      %1094 = vmatprep.subr.mxu0 0.0
      %1095 = vmatpush1.msra.mxu0 0.0
      %1096 = vmatprep.subr.mxu0 0.0
      %1097 = vmatpush1.msra.mxu0 0.0
      %1098 = vmatprep.subr.mxu0 0.0
      %1099 = vmatpush1.msra.mxu0 %v1019
      %1100 = vmatprep.subr.mxu0 0.0
      %1101 = vmatpush2.msra.mxu0 0.0
      %1102 = vmatprep.subr.mxu0 0.0
      %1103 = vmatpush2.msra.mxu0 0.0
      %1104 = vmatprep.subr.mxu0 0.0
      %1105 = vmatpush2.msra.mxu0 0.0
      %1106 = vmatprep.subr.mxu0 0.0
      %1107 = vmatpush2.msra.mxu0 0.0
      %1108 = vmatprep.subr.mxu0 0.0
      %1109 = vmatpush2.msra.mxu0 0.0
      %1110 = vmatprep.subr.mxu0 0.0
      %1111 = vmatpush2.msra.mxu0 0.0
      %1112 = vmatprep.subr.mxu0 0.0
      %1113 = vmatpush2.msra.mxu0 0.0
      %1114 = vmatprep.subr.mxu0 0.0
      %1115 = vmatpush2.msra.mxu0 0.0
      %1116 = vmatprep.subr.mxu0 0.0
      %1117 = vmatpush2.msra.mxu0 0.0
      %1118 = vmatprep.subr.mxu0 0.0
      %1119 = vmatpush2.msra.mxu0 0.0
      %1120 = vmatprep.subr.mxu0 0.0
      %1121 = vmatpush2.msra.mxu0 0.0
      %1122 = vmatprep.subr.mxu0 0.0
      %1123 = vmatpush2.msra.mxu0 0.0
      %1124 = vmatprep.subr.mxu0 0.0
      %1125 = vmatpush2.msra.mxu0 0.0
      %1126 = vmatprep.subr.mxu0 0.0
      %1127 = vmatpush2.msra.mxu0 0.0
      %1128 = vmatprep.subr.mxu0 0.0
      %1129 = vmatpush2.msra.mxu0 0.0
      %1130 = vmatprep.subr.mxu0 0.0
      %1131 = vmatpush2.msra.mxu0 0.0
      %1132 = vmatprep.mubr.f32.mxu0 0.0
      %1133 = vmatmul.mubr.f32.gmra.mxu0 %v1021
      %v1134 = vpop.f32.mrf.mxu0
      %v1135 = vadd.f32 0.0, %v1134
      %v1136 = vpop.f32.mrf.mxu0
      %1137 = vmatprep.mubr.f32.mxu0 0.0
      %1138 = vmatmul.mubr.f32.gmra.mxu0 %v1024
      %v1139 = vpop.f32.mrf.mxu0
      %v1140 = vadd.f32 0.0, %v1139
      %v1141 = vpop.f32.mrf.mxu0
      %1142 = vmatprep.mubr.f32.mxu0 0.0
      %1143 = vmatmul.mubr.f32.gmra.mxu0 %v1027
      %v1144 = vpop.f32.mrf.mxu0
      %v1145 = vadd.f32 0.0, %v1144
      %v1146 = vpop.f32.mrf.mxu0
      %1147 = vmatprep.mubr.f32.mxu0 0.0
      %1148 = vmatmul.mubr.f32.gmra.mxu0 %v1030
      %v1149 = vpop.f32.mrf.mxu0
      %v1150 = vadd.f32 0.0, %v1149
      %v1151 = vpop.f32.mrf.mxu0
      %1152 = vmatprep.mubr.f32.mxu0 0.0
      %1153 = vmatmul.mubr.f32.gmra.mxu0 %v1033
      %v1154 = vpop.f32.mrf.mxu0
      %v1155 = vadd.f32 0.0, %v1154
      %v1156 = vpop.f32.mrf.mxu0
      %1157 = vmatprep.mubr.f32.mxu0 0.0
      %1158 = vmatmul.mubr.f32.gmra.mxu0 %v1036
      %v1159 = vpop.f32.mrf.mxu0
      %v1160 = vadd.f32 0.0, %v1159
      %v1161 = vpop.f32.mrf.mxu0
      %1162 = vmatprep.mubr.f32.mxu0 0.0
      %1163 = vmatmul.mubr.f32.gmra.mxu0 %v1039
      %v1164 = vpop.f32.mrf.mxu0
      %v1165 = vadd.f32 0.0, %v1164
      %v1166 = vpop.f32.mrf.mxu0
      %1167 = vmatprep.mubr.f32.mxu0 0.0
      %1168 = vmatmul.mubr.f32.gmra.mxu0 %v1042
      %v1169 = vpop.f32.mrf.mxu0
      %v1170 = vadd.f32 0.0, %v1169
      %v1171 = vpop.f32.mrf.mxu0
      %1172 = vmatprep.mubr.f32.mxu0 0.0
      %1173 = vmatmul.mubr.f32.gmra.mxu0 %v1045
      %v1174 = vpop.f32.mrf.mxu0
      %v1175 = vadd.f32 0.0, %v1174
      %v1176 = vpop.f32.mrf.mxu0
      %1177 = vmatprep.mubr.f32.mxu0 0.0
      %1178 = vmatmul.mubr.f32.gmra.mxu0 %v1048
      %v1179 = vpop.f32.mrf.mxu0
      %v1180 = vadd.f32 0.0, %v1179
      %v1181 = vpop.f32.mrf.mxu0
      %1182 = vmatprep.mubr.f32.mxu0 0.0
      %1183 = vmatmul.mubr.f32.gmra.mxu0 %v1051
      %v1184 = vpop.f32.mrf.mxu0
      %v1185 = vadd.f32 0.0, %v1184
      %v1186 = vpop.f32.mrf.mxu0
      %1187 = vmatprep.mubr.f32.mxu0 0.0
      %1188 = vmatmul.mubr.f32.gmra.mxu0 %v1054
      %v1189 = vpop.f32.mrf.mxu0
      %v1190 = vadd.f32 0.0, %v1189
      %v1191 = vpop.f32.mrf.mxu0
      %1192 = vmatprep.mubr.f32.mxu0 0.0
      %1193 = vmatmul.mubr.f32.gmra.mxu0 %v1057
      %v1194 = vpop.f32.mrf.mxu0
      %v1195 = vadd.f32 0.0, %v1194
      %v1196 = vpop.f32.mrf.mxu0
      %1197 = vmatprep.mubr.f32.mxu0 0.0
      %1198 = vmatmul.mubr.f32.gmra.mxu0 %v1060
      %v1199 = vpop.f32.mrf.mxu0
      %v1200 = vadd.f32 0.0, %v1199
      %v1201 = vpop.f32.mrf.mxu0
      %1202 = vmatprep.mubr.f32.mxu0 0.0
      %1203 = vmatmul.mubr.f32.gmra.mxu0 %v1063
      %v1204 = vpop.f32.mrf.mxu0
      %v1205 = vadd.f32 0.0, %v1204
      %v1206 = vpop.f32.mrf.mxu0
      %1207 = vmatprep.mubr.f32.mxu0 0.0
      %1208 = vmatmul.mubr.f32.gmra.mxu0 %v1066
      %v1209 = vpop.f32.mrf.mxu0
      %v1210 = vadd.f32 0.0, %v1209
      %v1211 = vpop.f32.mrf.mxu0
      %1212 = vdwg.mxu0
      %v1213 = vadd.f32 %v982, %v1135
      %v1214 = vadd.f32 %v983, %v1140
      %v1215 = vadd.f32 %v984, %v1145
      %v1216 = vadd.f32 %v985, %v1150
      %v1217 = vadd.f32 %v986, %v1155
      %v1218 = vadd.f32 %v987, %v1160
      %v1219 = vadd.f32 %v988, %v1165
      %v1220 = vadd.f32 %v989, %v1170
      %v1221 = vadd.f32 %v990, %v1175
      %v1222 = vadd.f32 %v991, %v1180
      %v1223 = vadd.f32 %v992, %v1185
      %v1224 = vadd.f32 %v993, %v1190
      %v1225 = vadd.f32 %v994, %v1195
      %v1226 = vadd.f32 %v995, %v1200
      %v1227 = vadd.f32 %v996, %v1205
      %v1228 = vadd.f32 %v997, %v1210
      %s1229 = scalar_lea.vmem %s308, 32
      %v1230 = vld [vmem:[%s1229] sm:$0xff]
      %v1232 = vsel %vm418, %v1014, 0
      %v1235 = vsel %vm418, %v1015, 0
      %1237 = vmatprep.subr.mxu0 0.0
      %1238 = vmatpush1.msra.mxu0 0.0
      %1239 = vmatprep.subr.mxu0 0.0
      %1240 = vmatpush1.msra.mxu0 0.0
      %1241 = vmatprep.subr.mxu0 0.0
      %1242 = vmatpush1.msra.mxu0 0.0
      %1243 = vmatprep.subr.mxu0 0.0
      %1244 = vmatpush1.msra.mxu0 0.0
      %1245 = vmatprep.subr.mxu0 0.0
      %1246 = vmatpush1.msra.mxu0 0.0
      %1247 = vmatprep.subr.mxu0 0.0
      %1248 = vmatpush1.msra.mxu0 0.0
      %1249 = vmatprep.subr.mxu0 0.0
      %1250 = vmatpush1.msra.mxu0 0.0
      %1251 = vmatprep.subr.mxu0 0.0
      %1252 = vmatpush1.msra.mxu0 0.0
      %1253 = vmatprep.subr.mxu0 0.0
      %1254 = vmatpush1.msra.mxu0 0.0
      %1255 = vmatprep.subr.mxu0 0.0
      %1256 = vmatpush1.msra.mxu0 0.0
      %1257 = vmatprep.subr.mxu0 0.0
      %1258 = vmatpush1.msra.mxu0 0.0
      %1259 = vmatprep.subr.mxu0 0.0
      %1260 = vmatpush1.msra.mxu0 0.0
      %1261 = vmatprep.subr.mxu0 0.0
      %1262 = vmatpush1.msra.mxu0 0.0
      %1263 = vmatprep.subr.mxu0 0.0
      %1264 = vmatpush1.msra.mxu0 0.0
      %1265 = vmatprep.subr.mxu0 0.0
      %1266 = vmatpush1.msra.mxu0 0.0
      %1267 = vmatprep.subr.mxu0 0.0
      %1268 = vmatpush1.msra.mxu0 %v1230
      %1269 = vmatprep.subr.mxu0 0.0
      %1270 = vmatpush2.msra.mxu0 0.0
      %1271 = vmatprep.subr.mxu0 0.0
      %1272 = vmatpush2.msra.mxu0 0.0
      %1273 = vmatprep.subr.mxu0 0.0
      %1274 = vmatpush2.msra.mxu0 0.0
      %1275 = vmatprep.subr.mxu0 0.0
      %1276 = vmatpush2.msra.mxu0 0.0
      %1277 = vmatprep.subr.mxu0 0.0
      %1278 = vmatpush2.msra.mxu0 0.0
      %1279 = vmatprep.subr.mxu0 0.0
      %1280 = vmatpush2.msra.mxu0 0.0
      %1281 = vmatprep.subr.mxu0 0.0
      %1282 = vmatpush2.msra.mxu0 0.0
      %1283 = vmatprep.subr.mxu0 0.0
      %1284 = vmatpush2.msra.mxu0 0.0
      %1285 = vmatprep.subr.mxu0 0.0
      %1286 = vmatpush2.msra.mxu0 0.0
      %1287 = vmatprep.subr.mxu0 0.0
      %1288 = vmatpush2.msra.mxu0 0.0
      %1289 = vmatprep.subr.mxu0 0.0
      %1290 = vmatpush2.msra.mxu0 0.0
      %1291 = vmatprep.subr.mxu0 0.0
      %1292 = vmatpush2.msra.mxu0 0.0
      %1293 = vmatprep.subr.mxu0 0.0
      %1294 = vmatpush2.msra.mxu0 0.0
      %1295 = vmatprep.subr.mxu0 0.0
      %1296 = vmatpush2.msra.mxu0 0.0
      %1297 = vmatprep.subr.mxu0 0.0
      %1298 = vmatpush2.msra.mxu0 0.0
      %1299 = vmatprep.subr.mxu0 0.0
      %1300 = vmatpush2.msra.mxu0 0.0
      %1301 = vmatprep.mubr.f32.mxu0 0.0
      %1302 = vmatmul.mubr.f32.gmra.mxu0 %v1027
      %v1303 = vpop.f32.mrf.mxu0
      %v1304 = vadd.f32 0.0, %v1303
      %v1305 = vpop.f32.mrf.mxu0
      %1306 = vmatprep.mubr.f32.mxu0 0.0
      %1307 = vmatmul.mubr.f32.gmra.mxu0 %v1030
      %v1308 = vpop.f32.mrf.mxu0
      %v1309 = vadd.f32 0.0, %v1308
      %v1310 = vpop.f32.mrf.mxu0
      %1311 = vmatprep.mubr.f32.mxu0 0.0
      %1312 = vmatmul.mubr.f32.gmra.mxu0 %v1033
      %v1313 = vpop.f32.mrf.mxu0
      %v1314 = vadd.f32 0.0, %v1313
      %v1315 = vpop.f32.mrf.mxu0
      %1316 = vmatprep.mubr.f32.mxu0 0.0
      %1317 = vmatmul.mubr.f32.gmra.mxu0 %v1036
      %v1318 = vpop.f32.mrf.mxu0
      %v1319 = vadd.f32 0.0, %v1318
      %v1320 = vpop.f32.mrf.mxu0
      %1321 = vmatprep.mubr.f32.mxu0 0.0
      %1322 = vmatmul.mubr.f32.gmra.mxu0 %v1039
      %v1323 = vpop.f32.mrf.mxu0
      %v1324 = vadd.f32 0.0, %v1323
      %v1325 = vpop.f32.mrf.mxu0
      %1326 = vmatprep.mubr.f32.mxu0 0.0
      %1327 = vmatmul.mubr.f32.gmra.mxu0 %v1042
      %v1328 = vpop.f32.mrf.mxu0
      %v1329 = vadd.f32 0.0, %v1328
      %v1330 = vpop.f32.mrf.mxu0
      %1331 = vmatprep.mubr.f32.mxu0 0.0
      %1332 = vmatmul.mubr.f32.gmra.mxu0 %v1045
      %v1333 = vpop.f32.mrf.mxu0
      %v1334 = vadd.f32 0.0, %v1333
      %v1335 = vpop.f32.mrf.mxu0
      %1336 = vmatprep.mubr.f32.mxu0 0.0
      %1337 = vmatmul.mubr.f32.gmra.mxu0 %v1048
      %v1338 = vpop.f32.mrf.mxu0
      %v1339 = vadd.f32 0.0, %v1338
      %v1340 = vpop.f32.mrf.mxu0
      %1341 = vmatprep.mubr.f32.mxu0 0.0
      %1342 = vmatmul.mubr.f32.gmra.mxu0 %v1051
      %v1343 = vpop.f32.mrf.mxu0
      %v1344 = vadd.f32 0.0, %v1343
      %v1345 = vpop.f32.mrf.mxu0
      %1346 = vmatprep.mubr.f32.mxu0 0.0
      %1347 = vmatmul.mubr.f32.gmra.mxu0 %v1054
      %v1348 = vpop.f32.mrf.mxu0
      %v1349 = vadd.f32 0.0, %v1348
      %v1350 = vpop.f32.mrf.mxu0
      %1351 = vmatprep.mubr.f32.mxu0 0.0
      %1352 = vmatmul.mubr.f32.gmra.mxu0 %v1057
      %v1353 = vpop.f32.mrf.mxu0
      %v1354 = vadd.f32 0.0, %v1353
      %v1355 = vpop.f32.mrf.mxu0
      %1356 = vmatprep.mubr.f32.mxu0 0.0
      %1357 = vmatmul.mubr.f32.gmra.mxu0 %v1060
      %v1358 = vpop.f32.mrf.mxu0
      %v1359 = vadd.f32 0.0, %v1358
      %v1360 = vpop.f32.mrf.mxu0
      %1361 = vmatprep.mubr.f32.mxu0 0.0
      %1362 = vmatmul.mubr.f32.gmra.mxu0 %v1063
      %v1363 = vpop.f32.mrf.mxu0
      %v1364 = vadd.f32 0.0, %v1363
      %v1365 = vpop.f32.mrf.mxu0
      %1366 = vmatprep.mubr.f32.mxu0 0.0
      %1367 = vmatmul.mubr.f32.gmra.mxu0 %v1066
      %v1368 = vpop.f32.mrf.mxu0
      %v1369 = vadd.f32 0.0, %v1368
      %v1370 = vpop.f32.mrf.mxu0
      %1371 = vmatprep.mubr.f32.mxu0 0.0
      %1372 = vmatmul.mubr.f32.gmra.mxu0 %v1232
      %v1373 = vpop.f32.mrf.mxu0
      %v1374 = vadd.f32 0.0, %v1373
      %v1375 = vpop.f32.mrf.mxu0
      %1376 = vmatprep.mubr.f32.mxu0 0.0
      %1377 = vmatmul.mubr.f32.gmra.mxu0 %v1235
      %v1378 = vpop.f32.mrf.mxu0
      %v1379 = vadd.f32 0.0, %v1378
      %v1380 = vpop.f32.mrf.mxu0
      %1381 = vdwg.mxu0
      %v1382 = vadd.f32 %v1213, %v1304
      %v1383 = vadd.f32 %v1214, %v1309
      %v1384 = vadd.f32 %v1215, %v1314
      %v1385 = vadd.f32 %v1216, %v1319
      %v1386 = vadd.f32 %v1217, %v1324
      %v1387 = vadd.f32 %v1218, %v1329
      %v1388 = vadd.f32 %v1219, %v1334
      %v1389 = vadd.f32 %v1220, %v1339
      %v1390 = vadd.f32 %v1221, %v1344
      %v1391 = vadd.f32 %v1222, %v1349
      %v1392 = vadd.f32 %v1223, %v1354
      %v1393 = vadd.f32 %v1224, %v1359
      %v1394 = vadd.f32 %v1225, %v1364
      %v1395 = vadd.f32 %v1226, %v1369
      %v1396 = vadd.f32 %v1227, %v1374
      %v1397 = vadd.f32 %v1228, %v1379
      %s1398 = scalar_lea.vmem %s308, 56
      %v1399 = vld [vmem:[%s1398] sm:$0xff]
      %v1401 = vsel %vm418, %v1016, 0
      %v1404 = vsel %vm418, %v1017, 0
      %1406 = vmatprep.subr.mxu0 0.0
      %1407 = vmatpush1.msra.mxu0 0.0
      %1408 = vmatprep.subr.mxu0 0.0
      %1409 = vmatpush1.msra.mxu0 0.0
      %1410 = vmatprep.subr.mxu0 0.0
      %1411 = vmatpush1.msra.mxu0 0.0
      %1412 = vmatprep.subr.mxu0 0.0
      %1413 = vmatpush1.msra.mxu0 0.0
      %1414 = vmatprep.subr.mxu0 0.0
      %1415 = vmatpush1.msra.mxu0 0.0
      %1416 = vmatprep.subr.mxu0 0.0
      %1417 = vmatpush1.msra.mxu0 0.0
      %1418 = vmatprep.subr.mxu0 0.0
      %1419 = vmatpush1.msra.mxu0 0.0
      %1420 = vmatprep.subr.mxu0 0.0
      %1421 = vmatpush1.msra.mxu0 0.0
      %1422 = vmatprep.subr.mxu0 0.0
      %1423 = vmatpush1.msra.mxu0 0.0
      %1424 = vmatprep.subr.mxu0 0.0
      %1425 = vmatpush1.msra.mxu0 0.0
      %1426 = vmatprep.subr.mxu0 0.0
      %1427 = vmatpush1.msra.mxu0 0.0
      %1428 = vmatprep.subr.mxu0 0.0
      %1429 = vmatpush1.msra.mxu0 0.0
      %1430 = vmatprep.subr.mxu0 0.0
      %1431 = vmatpush1.msra.mxu0 0.0
      %1432 = vmatprep.subr.mxu0 0.0
      %1433 = vmatpush1.msra.mxu0 0.0
      %1434 = vmatprep.subr.mxu0 0.0
      %1435 = vmatpush1.msra.mxu0 0.0
      %1436 = vmatprep.subr.mxu0 0.0
      %1437 = vmatpush1.msra.mxu0 %v1399
      %1438 = vmatprep.subr.mxu0 0.0
      %1439 = vmatpush2.msra.mxu0 0.0
      %1440 = vmatprep.subr.mxu0 0.0
      %1441 = vmatpush2.msra.mxu0 0.0
      %1442 = vmatprep.subr.mxu0 0.0
      %1443 = vmatpush2.msra.mxu0 0.0
      %1444 = vmatprep.subr.mxu0 0.0
      %1445 = vmatpush2.msra.mxu0 0.0
      %1446 = vmatprep.subr.mxu0 0.0
      %1447 = vmatpush2.msra.mxu0 0.0
      %1448 = vmatprep.subr.mxu0 0.0
      %1449 = vmatpush2.msra.mxu0 0.0
      %1450 = vmatprep.subr.mxu0 0.0
      %1451 = vmatpush2.msra.mxu0 0.0
      %1452 = vmatprep.subr.mxu0 0.0
      %1453 = vmatpush2.msra.mxu0 0.0
      %1454 = vmatprep.subr.mxu0 0.0
      %1455 = vmatpush2.msra.mxu0 0.0
      %1456 = vmatprep.subr.mxu0 0.0
      %1457 = vmatpush2.msra.mxu0 0.0
      %1458 = vmatprep.subr.mxu0 0.0
      %1459 = vmatpush2.msra.mxu0 0.0
      %1460 = vmatprep.subr.mxu0 0.0
      %1461 = vmatpush2.msra.mxu0 0.0
      %1462 = vmatprep.subr.mxu0 0.0
      %1463 = vmatpush2.msra.mxu0 0.0
      %1464 = vmatprep.subr.mxu0 0.0
      %1465 = vmatpush2.msra.mxu0 0.0
      %1466 = vmatprep.subr.mxu0 0.0
      %1467 = vmatpush2.msra.mxu0 0.0
      %1468 = vmatprep.subr.mxu0 0.0
      %1469 = vmatpush2.msra.mxu0 0.0
      %1470 = vmatprep.mubr.f32.mxu0 0.0
      %1471 = vmatmul.mubr.f32.gmra.mxu0 %v1033
      %v1472 = vpop.f32.mrf.mxu0
      %v1473 = vadd.f32 0.0, %v1472
      %v1474 = vpop.f32.mrf.mxu0
      %1475 = vmatprep.mubr.f32.mxu0 0.0
      %1476 = vmatmul.mubr.f32.gmra.mxu0 %v1036
      %v1477 = vpop.f32.mrf.mxu0
      %v1478 = vadd.f32 0.0, %v1477
      %v1479 = vpop.f32.mrf.mxu0
      %1480 = vmatprep.mubr.f32.mxu0 0.0
      %1481 = vmatmul.mubr.f32.gmra.mxu0 %v1039
      %v1482 = vpop.f32.mrf.mxu0
      %v1483 = vadd.f32 0.0, %v1482
      %v1484 = vpop.f32.mrf.mxu0
      %1485 = vmatprep.mubr.f32.mxu0 0.0
      %1486 = vmatmul.mubr.f32.gmra.mxu0 %v1042
      %v1487 = vpop.f32.mrf.mxu0
      %v1488 = vadd.f32 0.0, %v1487
      %v1489 = vpop.f32.mrf.mxu0
      %1490 = vmatprep.mubr.f32.mxu0 0.0
      %1491 = vmatmul.mubr.f32.gmra.mxu0 %v1045
      %v1492 = vpop.f32.mrf.mxu0
      %v1493 = vadd.f32 0.0, %v1492
      %v1494 = vpop.f32.mrf.mxu0
      %1495 = vmatprep.mubr.f32.mxu0 0.0
      %1496 = vmatmul.mubr.f32.gmra.mxu0 %v1048
      %v1497 = vpop.f32.mrf.mxu0
      %v1498 = vadd.f32 0.0, %v1497
      %v1499 = vpop.f32.mrf.mxu0
      %1500 = vmatprep.mubr.f32.mxu0 0.0
      %1501 = vmatmul.mubr.f32.gmra.mxu0 %v1051
      %v1502 = vpop.f32.mrf.mxu0
      %v1503 = vadd.f32 0.0, %v1502
      %v1504 = vpop.f32.mrf.mxu0
      %1505 = vmatprep.mubr.f32.mxu0 0.0
      %1506 = vmatmul.mubr.f32.gmra.mxu0 %v1054
      %v1507 = vpop.f32.mrf.mxu0
      %v1508 = vadd.f32 0.0, %v1507
      %v1509 = vpop.f32.mrf.mxu0
      %1510 = vmatprep.mubr.f32.mxu0 0.0
      %1511 = vmatmul.mubr.f32.gmra.mxu0 %v1057
      %v1512 = vpop.f32.mrf.mxu0
      %v1513 = vadd.f32 0.0, %v1512
      %v1514 = vpop.f32.mrf.mxu0
      %1515 = vmatprep.mubr.f32.mxu0 0.0
      %1516 = vmatmul.mubr.f32.gmra.mxu0 %v1060
      %v1517 = vpop.f32.mrf.mxu0
      %v1518 = vadd.f32 0.0, %v1517
      %v1519 = vpop.f32.mrf.mxu0
      %1520 = vmatprep.mubr.f32.mxu0 0.0
      %1521 = vmatmul.mubr.f32.gmra.mxu0 %v1063
      %v1522 = vpop.f32.mrf.mxu0
      %v1523 = vadd.f32 0.0, %v1522
      %v1524 = vpop.f32.mrf.mxu0
      %1525 = vmatprep.mubr.f32.mxu0 0.0
      %1526 = vmatmul.mubr.f32.gmra.mxu0 %v1066
      %v1527 = vpop.f32.mrf.mxu0
      %v1528 = vadd.f32 0.0, %v1527
      %v1529 = vpop.f32.mrf.mxu0
      %1530 = vmatprep.mubr.f32.mxu0 0.0
      %1531 = vmatmul.mubr.f32.gmra.mxu0 %v1232
      %v1532 = vpop.f32.mrf.mxu0
      %v1533 = vadd.f32 0.0, %v1532
      %v1534 = vpop.f32.mrf.mxu0
      %1535 = vmatprep.mubr.f32.mxu0 0.0
      %1536 = vmatmul.mubr.f32.gmra.mxu0 %v1235
      %v1537 = vpop.f32.mrf.mxu0
      %v1538 = vadd.f32 0.0, %v1537
      %v1539 = vpop.f32.mrf.mxu0
      %1540 = vmatprep.mubr.f32.mxu0 0.0
      %1541 = vmatmul.mubr.f32.gmra.mxu0 %v1401
      %v1542 = vpop.f32.mrf.mxu0
      %v1543 = vadd.f32 0.0, %v1542
      %v1544 = vpop.f32.mrf.mxu0
      %1545 = vmatprep.mubr.f32.mxu0 0.0
      %1546 = vmatmul.mubr.f32.gmra.mxu0 %v1404
      %v1547 = vpop.f32.mrf.mxu0
      %v1548 = vadd.f32 0.0, %v1547
      %v1549 = vpop.f32.mrf.mxu0
      %1550 = vdwg.mxu0
      %v1551 = vadd.f32 %v1382, %v1473
      %v1552 = vadd.f32 %v1383, %v1478
      %v1553 = vadd.f32 %v1384, %v1483
      %v1554 = vadd.f32 %v1385, %v1488
      %v1555 = vadd.f32 %v1386, %v1493
      %v1556 = vadd.f32 %v1387, %v1498
      %v1557 = vadd.f32 %v1388, %v1503
      %v1558 = vadd.f32 %v1389, %v1508
      %v1559 = vadd.f32 %v1390, %v1513
      %v1560 = vadd.f32 %v1391, %v1518
      %v1561 = vadd.f32 %v1392, %v1523
      %v1562 = vadd.f32 %v1393, %v1528
      %v1563 = vadd.f32 %v1394, %v1533
      %v1564 = vadd.f32 %v1395, %v1538
      %v1565 = vadd.f32 %v1396, %v1543
      %v1566 = vadd.f32 %v1397, %v1548
      %v1567 = vld [vmem:[#allocation2 + $0x2] sm:$0xff]
      %v1568 = vld [vmem:[#allocation2 + $0xa] sm:$0xff]
      %v1569 = vld [vmem:[#allocation2 + $0x1a] sm:$0xff]
      %v1570 = vld [vmem:[#allocation2 + $0x22] sm:$0xff]
      %v1571 = vld [vmem:[#allocation2 + $0x32] sm:$0xff]
      %v1572 = vld [vmem:[#allocation2 + $0x3a] sm:$0xff]
      %v1573 = vld [vmem:[#allocation2 + $0x4a] sm:$0xff]
      %v1574 = vld [vmem:[#allocation2 + $0x52] sm:$0xff]
      %v1575 = vld [vmem:[#allocation2 + $0x62] sm:$0xff]
      %v1576 = vld [vmem:[#allocation2 + $0x6a] sm:$0xff]
      %v1577 = vld [vmem:[#allocation2 + $0x7a] sm:$0xff]
      %v1578 = vld [vmem:[#allocation2 + $0x82] sm:$0xff]
      %v1579 = vld [vmem:[#allocation2 + $0x92] sm:$0xff]
      %v1580 = vld [vmem:[#allocation2 + $0x9a] sm:$0xff]
      %v1581 = vld [vmem:[#allocation2 + $0xaa] sm:$0xff]
      %v1582 = vld [vmem:[#allocation2 + $0xb2] sm:$0xff]
      %v1583 = vld [vmem:[#allocation2 + $0xc2] sm:$0xff]
      %v1584 = vld [vmem:[#allocation2 + $0xca] sm:$0xff]
      %v1585 = vld [vmem:[#allocation2 + $0xda] sm:$0xff]
      %v1586 = vld [vmem:[#allocation2 + $0xe2] sm:$0xff]
      %s1587 = scalar_lea.vmem %s308, 16
      %v1588 = vld [vmem:[%s1587] sm:$0xff]
      %v1590 = vsel %vm418, %v1567, 0
      %v1593 = vsel %vm418, %v1568, 0
      %v1596 = vsel %vm418, %v1569, 0
      %v1599 = vsel %vm418, %v1570, 0
      %v1602 = vsel %vm418, %v1571, 0
      %v1605 = vsel %vm418, %v1572, 0
      %v1608 = vsel %vm418, %v1573, 0
      %v1611 = vsel %vm418, %v1574, 0
      %v1614 = vsel %vm418, %v1575, 0
      %v1617 = vsel %vm418, %v1576, 0
      %v1620 = vsel %vm418, %v1577, 0
      %v1623 = vsel %vm418, %v1578, 0
      %v1626 = vsel %vm418, %v1579, 0
      %v1629 = vsel %vm418, %v1580, 0
      %v1632 = vsel %vm418, %v1581, 0
      %v1635 = vsel %vm418, %v1582, 0
      %1637 = vmatprep.subr.mxu0 0.0
      %1638 = vmatpush1.msra.mxu0 0.0
      %1639 = vmatprep.subr.mxu0 0.0
      %1640 = vmatpush1.msra.mxu0 0.0
      %1641 = vmatprep.subr.mxu0 0.0
      %1642 = vmatpush1.msra.mxu0 0.0
      %1643 = vmatprep.subr.mxu0 0.0
      %1644 = vmatpush1.msra.mxu0 0.0
      %1645 = vmatprep.subr.mxu0 0.0
      %1646 = vmatpush1.msra.mxu0 0.0
      %1647 = vmatprep.subr.mxu0 0.0
      %1648 = vmatpush1.msra.mxu0 0.0
      %1649 = vmatprep.subr.mxu0 0.0
      %1650 = vmatpush1.msra.mxu0 0.0
      %1651 = vmatprep.subr.mxu0 0.0
      %1652 = vmatpush1.msra.mxu0 0.0
      %1653 = vmatprep.subr.mxu0 0.0
      %1654 = vmatpush1.msra.mxu0 0.0
      %1655 = vmatprep.subr.mxu0 0.0
      %1656 = vmatpush1.msra.mxu0 0.0
      %1657 = vmatprep.subr.mxu0 0.0
      %1658 = vmatpush1.msra.mxu0 0.0
      %1659 = vmatprep.subr.mxu0 0.0
      %1660 = vmatpush1.msra.mxu0 0.0
      %1661 = vmatprep.subr.mxu0 0.0
      %1662 = vmatpush1.msra.mxu0 0.0
      %1663 = vmatprep.subr.mxu0 0.0
      %1664 = vmatpush1.msra.mxu0 0.0
      %1665 = vmatprep.subr.mxu0 0.0
      %1666 = vmatpush1.msra.mxu0 0.0
      %1667 = vmatprep.subr.mxu0 0.0
      %1668 = vmatpush1.msra.mxu0 %v1588
      %1669 = vmatprep.subr.mxu0 0.0
      %1670 = vmatpush2.msra.mxu0 0.0
      %1671 = vmatprep.subr.mxu0 0.0
      %1672 = vmatpush2.msra.mxu0 0.0
      %1673 = vmatprep.subr.mxu0 0.0
      %1674 = vmatpush2.msra.mxu0 0.0
      %1675 = vmatprep.subr.mxu0 0.0
      %1676 = vmatpush2.msra.mxu0 0.0
      %1677 = vmatprep.subr.mxu0 0.0
      %1678 = vmatpush2.msra.mxu0 0.0
      %1679 = vmatprep.subr.mxu0 0.0
      %1680 = vmatpush2.msra.mxu0 0.0
      %1681 = vmatprep.subr.mxu0 0.0
      %1682 = vmatpush2.msra.mxu0 0.0
      %1683 = vmatprep.subr.mxu0 0.0
      %1684 = vmatpush2.msra.mxu0 0.0
      %1685 = vmatprep.subr.mxu0 0.0
      %1686 = vmatpush2.msra.mxu0 0.0
      %1687 = vmatprep.subr.mxu0 0.0
      %1688 = vmatpush2.msra.mxu0 0.0
      %1689 = vmatprep.subr.mxu0 0.0
      %1690 = vmatpush2.msra.mxu0 0.0
      %1691 = vmatprep.subr.mxu0 0.0
      %1692 = vmatpush2.msra.mxu0 0.0
      %1693 = vmatprep.subr.mxu0 0.0
      %1694 = vmatpush2.msra.mxu0 0.0
      %1695 = vmatprep.subr.mxu0 0.0
      %1696 = vmatpush2.msra.mxu0 0.0
      %1697 = vmatprep.subr.mxu0 0.0
      %1698 = vmatpush2.msra.mxu0 0.0
      %1699 = vmatprep.subr.mxu0 0.0
      %1700 = vmatpush2.msra.mxu0 0.0
      %1701 = vmatprep.mubr.f32.mxu0 0.0
      %1702 = vmatmul.mubr.f32.gmra.mxu0 %v1590
      %v1703 = vpop.f32.mrf.mxu0
      %v1704 = vadd.f32 0.0, %v1703
      %v1705 = vpop.f32.mrf.mxu0
      %1706 = vmatprep.mubr.f32.mxu0 0.0
      %1707 = vmatmul.mubr.f32.gmra.mxu0 %v1593
      %v1708 = vpop.f32.mrf.mxu0
      %v1709 = vadd.f32 0.0, %v1708
      %v1710 = vpop.f32.mrf.mxu0
      %1711 = vmatprep.mubr.f32.mxu0 0.0
      %1712 = vmatmul.mubr.f32.gmra.mxu0 %v1596
      %v1713 = vpop.f32.mrf.mxu0
      %v1714 = vadd.f32 0.0, %v1713
      %v1715 = vpop.f32.mrf.mxu0
      %1716 = vmatprep.mubr.f32.mxu0 0.0
      %1717 = vmatmul.mubr.f32.gmra.mxu0 %v1599
      %v1718 = vpop.f32.mrf.mxu0
      %v1719 = vadd.f32 0.0, %v1718
      %v1720 = vpop.f32.mrf.mxu0
      %1721 = vmatprep.mubr.f32.mxu0 0.0
      %1722 = vmatmul.mubr.f32.gmra.mxu0 %v1602
      %v1723 = vpop.f32.mrf.mxu0
      %v1724 = vadd.f32 0.0, %v1723
      %v1725 = vpop.f32.mrf.mxu0
      %1726 = vmatprep.mubr.f32.mxu0 0.0
      %1727 = vmatmul.mubr.f32.gmra.mxu0 %v1605
      %v1728 = vpop.f32.mrf.mxu0
      %v1729 = vadd.f32 0.0, %v1728
      %v1730 = vpop.f32.mrf.mxu0
      %1731 = vmatprep.mubr.f32.mxu0 0.0
      %1732 = vmatmul.mubr.f32.gmra.mxu0 %v1608
      %v1733 = vpop.f32.mrf.mxu0
      %v1734 = vadd.f32 0.0, %v1733
      %v1735 = vpop.f32.mrf.mxu0
      %1736 = vmatprep.mubr.f32.mxu0 0.0
      %1737 = vmatmul.mubr.f32.gmra.mxu0 %v1611
      %v1738 = vpop.f32.mrf.mxu0
      %v1739 = vadd.f32 0.0, %v1738
      %v1740 = vpop.f32.mrf.mxu0
      %1741 = vmatprep.mubr.f32.mxu0 0.0
      %1742 = vmatmul.mubr.f32.gmra.mxu0 %v1614
      %v1743 = vpop.f32.mrf.mxu0
      %v1744 = vadd.f32 0.0, %v1743
      %v1745 = vpop.f32.mrf.mxu0
      %1746 = vmatprep.mubr.f32.mxu0 0.0
      %1747 = vmatmul.mubr.f32.gmra.mxu0 %v1617
      %v1748 = vpop.f32.mrf.mxu0
      %v1749 = vadd.f32 0.0, %v1748
      %v1750 = vpop.f32.mrf.mxu0
      %1751 = vmatprep.mubr.f32.mxu0 0.0
      %1752 = vmatmul.mubr.f32.gmra.mxu0 %v1620
      %v1753 = vpop.f32.mrf.mxu0
      %v1754 = vadd.f32 0.0, %v1753
      %v1755 = vpop.f32.mrf.mxu0
      %1756 = vmatprep.mubr.f32.mxu0 0.0
      %1757 = vmatmul.mubr.f32.gmra.mxu0 %v1623
      %v1758 = vpop.f32.mrf.mxu0
      %v1759 = vadd.f32 0.0, %v1758
      %v1760 = vpop.f32.mrf.mxu0
      %1761 = vmatprep.mubr.f32.mxu0 0.0
      %1762 = vmatmul.mubr.f32.gmra.mxu0 %v1626
      %v1763 = vpop.f32.mrf.mxu0
      %v1764 = vadd.f32 0.0, %v1763
      %v1765 = vpop.f32.mrf.mxu0
      %1766 = vmatprep.mubr.f32.mxu0 0.0
      %1767 = vmatmul.mubr.f32.gmra.mxu0 %v1629
      %v1768 = vpop.f32.mrf.mxu0
      %v1769 = vadd.f32 0.0, %v1768
      %v1770 = vpop.f32.mrf.mxu0
      %1771 = vmatprep.mubr.f32.mxu0 0.0
      %1772 = vmatmul.mubr.f32.gmra.mxu0 %v1632
      %v1773 = vpop.f32.mrf.mxu0
      %v1774 = vadd.f32 0.0, %v1773
      %v1775 = vpop.f32.mrf.mxu0
      %1776 = vmatprep.mubr.f32.mxu0 0.0
      %1777 = vmatmul.mubr.f32.gmra.mxu0 %v1635
      %v1778 = vpop.f32.mrf.mxu0
      %v1779 = vadd.f32 0.0, %v1778
      %v1780 = vpop.f32.mrf.mxu0
      %1781 = vdwg.mxu0
      %v1782 = vadd.f32 %v1551, %v1704
      %v1783 = vadd.f32 %v1552, %v1709
      %v1784 = vadd.f32 %v1553, %v1714
      %v1785 = vadd.f32 %v1554, %v1719
      %v1786 = vadd.f32 %v1555, %v1724
      %v1787 = vadd.f32 %v1556, %v1729
      %v1788 = vadd.f32 %v1557, %v1734
      %v1789 = vadd.f32 %v1558, %v1739
      %v1790 = vadd.f32 %v1559, %v1744
      %v1791 = vadd.f32 %v1560, %v1749
      %v1792 = vadd.f32 %v1561, %v1754
      %v1793 = vadd.f32 %v1562, %v1759
      %v1794 = vadd.f32 %v1563, %v1764
      %v1795 = vadd.f32 %v1564, %v1769
      %v1796 = vadd.f32 %v1565, %v1774
      %v1797 = vadd.f32 %v1566, %v1779
      %s1798 = scalar_lea.vmem %s308, 40
      %v1799 = vld [vmem:[%s1798] sm:$0xff]
      %v1801 = vsel %vm418, %v1583, 0
      %v1804 = vsel %vm418, %v1584, 0
      %1806 = vmatprep.subr.mxu0 0.0
      %1807 = vmatpush1.msra.mxu0 0.0
      %1808 = vmatprep.subr.mxu0 0.0
      %1809 = vmatpush1.msra.mxu0 0.0
      %1810 = vmatprep.subr.mxu0 0.0
      %1811 = vmatpush1.msra.mxu0 0.0
      %1812 = vmatprep.subr.mxu0 0.0
      %1813 = vmatpush1.msra.mxu0 0.0
      %1814 = vmatprep.subr.mxu0 0.0
      %1815 = vmatpush1.msra.mxu0 0.0
      %1816 = vmatprep.subr.mxu0 0.0
      %1817 = vmatpush1.msra.mxu0 0.0
      %1818 = vmatprep.subr.mxu0 0.0
      %1819 = vmatpush1.msra.mxu0 0.0
      %1820 = vmatprep.subr.mxu0 0.0
      %1821 = vmatpush1.msra.mxu0 0.0
      %1822 = vmatprep.subr.mxu0 0.0
      %1823 = vmatpush1.msra.mxu0 0.0
      %1824 = vmatprep.subr.mxu0 0.0
      %1825 = vmatpush1.msra.mxu0 0.0
      %1826 = vmatprep.subr.mxu0 0.0
      %1827 = vmatpush1.msra.mxu0 0.0
      %1828 = vmatprep.subr.mxu0 0.0
      %1829 = vmatpush1.msra.mxu0 0.0
      %1830 = vmatprep.subr.mxu0 0.0
      %1831 = vmatpush1.msra.mxu0 0.0
      %1832 = vmatprep.subr.mxu0 0.0
      %1833 = vmatpush1.msra.mxu0 0.0
      %1834 = vmatprep.subr.mxu0 0.0
      %1835 = vmatpush1.msra.mxu0 0.0
      %1836 = vmatprep.subr.mxu0 0.0
      %1837 = vmatpush1.msra.mxu0 %v1799
      %1838 = vmatprep.subr.mxu0 0.0
      %1839 = vmatpush2.msra.mxu0 0.0
      %1840 = vmatprep.subr.mxu0 0.0
      %1841 = vmatpush2.msra.mxu0 0.0
      %1842 = vmatprep.subr.mxu0 0.0
      %1843 = vmatpush2.msra.mxu0 0.0
      %1844 = vmatprep.subr.mxu0 0.0
      %1845 = vmatpush2.msra.mxu0 0.0
      %1846 = vmatprep.subr.mxu0 0.0
      %1847 = vmatpush2.msra.mxu0 0.0
      %1848 = vmatprep.subr.mxu0 0.0
      %1849 = vmatpush2.msra.mxu0 0.0
      %1850 = vmatprep.subr.mxu0 0.0
      %1851 = vmatpush2.msra.mxu0 0.0
      %1852 = vmatprep.subr.mxu0 0.0
      %1853 = vmatpush2.msra.mxu0 0.0
      %1854 = vmatprep.subr.mxu0 0.0
      %1855 = vmatpush2.msra.mxu0 0.0
      %1856 = vmatprep.subr.mxu0 0.0
      %1857 = vmatpush2.msra.mxu0 0.0
      %1858 = vmatprep.subr.mxu0 0.0
      %1859 = vmatpush2.msra.mxu0 0.0
      %1860 = vmatprep.subr.mxu0 0.0
      %1861 = vmatpush2.msra.mxu0 0.0
      %1862 = vmatprep.subr.mxu0 0.0
      %1863 = vmatpush2.msra.mxu0 0.0
      %1864 = vmatprep.subr.mxu0 0.0
      %1865 = vmatpush2.msra.mxu0 0.0
      %1866 = vmatprep.subr.mxu0 0.0
      %1867 = vmatpush2.msra.mxu0 0.0
      %1868 = vmatprep.subr.mxu0 0.0
      %1869 = vmatpush2.msra.mxu0 0.0
      %1870 = vmatprep.mubr.f32.mxu0 0.0
      %1871 = vmatmul.mubr.f32.gmra.mxu0 %v1596
      %v1872 = vpop.f32.mrf.mxu0
      %v1873 = vadd.f32 0.0, %v1872
      %v1874 = vpop.f32.mrf.mxu0
      %1875 = vmatprep.mubr.f32.mxu0 0.0
      %1876 = vmatmul.mubr.f32.gmra.mxu0 %v1599
      %v1877 = vpop.f32.mrf.mxu0
      %v1878 = vadd.f32 0.0, %v1877
      %v1879 = vpop.f32.mrf.mxu0
      %1880 = vmatprep.mubr.f32.mxu0 0.0
      %1881 = vmatmul.mubr.f32.gmra.mxu0 %v1602
      %v1882 = vpop.f32.mrf.mxu0
      %v1883 = vadd.f32 0.0, %v1882
      %v1884 = vpop.f32.mrf.mxu0
      %1885 = vmatprep.mubr.f32.mxu0 0.0
      %1886 = vmatmul.mubr.f32.gmra.mxu0 %v1605
      %v1887 = vpop.f32.mrf.mxu0
      %v1888 = vadd.f32 0.0, %v1887
      %v1889 = vpop.f32.mrf.mxu0
      %1890 = vmatprep.mubr.f32.mxu0 0.0
      %1891 = vmatmul.mubr.f32.gmra.mxu0 %v1608
      %v1892 = vpop.f32.mrf.mxu0
      %v1893 = vadd.f32 0.0, %v1892
      %v1894 = vpop.f32.mrf.mxu0
      %1895 = vmatprep.mubr.f32.mxu0 0.0
      %1896 = vmatmul.mubr.f32.gmra.mxu0 %v1611
      %v1897 = vpop.f32.mrf.mxu0
      %v1898 = vadd.f32 0.0, %v1897
      %v1899 = vpop.f32.mrf.mxu0
      %1900 = vmatprep.mubr.f32.mxu0 0.0
      %1901 = vmatmul.mubr.f32.gmra.mxu0 %v1614
      %v1902 = vpop.f32.mrf.mxu0
      %v1903 = vadd.f32 0.0, %v1902
      %v1904 = vpop.f32.mrf.mxu0
      %1905 = vmatprep.mubr.f32.mxu0 0.0
      %1906 = vmatmul.mubr.f32.gmra.mxu0 %v1617
      %v1907 = vpop.f32.mrf.mxu0
      %v1908 = vadd.f32 0.0, %v1907
      %v1909 = vpop.f32.mrf.mxu0
      %1910 = vmatprep.mubr.f32.mxu0 0.0
      %1911 = vmatmul.mubr.f32.gmra.mxu0 %v1620
      %v1912 = vpop.f32.mrf.mxu0
      %v1913 = vadd.f32 0.0, %v1912
      %v1914 = vpop.f32.mrf.mxu0
      %1915 = vmatprep.mubr.f32.mxu0 0.0
      %1916 = vmatmul.mubr.f32.gmra.mxu0 %v1623
      %v1917 = vpop.f32.mrf.mxu0
      %v1918 = vadd.f32 0.0, %v1917
      %v1919 = vpop.f32.mrf.mxu0
      %1920 = vmatprep.mubr.f32.mxu0 0.0
      %1921 = vmatmul.mubr.f32.gmra.mxu0 %v1626
      %v1922 = vpop.f32.mrf.mxu0
      %v1923 = vadd.f32 0.0, %v1922
      %v1924 = vpop.f32.mrf.mxu0
      %1925 = vmatprep.mubr.f32.mxu0 0.0
      %1926 = vmatmul.mubr.f32.gmra.mxu0 %v1629
      %v1927 = vpop.f32.mrf.mxu0
      %v1928 = vadd.f32 0.0, %v1927
      %v1929 = vpop.f32.mrf.mxu0
      %1930 = vmatprep.mubr.f32.mxu0 0.0
      %1931 = vmatmul.mubr.f32.gmra.mxu0 %v1632
      %v1932 = vpop.f32.mrf.mxu0
      %v1933 = vadd.f32 0.0, %v1932
      %v1934 = vpop.f32.mrf.mxu0
      %1935 = vmatprep.mubr.f32.mxu0 0.0
      %1936 = vmatmul.mubr.f32.gmra.mxu0 %v1635
      %v1937 = vpop.f32.mrf.mxu0
      %v1938 = vadd.f32 0.0, %v1937
      %v1939 = vpop.f32.mrf.mxu0
      %1940 = vmatprep.mubr.f32.mxu0 0.0
      %1941 = vmatmul.mubr.f32.gmra.mxu0 %v1801
      %v1942 = vpop.f32.mrf.mxu0
      %v1943 = vadd.f32 0.0, %v1942
      %v1944 = vpop.f32.mrf.mxu0
      %1945 = vmatprep.mubr.f32.mxu0 0.0
      %1946 = vmatmul.mubr.f32.gmra.mxu0 %v1804
      %v1947 = vpop.f32.mrf.mxu0
      %v1948 = vadd.f32 0.0, %v1947
      %v1949 = vpop.f32.mrf.mxu0
      %1950 = vdwg.mxu0
      %v1951 = vadd.f32 %v1782, %v1873
      %v1952 = vadd.f32 %v1783, %v1878
      %v1953 = vadd.f32 %v1784, %v1883
      %v1954 = vadd.f32 %v1785, %v1888
      %v1955 = vadd.f32 %v1786, %v1893
      %v1956 = vadd.f32 %v1787, %v1898
      %v1957 = vadd.f32 %v1788, %v1903
      %v1958 = vadd.f32 %v1789, %v1908
      %v1959 = vadd.f32 %v1790, %v1913
      %v1960 = vadd.f32 %v1791, %v1918
      %v1961 = vadd.f32 %v1792, %v1923
      %v1962 = vadd.f32 %v1793, %v1928
      %v1963 = vadd.f32 %v1794, %v1933
      %v1964 = vadd.f32 %v1795, %v1938
      %v1965 = vadd.f32 %v1796, %v1943
      %v1966 = vadd.f32 %v1797, %v1948
      %s1967 = scalar_lea.vmem %s308, 64
      %v1968 = vld [vmem:[%s1967] sm:$0xff]
      %v1970 = vsel %vm418, %v1585, 0
      %v1973 = vsel %vm418, %v1586, 0
      %1975 = vmatprep.subr.mxu0 0.0
      %1976 = vmatpush1.msra.mxu0 0.0
      %1977 = vmatprep.subr.mxu0 0.0
      %1978 = vmatpush1.msra.mxu0 0.0
      %1979 = vmatprep.subr.mxu0 0.0
      %1980 = vmatpush1.msra.mxu0 0.0
      %1981 = vmatprep.subr.mxu0 0.0
      %1982 = vmatpush1.msra.mxu0 0.0
      %1983 = vmatprep.subr.mxu0 0.0
      %1984 = vmatpush1.msra.mxu0 0.0
      %1985 = vmatprep.subr.mxu0 0.0
      %1986 = vmatpush1.msra.mxu0 0.0
      %1987 = vmatprep.subr.mxu0 0.0
      %1988 = vmatpush1.msra.mxu0 0.0
      %1989 = vmatprep.subr.mxu0 0.0
      %1990 = vmatpush1.msra.mxu0 0.0
      %1991 = vmatprep.subr.mxu0 0.0
      %1992 = vmatpush1.msra.mxu0 0.0
      %1993 = vmatprep.subr.mxu0 0.0
      %1994 = vmatpush1.msra.mxu0 0.0
      %1995 = vmatprep.subr.mxu0 0.0
      %1996 = vmatpush1.msra.mxu0 0.0
      %1997 = vmatprep.subr.mxu0 0.0
      %1998 = vmatpush1.msra.mxu0 0.0
      %1999 = vmatprep.subr.mxu0 0.0
      %2000 = vmatpush1.msra.mxu0 0.0
      %2001 = vmatprep.subr.mxu0 0.0
      %2002 = vmatpush1.msra.mxu0 0.0
      %2003 = vmatprep.subr.mxu0 0.0
      %2004 = vmatpush1.msra.mxu0 0.0
      %2005 = vmatprep.subr.mxu0 0.0
      %2006 = vmatpush1.msra.mxu0 %v1968
      %2007 = vmatprep.subr.mxu0 0.0
      %2008 = vmatpush2.msra.mxu0 0.0
      %2009 = vmatprep.subr.mxu0 0.0
      %2010 = vmatpush2.msra.mxu0 0.0
      %2011 = vmatprep.subr.mxu0 0.0
      %2012 = vmatpush2.msra.mxu0 0.0
      %2013 = vmatprep.subr.mxu0 0.0
      %2014 = vmatpush2.msra.mxu0 0.0
      %2015 = vmatprep.subr.mxu0 0.0
      %2016 = vmatpush2.msra.mxu0 0.0
      %2017 = vmatprep.subr.mxu0 0.0
      %2018 = vmatpush2.msra.mxu0 0.0
      %2019 = vmatprep.subr.mxu0 0.0
      %2020 = vmatpush2.msra.mxu0 0.0
      %2021 = vmatprep.subr.mxu0 0.0
      %2022 = vmatpush2.msra.mxu0 0.0
      %2023 = vmatprep.subr.mxu0 0.0
      %2024 = vmatpush2.msra.mxu0 0.0
      %2025 = vmatprep.subr.mxu0 0.0
      %2026 = vmatpush2.msra.mxu0 0.0
      %2027 = vmatprep.subr.mxu0 0.0
      %2028 = vmatpush2.msra.mxu0 0.0
      %2029 = vmatprep.subr.mxu0 0.0
      %2030 = vmatpush2.msra.mxu0 0.0
      %2031 = vmatprep.subr.mxu0 0.0
      %2032 = vmatpush2.msra.mxu0 0.0
      %2033 = vmatprep.subr.mxu0 0.0
      %2034 = vmatpush2.msra.mxu0 0.0
      %2035 = vmatprep.subr.mxu0 0.0
      %2036 = vmatpush2.msra.mxu0 0.0
      %2037 = vmatprep.subr.mxu0 0.0
      %2038 = vmatpush2.msra.mxu0 0.0
      %2039 = vmatprep.mubr.f32.mxu0 0.0
      %2040 = vmatmul.mubr.f32.gmra.mxu0 %v1602
      %v2041 = vpop.f32.mrf.mxu0
      %v2042 = vadd.f32 0.0, %v2041
      %v2043 = vpop.f32.mrf.mxu0
      %2044 = vmatprep.mubr.f32.mxu0 0.0
      %2045 = vmatmul.mubr.f32.gmra.mxu0 %v1605
      %v2046 = vpop.f32.mrf.mxu0
      %v2047 = vadd.f32 0.0, %v2046
      %v2048 = vpop.f32.mrf.mxu0
      %2049 = vmatprep.mubr.f32.mxu0 0.0
      %2050 = vmatmul.mubr.f32.gmra.mxu0 %v1608
      %v2051 = vpop.f32.mrf.mxu0
      %v2052 = vadd.f32 0.0, %v2051
      %v2053 = vpop.f32.mrf.mxu0
      %2054 = vmatprep.mubr.f32.mxu0 0.0
      %2055 = vmatmul.mubr.f32.gmra.mxu0 %v1611
      %v2056 = vpop.f32.mrf.mxu0
      %v2057 = vadd.f32 0.0, %v2056
      %v2058 = vpop.f32.mrf.mxu0
      %2059 = vmatprep.mubr.f32.mxu0 0.0
      %2060 = vmatmul.mubr.f32.gmra.mxu0 %v1614
      %v2061 = vpop.f32.mrf.mxu0
      %v2062 = vadd.f32 0.0, %v2061
      %v2063 = vpop.f32.mrf.mxu0
      %2064 = vmatprep.mubr.f32.mxu0 0.0
      %2065 = vmatmul.mubr.f32.gmra.mxu0 %v1617
      %v2066 = vpop.f32.mrf.mxu0
      %v2067 = vadd.f32 0.0, %v2066
      %v2068 = vpop.f32.mrf.mxu0
      %2069 = vmatprep.mubr.f32.mxu0 0.0
      %2070 = vmatmul.mubr.f32.gmra.mxu0 %v1620
      %v2071 = vpop.f32.mrf.mxu0
      %v2072 = vadd.f32 0.0, %v2071
      %v2073 = vpop.f32.mrf.mxu0
      %2074 = vmatprep.mubr.f32.mxu0 0.0
      %2075 = vmatmul.mubr.f32.gmra.mxu0 %v1623
      %v2076 = vpop.f32.mrf.mxu0
      %v2077 = vadd.f32 0.0, %v2076
      %v2078 = vpop.f32.mrf.mxu0
      %2079 = vmatprep.mubr.f32.mxu0 0.0
      %2080 = vmatmul.mubr.f32.gmra.mxu0 %v1626
      %v2081 = vpop.f32.mrf.mxu0
      %v2082 = vadd.f32 0.0, %v2081
      %v2083 = vpop.f32.mrf.mxu0
      %2084 = vmatprep.mubr.f32.mxu0 0.0
      %2085 = vmatmul.mubr.f32.gmra.mxu0 %v1629
      %v2086 = vpop.f32.mrf.mxu0
      %v2087 = vadd.f32 0.0, %v2086
      %v2088 = vpop.f32.mrf.mxu0
      %2089 = vmatprep.mubr.f32.mxu0 0.0
      %2090 = vmatmul.mubr.f32.gmra.mxu0 %v1632
      %v2091 = vpop.f32.mrf.mxu0
      %v2092 = vadd.f32 0.0, %v2091
      %v2093 = vpop.f32.mrf.mxu0
      %2094 = vmatprep.mubr.f32.mxu0 0.0
      %2095 = vmatmul.mubr.f32.gmra.mxu0 %v1635
      %v2096 = vpop.f32.mrf.mxu0
      %v2097 = vadd.f32 0.0, %v2096
      %v2098 = vpop.f32.mrf.mxu0
      %2099 = vmatprep.mubr.f32.mxu0 0.0
      %2100 = vmatmul.mubr.f32.gmra.mxu0 %v1801
      %v2101 = vpop.f32.mrf.mxu0
      %v2102 = vadd.f32 0.0, %v2101
      %v2103 = vpop.f32.mrf.mxu0
      %2104 = vmatprep.mubr.f32.mxu0 0.0
      %2105 = vmatmul.mubr.f32.gmra.mxu0 %v1804
      %v2106 = vpop.f32.mrf.mxu0
      %v2107 = vadd.f32 0.0, %v2106
      %v2108 = vpop.f32.mrf.mxu0
      %2109 = vmatprep.mubr.f32.mxu0 0.0
      %2110 = vmatmul.mubr.f32.gmra.mxu0 %v1970
      %v2111 = vpop.f32.mrf.mxu0
      %v2112 = vadd.f32 0.0, %v2111
      %v2113 = vpop.f32.mrf.mxu0
      %2114 = vmatprep.mubr.f32.mxu0 0.0
      %2115 = vmatmul.mubr.f32.gmra.mxu0 %v1973
      %v2116 = vpop.f32.mrf.mxu0
      %v2117 = vadd.f32 0.0, %v2116
      %v2118 = vpop.f32.mrf.mxu0
      %2119 = vdwg.mxu0
      %v2120 = vadd.f32 %v1951, %v2042
      %v2121 = vadd.f32 %v1952, %v2047
      %v2122 = vadd.f32 %v1953, %v2052
      %v2123 = vadd.f32 %v1954, %v2057
      %v2124 = vadd.f32 %v1955, %v2062
      %v2125 = vadd.f32 %v1956, %v2067
      %v2126 = vadd.f32 %v1957, %v2072
      %v2127 = vadd.f32 %v1958, %v2077
      %v2128 = vadd.f32 %v1959, %v2082
      %v2129 = vadd.f32 %v1960, %v2087
      %v2130 = vadd.f32 %v1961, %v2092
      %v2131 = vadd.f32 %v1962, %v2097
      %v2132 = vadd.f32 %v1963, %v2102
      %v2133 = vadd.f32 %v1964, %v2107
      %v2134 = vadd.f32 %v1965, %v2112
      %v2135 = vadd.f32 %v1966, %v2117
      %v2136 = vld [vmem:[%s317] sm:$0x1]
      %v2138 = vlaneseq
      %v2139 = vshrl.u32 %v2138, 7
      %v2140 = vsub.s32 0, %v2139
      %v2141 = vrot.slane %v2136, %v2140
      %v2143 = vmul.f32 %v2120, %v2141
      %v2144 = vmul.f32 %v2121, %v2141
      %v2145 = vmul.f32 %v2122, %v2141
      %v2146 = vmul.f32 %v2123, %v2141
      %v2147 = vmul.f32 %v2124, %v2141
      %v2148 = vmul.f32 %v2125, %v2141
      %v2149 = vmul.f32 %v2126, %v2141
      %v2150 = vmul.f32 %v2127, %v2141
      %v2151 = vmul.f32 %v2128, %v2141
      %v2152 = vmul.f32 %v2129, %v2141
      %v2153 = vmul.f32 %v2130, %v2141
      %v2154 = vmul.f32 %v2131, %v2141
      %v2155 = vmul.f32 %v2132, %v2141
      %v2156 = vmul.f32 %v2133, %v2141
      %v2157 = vmul.f32 %v2134, %v2141
      %v2158 = vmul.f32 %v2135, %v2141
      %v2159 = vld [vmem:[%s320] sm:$0x1]
      %v2161 = vlaneseq
      %v2162 = vshrl.u32 %v2161, 7
      %v2163 = vsub.s32 0, %v2162
      %v2164 = vrot.slane %v2159, %v2163
      %v2166 = vadd.f32 %v2143, %v2164
      %v2167 = vadd.f32 %v2144, %v2164
      %v2168 = vadd.f32 %v2145, %v2164
      %v2169 = vadd.f32 %v2146, %v2164
      %v2170 = vadd.f32 %v2147, %v2164
      %v2171 = vadd.f32 %v2148, %v2164
      %v2172 = vadd.f32 %v2149, %v2164
      %v2173 = vadd.f32 %v2150, %v2164
      %v2174 = vadd.f32 %v2151, %v2164
      %v2175 = vadd.f32 %v2152, %v2164
      %v2176 = vadd.f32 %v2153, %v2164
      %v2177 = vadd.f32 %v2154, %v2164
      %v2178 = vadd.f32 %v2155, %v2164
      %v2179 = vadd.f32 %v2156, %v2164
      %v2180 = vadd.f32 %v2157, %v2164
      %v2181 = vadd.f32 %v2158, %v2164
      %vm2182 = vcmp.ge.f32.partialorder %v2166, 0.0
      %vm2183 = vcmp.ge.f32.partialorder %v2167, 0.0
      %vm2184 = vcmp.ge.f32.partialorder %v2168, 0.0
      %vm2185 = vcmp.ge.f32.partialorder %v2169, 0.0
      %vm2186 = vcmp.ge.f32.partialorder %v2170, 0.0
      %vm2187 = vcmp.ge.f32.partialorder %v2171, 0.0
      %vm2188 = vcmp.ge.f32.partialorder %v2172, 0.0
      %vm2189 = vcmp.ge.f32.partialorder %v2173, 0.0
      %vm2190 = vcmp.ge.f32.partialorder %v2174, 0.0
      %vm2191 = vcmp.ge.f32.partialorder %v2175, 0.0
      %vm2192 = vcmp.ge.f32.partialorder %v2176, 0.0
      %vm2193 = vcmp.ge.f32.partialorder %v2177, 0.0
      %vm2194 = vcmp.ge.f32.partialorder %v2178, 0.0
      %vm2195 = vcmp.ge.f32.partialorder %v2179, 0.0
      %vm2196 = vcmp.ge.f32.partialorder %v2180, 0.0
      %vm2197 = vcmp.ge.f32.partialorder %v2181, 0.0
      %v2198 = vsel %vm2182, 1.4142135, 0.28284273
      %v2199 = vsel %vm2183, 1.4142135, 0.28284273
      %v2200 = vsel %vm2184, 1.4142135, 0.28284273
      %v2201 = vsel %vm2185, 1.4142135, 0.28284273
      %v2202 = vsel %vm2186, 1.4142135, 0.28284273
      %v2203 = vsel %vm2187, 1.4142135, 0.28284273
      %v2204 = vsel %vm2188, 1.4142135, 0.28284273
      %v2205 = vsel %vm2189, 1.4142135, 0.28284273
      %v2206 = vsel %vm2190, 1.4142135, 0.28284273
      %v2207 = vsel %vm2191, 1.4142135, 0.28284273
      %v2208 = vsel %vm2192, 1.4142135, 0.28284273
      %v2209 = vsel %vm2193, 1.4142135, 0.28284273
      %v2210 = vsel %vm2194, 1.4142135, 0.28284273
      %v2211 = vsel %vm2195, 1.4142135, 0.28284273
      %v2212 = vsel %vm2196, 1.4142135, 0.28284273
      %v2213 = vsel %vm2197, 1.4142135, 0.28284273
      %v2214 = vmul.f32 %v2166, %v2198
      %v2215 = vmul.f32 %v2167, %v2199
      %v2216 = vmul.f32 %v2168, %v2200
      %v2217 = vmul.f32 %v2169, %v2201
      %v2218 = vmul.f32 %v2170, %v2202
      %v2219 = vmul.f32 %v2171, %v2203
      %v2220 = vmul.f32 %v2172, %v2204
      %v2221 = vmul.f32 %v2173, %v2205
      %v2222 = vmul.f32 %v2174, %v2206
      %v2223 = vmul.f32 %v2175, %v2207
      %v2224 = vmul.f32 %v2176, %v2208
      %v2225 = vmul.f32 %v2177, %v2209
      %v2226 = vmul.f32 %v2178, %v2210
      %v2227 = vmul.f32 %v2179, %v2211
      %v2228 = vmul.f32 %v2180, %v2212
      %v2229 = vmul.f32 %v2181, %v2213
      %2230 = vst.msk [vmem:[%s333] sm:$0xff] %vm418, %v2214
      %2231 = vst.msk [vmem:[%s333 + $0x8] sm:$0xff] %vm418, %v2215
      %2232 = vst.msk [vmem:[%s333 + $0x10] sm:$0xff] %vm418, %v2216
      %2233 = vst.msk [vmem:[%s333 + $0x18] sm:$0xff] %vm418, %v2217
      %2234 = vst.msk [vmem:[%s333 + $0x20] sm:$0xff] %vm418, %v2218
      %2235 = vst.msk [vmem:[%s333 + $0x28] sm:$0xff] %vm418, %v2219
      %2236 = vst.msk [vmem:[%s333 + $0x30] sm:$0xff] %vm418, %v2220
      %2237 = vst.msk [vmem:[%s333 + $0x38] sm:$0xff] %vm418, %v2221
      %2238 = vst.msk [vmem:[%s333 + $0x40] sm:$0xff] %vm418, %v2222
      %2239 = vst.msk [vmem:[%s333 + $0x48] sm:$0xff] %vm418, %v2223
      %2240 = vst.msk [vmem:[%s333 + $0x50] sm:$0xff] %vm418, %v2224
      %2241 = vst.msk [vmem:[%s333 + $0x58] sm:$0xff] %vm418, %v2225
      %2242 = vst.msk [vmem:[%s333 + $0x60] sm:$0xff] %vm418, %v2226
      %2243 = vst.msk [vmem:[%s333 + $0x68] sm:$0xff] %vm418, %v2227
      %2244 = vst.msk [vmem:[%s333 + $0x70] sm:$0xff] %vm418, %v2228
      %2245 = vst.msk [vmem:[%s333 + $0x78] sm:$0xff] %vm418, %v2229
      %s2246 = smul.u32 8, %s23
      %p2247 = scmp.lt.s32.totalorder %s21, 1
      %s2248 = scalar_select %p2247, %s21, 1
      %p2249 = scmp.lt.s32.totalorder %s2246, 15
      %s2250 = scalar_select %p2249, %s2246, 15
      %p2251 = scmp.lt.s32.totalorder %s22, 0
      %s2252 = scalar_select %p2251, %s22, 0
      %s2253 = smul.addr %s2250, 2
      %s2254 = sadd.s32 %s2252, %s2253
      %s2255 = smul.addr %s2248, 32
      %s2256 = sadd.s32 %s2254, %s2255
      %s2257 = smul.addr %s2256, 8
      %s2258 = scalar_lea.vmem %s5, %s2257
      // Predicated region
      $region57: #{styled_conv_block.3} parent=39 // pred_check
        %p2259 = pneg %p189
      $region58: #{styled_conv_block.3} parent=39 // pred_check_branch
        %2261 = sbr.rel (%p2259) target = $region60
      $region59: #{styled_conv_block.3} parent=39 // pred_region
        %s2262 = smul.u32 8, %s23
      $region60: #{styled_conv_block.3} parent=39 // pred_fallthru
        _
    $region40: #{styled_conv_block.3} parent=5 // pred_fallthru
      _
    %p2263 = scmp.le.s32.totalorder 2, %s11
    // Predicated region
    $region61: #{styled_conv_block.3} parent=5 // pred_check
      %p2264 = pneg %p2263
    $region62: #{styled_conv_block.3} parent=5 // pred_check_branch
      %2266 = sbr.rel (%p2264) target = $region64
    $region63: #{styled_conv_block.3} parent=5 // pred_region
      %s2267 = ssub.s32 %s11, 2
      // Predicated region
      $region65: #{styled_conv_block.3} parent=63 // pred_check
        %p2268 = pneg %p195
      $region66: #{styled_conv_block.3} parent=63 // pred_check_branch
        %2270 = sbr.rel (%p2268) target = $region68
      $region67: #{styled_conv_block.3} parent=63 // pred_region
        %s2271 = smul.u32 8, %s26
        %p2272 = scmp.lt.s32.totalorder %s24, 1
        %s2273 = scalar_select %p2272, %s24, 1
        %p2274 = scmp.lt.s32.totalorder %s2271, 15
        %s2275 = scalar_select %p2274, %s2271, 15
        %p2276 = scmp.lt.s32.totalorder %s25, 0
        %s2277 = scalar_select %p2276, %s25, 0
        %s2278 = smul.addr %s2275, 2
        %s2279 = sadd.s32 %s2277, %s2278
        %s2280 = smul.addr %s2273, 32
        %s2281 = sadd.s32 %s2279, %s2280
        %s2282 = smul.addr %s2281, 8
        %s2283 = scalar_lea.vmem %s5, %s2282
      $region68: #{styled_conv_block.3} parent=63 // pred_fallthru
        _
    $region64: #{styled_conv_block.3} parent=5 // pred_fallthru
      _
  $region6: #{styled_conv_block.3} parent=0 // loop_footer
    %s15 = sadd.s32 1, %s11
  $region7: #{styled_conv_block.3} parent=0 // loop_footer_branch
    %10 = sbr.rel target = $region3
  $region8: #{styled_conv_block.3} parent=0 // loop_exit
    _

// kernel: styled_conv_block.2
$region0: #{styled_conv_block.2}
  #allocation0 [shape = 'u32[]', space=smem, size = 0x4, offset = 0x4, fixed_abs, tag = 'smem constant byte address 0x4 - core index']
  #allocation1 [shape = 'u32[144,128]{1,0:T(1,128)}', space=vmem, size = 0x12000, scoped, tag = 'internal scratch']
  #allocation2 [shape = 'f32[10,18,4]{2,1,0:T(8,128)}', space=vmem, size = 0x1e000, scoped, tag = 'scratch operand']
  %s0 = inlined_call_operand.vmem [shape: f32[2,16,16,4], index: 0, kind: input, shape index: {}]
  %s1 = inlined_call_operand.vmem [shape: f32[3,3,4,8], index: 1, kind: input, shape index: {}]
  %s2 = inlined_call_operand.vmem [shape: f32[2,1,4], index: 2, kind: input, shape index: {}]
  %s3 = inlined_call_operand.vmem [shape: f32[2,1,8], index: 3, kind: input, shape index: {}]
  %s4 = inlined_call_operand.vmem [shape: f32[1,1,8], index: 4, kind: input, shape index: {}]
  %s5 = inlined_call_operand.vmem [shape: f32[2,16,16,8], index: 5, kind: output, shape index: {}]
  %s6 = sld [smem:[#allocation0]]
  $region69: #{styled_conv_block.2} parent=0
    _
  %s8 = ssub.s32 1, %s6
  %s9 = scalar_select 0, %s8, %s6
  loop: start=0, step=1, limit=6
  $region2: #{styled_conv_block.2} parent=0 // loop_pre_header
    _
  $region3: #{styled_conv_block.2} parent=0 // loop_header
    %s11 = sphi 0, %s15
    %p12 = scmp.ge.s32.totalorder %s11, 6
    %s18 = sphi 0, %s37
    %s19 = sphi 0, %s33
    %s20 = sphi 0, %s29
    %s21 = sphi 0, %s18
    %s22 = sphi 0, %s19
    %s23 = sphi 0, %s20
    %s24 = sphi 0, %s21
    %s25 = sphi 0, %s22
    %s26 = sphi 0, %s23
    %s40 = sphi 0, %s42
    %s43 = sphi 0, %s40
    %s44 = sphi 0, %s43
    %s60 = sphi 0, %s44
    %s66 = sphi 0, %s68
    %s69 = sphi 0, %s66
    %s70 = sphi 0, %s69
    %s86 = sphi 0, %s70
    %s92 = sphi 0, %s94
    %s95 = sphi 0, %s92
    %s96 = sphi 0, %s95
    %s112 = sphi 0, %s96
    %s120 = sphi 0, %s122
    %s123 = sphi 0, %s120
    %s124 = sphi 0, %s123
    %s140 = sphi 0, %s124
    %s146 = sphi 0, %s148
    %s149 = sphi 0, %s146
    %s150 = sphi 0, %s149
    %s166 = sphi 0, %s150
    %s176 = sphi 0, %s178
    %s179 = sphi 0, %s176
    %s180 = sphi 0, %s179
    %s196 = sphi 0, %s180
  $region4: #{styled_conv_block.2} parent=0 // loop_header_branch
    %14 = sbr.rel (%p12) target = $region8
  $region5: #{styled_conv_block.2} parent=0 // loop_body
    %s16 = ssub.s32 %s11, 1
    %s17 = ssub.s32 %s11, 2
    %s27 = sadd.s32 1, %s20
    %p28 = scmp.ge.s32.totalorder %s27, 2
    %s29 = scalar_select %p28, 0, %s27
    %s30 = sadd.s32 1, %s19
    %s31 = scalar_select %p28, %s30, %s19
    %p32 = scmp.ge.s32.totalorder %s31, 1
    %s33 = scalar_select %p32, 0, %s31
    %s34 = sadd.s32 1, %s18
    %s35 = scalar_select %p32, %s34, %s18
    %p36 = scmp.ge.s32.totalorder %s35, 2
    %s37 = scalar_select %p36, 0, %s35
    %s38 = ssub.s32 %s18, %s37
    %p39 = scmp.eq.s32.totalorder %s38, 0
    %s41 = sadd.s32 %s40, 1
    %s42 = scalar_select %p39, %s40, %s41
    %p45 = pneg %p39
    %p46 = scmp.eq.s32.totalorder %s11, 3
    %p47 = por %p45, %p46
    %p48 = scmp.ne.s32.totalorder %s40, %s43
    %p49 = scmp.eq.s32.totalorder %s11, 0
    %p50 = por %p48, %p49
    %p51 = scmp.ne.s32.totalorder %s40, %s43
    %p52 = scmp.eq.s32.totalorder %s16, 3
    %p53 = por %p51, %p52
    %p54 = scmp.ne.s32.totalorder %s43, %s44
    %p55 = scmp.eq.s32.totalorder %s16, 0
    %p56 = por %p54, %p55
    %p57 = scmp.ne.s32.totalorder %s43, %s44
    %p58 = scmp.eq.s32.totalorder %s17, 3
    %p59 = por %p57, %p58
    %p61 = scmp.ne.s32.totalorder %s44, %s60
    %p62 = scmp.eq.s32.totalorder %s17, 0
    %p63 = por %p61, %p62
    %s64 = ssub.s32 %s19, %s33
    %p65 = scmp.eq.s32.totalorder %s64, 0
    %s67 = sadd.s32 %s66, 1
    %s68 = scalar_select %p65, %s66, %s67
    %p71 = pneg %p65
    %p72 = scmp.eq.s32.totalorder %s11, 3
    %p73 = por %p71, %p72
    %p74 = scmp.ne.s32.totalorder %s66, %s69
    %p75 = scmp.eq.s32.totalorder %s11, 0
    %p76 = por %p74, %p75
    %p77 = scmp.ne.s32.totalorder %s66, %s69
    %p78 = scmp.eq.s32.totalorder %s16, 3
    %p79 = por %p77, %p78
    %p80 = scmp.ne.s32.totalorder %s69, %s70
    %p81 = scmp.eq.s32.totalorder %s16, 0
    %p82 = por %p80, %p81
    %p83 = scmp.ne.s32.totalorder %s69, %s70
    %p84 = scmp.eq.s32.totalorder %s17, 3
    %p85 = por %p83, %p84
    %p87 = scmp.ne.s32.totalorder %s70, %s86
    %p88 = scmp.eq.s32.totalorder %s17, 0
    %p89 = por %p87, %p88
    %s90 = ssub.s32 %s18, %s37
    %p91 = scmp.eq.s32.totalorder %s90, 0
    %s93 = sadd.s32 %s92, 1
    %s94 = scalar_select %p91, %s92, %s93
    %p97 = pneg %p91
    %p98 = scmp.eq.s32.totalorder %s11, 3
    %p99 = por %p97, %p98
    %p100 = scmp.ne.s32.totalorder %s92, %s95
    %p101 = scmp.eq.s32.totalorder %s11, 0
    %p102 = por %p100, %p101
    %p103 = scmp.ne.s32.totalorder %s92, %s95
    %p104 = scmp.eq.s32.totalorder %s16, 3
    %p105 = por %p103, %p104
    %p106 = scmp.ne.s32.totalorder %s95, %s96
    %p107 = scmp.eq.s32.totalorder %s16, 0
    %p108 = por %p106, %p107
    %p109 = scmp.ne.s32.totalorder %s95, %s96
    %p110 = scmp.eq.s32.totalorder %s17, 3
    %p111 = por %p109, %p110
    %p113 = scmp.ne.s32.totalorder %s96, %s112
    %p114 = scmp.eq.s32.totalorder %s17, 0
    %p115 = por %p113, %p114
    %s116 = ssub.s32 %s18, %s37
    %s117 = ssub.s32 %s19, %s33
    %s118 = sor.u32 %s116, %s117
    %p119 = scmp.eq.s32.totalorder %s118, 0
    %s121 = sadd.s32 %s120, 1
    %s122 = scalar_select %p119, %s120, %s121
    %p125 = pneg %p119
    %p126 = scmp.eq.s32.totalorder %s11, 3
    %p127 = por %p125, %p126
    %p128 = scmp.ne.s32.totalorder %s120, %s123
    %p129 = scmp.eq.s32.totalorder %s11, 0
    %p130 = por %p128, %p129
    %p131 = scmp.ne.s32.totalorder %s120, %s123
    %p132 = scmp.eq.s32.totalorder %s16, 3
    %p133 = por %p131, %p132
    %p134 = scmp.ne.s32.totalorder %s123, %s124
    %p135 = scmp.eq.s32.totalorder %s16, 0
    %p136 = por %p134, %p135
    %p137 = scmp.ne.s32.totalorder %s123, %s124
    %p138 = scmp.eq.s32.totalorder %s17, 3
    %p139 = por %p137, %p138
    %p141 = scmp.ne.s32.totalorder %s124, %s140
    %p142 = scmp.eq.s32.totalorder %s17, 0
    %p143 = por %p141, %p142
    %s144 = ssub.s32 %s19, %s33
    %p145 = scmp.eq.s32.totalorder %s144, 0
    %s147 = sadd.s32 %s146, 1
    %s148 = scalar_select %p145, %s146, %s147
    %p151 = pneg %p145
    %p152 = scmp.eq.s32.totalorder %s11, 3
    %p153 = por %p151, %p152
    %p154 = scmp.ne.s32.totalorder %s146, %s149
    %p155 = scmp.eq.s32.totalorder %s11, 0
    %p156 = por %p154, %p155
    %p157 = scmp.ne.s32.totalorder %s146, %s149
    %p158 = scmp.eq.s32.totalorder %s16, 3
    %p159 = por %p157, %p158
    %p160 = scmp.ne.s32.totalorder %s149, %s150
    %p161 = scmp.eq.s32.totalorder %s16, 0
    %p162 = por %p160, %p161
    %p163 = scmp.ne.s32.totalorder %s149, %s150
    %p164 = scmp.eq.s32.totalorder %s17, 3
    %p165 = por %p163, %p164
    %p167 = scmp.ne.s32.totalorder %s150, %s166
    %p168 = scmp.eq.s32.totalorder %s17, 0
    %p169 = por %p167, %p168
    %s170 = ssub.s32 %s18, %s37
    %s171 = ssub.s32 %s20, %s29
    %s172 = sor.u32 %s170, %s171
    %s173 = ssub.s32 %s19, %s33
    %s174 = sor.u32 %s172, %s173
    %p175 = scmp.eq.s32.totalorder %s174, 0
    %s177 = sadd.s32 %s176, 1
    %s178 = scalar_select %p175, %s176, %s177
    %p181 = pneg %p175
    %p182 = scmp.eq.s32.totalorder %s11, 3
    %p183 = por %p181, %p182
    %p184 = scmp.ne.s32.totalorder %s176, %s179
    %p185 = scmp.eq.s32.totalorder %s11, 0
    %p186 = por %p184, %p185
    %p187 = scmp.ne.s32.totalorder %s176, %s179
    %p188 = scmp.eq.s32.totalorder %s16, 3
    %p189 = por %p187, %p188
    %p190 = scmp.ne.s32.totalorder %s179, %s180
    %p191 = scmp.eq.s32.totalorder %s16, 0
    %p192 = por %p190, %p191
    %p193 = scmp.ne.s32.totalorder %s179, %s180
    %p194 = scmp.eq.s32.totalorder %s17, 3
    %p195 = por %p193, %p194
    %p197 = scmp.ne.s32.totalorder %s180, %s196
    %p198 = scmp.eq.s32.totalorder %s17, 0
    %p199 = por %p197, %p198
    %p200 = scmp.le.s32.totalorder 1, %s11
    %p201 = scmp.lt.s32.totalorder %s11, 5
    %p202 = pnand %p200, %p201
    %p203 = pneg %p202
    // Predicated region
    $region9: #{styled_conv_block.2} parent=5 // pred_check
      _
    $region10: #{styled_conv_block.2} parent=5 // pred_check_branch
      %205 = sbr.rel (%p202) target = $region12
    $region11: #{styled_conv_block.2} parent=5 // pred_region
      %s206 = ssub.s32 %s11, 1
      // Predicated region
      $region13: #{styled_conv_block.2} parent=11 // pred_check
        %p207 = pneg %p82
      $region14: #{styled_conv_block.2} parent=11 // pred_check_branch
        %209 = sbr.rel (%p207) target = $region16
      $region15: #{styled_conv_block.2} parent=11 // pred_region
        %p210 = scmp.lt.s32.totalorder %s22, 0
        %s211 = scalar_select %p210, %s22, 0
        %s212 = smul.addr %s211, 4
        %s213 = scalar_lea.vmem %s1, %s212
      $region16: #{styled_conv_block.2} parent=11 // pred_fallthru
        _
      // Predicated region
      $region17: #{styled_conv_block.2} parent=11 // pred_check
        %p214 = pneg %p162
      $region18: #{styled_conv_block.2} parent=11 // pred_check_branch
        %216 = sbr.rel (%p214) target = $region20
      $region19: #{styled_conv_block.2} parent=11 // pred_region
        %p217 = scmp.lt.s32.totalorder %s22, 0
        %s218 = scalar_select %p217, %s22, 0
        %s219 = scalar_lea.vmem %s4, %s218
      $region20: #{styled_conv_block.2} parent=11 // pred_fallthru
        _
    $region12: #{styled_conv_block.2} parent=5 // pred_fallthru
      _
    %p220 = scmp.lt.s32.totalorder %s11, 4
    // Predicated region
    $region21: #{styled_conv_block.2} parent=5 // pred_check
      %p221 = pneg %p220
    $region22: #{styled_conv_block.2} parent=5 // pred_check_branch
      %223 = sbr.rel (%p221) target = $region24
    $region23: #{styled_conv_block.2} parent=5 // pred_region
      // Predicated region
      $region25: #{styled_conv_block.2} parent=23 // pred_check
        %p224 = pneg %p50
      $region26: #{styled_conv_block.2} parent=23 // pred_check_branch
        %226 = sbr.rel (%p224) target = $region28
      $region27: #{styled_conv_block.2} parent=23 // pred_region
        %p227 = scmp.lt.s32.totalorder %s18, 1
        %s228 = scalar_select %p227, %s18, 1
        %s229 = smul.addr %s228, 32
        %s230 = smul.addr %s229, 8
        %s231 = scalar_lea.vmem %s0, %s230
      $region28: #{styled_conv_block.2} parent=23 // pred_fallthru
        _
      // Predicated region
      $region29: #{styled_conv_block.2} parent=23 // pred_check
        %p232 = pneg %p102
      $region30: #{styled_conv_block.2} parent=23 // pred_check_branch
        %234 = sbr.rel (%p232) target = $region32
      $region31: #{styled_conv_block.2} parent=23 // pred_region
        %p235 = scmp.lt.s32.totalorder %s18, 1
        %s236 = scalar_select %p235, %s18, 1
        %s237 = scalar_lea.vmem %s2, %s236
      $region32: #{styled_conv_block.2} parent=23 // pred_fallthru
        _
      // Predicated region
      $region33: #{styled_conv_block.2} parent=23 // pred_check
        %p238 = pneg %p130
      $region34: #{styled_conv_block.2} parent=23 // pred_check_branch
        %240 = sbr.rel (%p238) target = $region36
      $region35: #{styled_conv_block.2} parent=23 // pred_region
        %p241 = scmp.lt.s32.totalorder %s18, 1
        %s242 = scalar_select %p241, %s18, 1
        %p243 = scmp.lt.s32.totalorder %s19, 0
        %s244 = scalar_select %p243, %s19, 0
        %s245 = sadd.s32 %s244, %s242
        %s246 = scalar_lea.vmem %s3, %s245
      $region36: #{styled_conv_block.2} parent=23 // pred_fallthru
        _
    $region24: #{styled_conv_block.2} parent=5 // pred_fallthru
      _
    %p247 = scmp.le.s32.totalorder 1, %s11
    %p248 = scmp.lt.s32.totalorder %s11, 5
    %p249 = pnand %p247, %p248
    %p250 = pneg %p249
    // Predicated region
    $region37: #{styled_conv_block.2} parent=5 // pred_check
      _
    $region38: #{styled_conv_block.2} parent=5 // pred_check_branch
      %252 = sbr.rel (%p249) target = $region40
    $region39: #{styled_conv_block.2} parent=5 // pred_region
      %s253 = ssub.s32 %s11, 1
      %p254 = scmp.lt.s32.totalorder %s21, 1
      %s255 = scalar_select %p254, %s21, 1
      %s256 = smul.addr %s255, 32
      %s257 = smul.addr %s256, 8
      %s258 = scalar_lea.vmem %s0, %s257
      %p259 = pneg %p56
      %p260 = pneg %p53
      %p261 = scmp.lt.s32.totalorder %s22, 0
      %s262 = scalar_select %p261, %s22, 0
      %s263 = smul.addr %s262, 4
      %s264 = scalar_lea.vmem %s1, %s263
      %p265 = pneg %p82
      %p266 = pneg %p79
      %p267 = scmp.lt.s32.totalorder %s21, 1
      %s268 = scalar_select %p267, %s21, 1
      %s269 = scalar_lea.vmem %s2, %s268
      %p270 = pneg %p108
      %p271 = pneg %p105
      %p272 = scmp.lt.s32.totalorder %s21, 1
      %s273 = scalar_select %p272, %s21, 1
      %p274 = scmp.lt.s32.totalorder %s22, 0
      %s275 = scalar_select %p274, %s22, 0
      %s276 = sadd.s32 %s275, %s273
      %s277 = scalar_lea.vmem %s3, %s276
      %p278 = pneg %p136
      %p279 = pneg %p133
      %p280 = scmp.lt.s32.totalorder %s22, 0
      %s281 = scalar_select %p280, %s22, 0
      %s282 = scalar_lea.vmem %s4, %s281
      %p283 = pneg %p162
      %p284 = pneg %p159
      %p285 = pneg %p192
      %p286 = pneg %p189
      %s287 = smul.u32 8, %s23
      %p288 = scmp.lt.s32.totalorder %s21, 1
      %s289 = scalar_select %p288, %s21, 1
      %p290 = scmp.lt.s32.totalorder %s287, 15
      %s291 = scalar_select %p290, %s287, 15
      %p292 = scmp.lt.s32.totalorder %s22, 0
      %s293 = scalar_select %p292, %s22, 0
      %s294 = smul.addr %s291, 2
      %s295 = sadd.s32 %s293, %s294
      %s296 = smul.addr %s289, 32
      %s297 = sadd.s32 %s295, %s296
      %s298 = smul.addr %s297, 8
      %s299 = scalar_lea.vmem %s5, %s298
      %p300 = scmp.lt.s32.totalorder %s21, 1
      %s301 = scalar_select %p300, %s21, 1
      %s302 = smul.addr %s301, 32
      %s303 = smul.addr %s302, 8
      %s304 = scalar_lea.vmem %s0, %s303
      %p305 = scmp.lt.s32.totalorder %s22, 0
      %s306 = scalar_select %p305, %s22, 0
      %s307 = smul.addr %s306, 4
      %s308 = scalar_lea.vmem %s1, %s307
      %p309 = scmp.lt.s32.totalorder %s21, 1
      %s310 = scalar_select %p309, %s21, 1
      %s311 = scalar_lea.vmem %s2, %s310
      %p312 = scmp.lt.s32.totalorder %s21, 1
      %s313 = scalar_select %p312, %s21, 1
      %p314 = scmp.lt.s32.totalorder %s22, 0
      %s315 = scalar_select %p314, %s22, 0
      %s316 = sadd.s32 %s315, %s313
      %s317 = scalar_lea.vmem %s3, %s316
      %p318 = scmp.lt.s32.totalorder %s22, 0
      %s319 = scalar_select %p318, %s22, 0
      %s320 = scalar_lea.vmem %s4, %s319
      %s321 = smul.u32 8, %s23
      %p322 = scmp.lt.s32.totalorder %s21, 1
      %s323 = scalar_select %p322, %s21, 1
      %p324 = scmp.lt.s32.totalorder %s321, 15
      %s325 = scalar_select %p324, %s321, 15
      %p326 = scmp.lt.s32.totalorder %s22, 0
      %s327 = scalar_select %p326, %s22, 0
      %s328 = smul.addr %s325, 2
      %s329 = sadd.s32 %s327, %s328
      %s330 = smul.addr %s323, 32
      %s331 = sadd.s32 %s329, %s330
      %s332 = smul.addr %s331, 8
      %s333 = scalar_lea.vmem %s5, %s332
      %s334 = smul.u32 8, %s23
      %s335 = smul.u32 %s23, 8
      %v336 = vld [vmem:[%s311] sm:$0x1]
      %vm337 = vcmask 24576
      %338 = vst.msk [vmem:[#allocation2] sm:$0x1] %vm337, 0.0
      %339 = vst.msk [vmem:[#allocation2 + $0x18] sm:$0x1] %vm337, 0.0
      %340 = vst.msk [vmem:[#allocation2 + $0x30] sm:$0x1] %vm337, 0.0
      %341 = vst.msk [vmem:[#allocation2 + $0x48] sm:$0x1] %vm337, 0.0
      %342 = vst.msk [vmem:[#allocation2 + $0x60] sm:$0x1] %vm337, 0.0
      %343 = vst.msk [vmem:[#allocation2 + $0x78] sm:$0x1] %vm337, 0.0
      %344 = vst.msk [vmem:[#allocation2 + $0x90] sm:$0x1] %vm337, 0.0
      %345 = vst.msk [vmem:[#allocation2 + $0xa8] sm:$0x1] %vm337, 0.0
      %346 = vst.msk [vmem:[#allocation2 + $0xc0] sm:$0x1] %vm337, 0.0
      %347 = vst.msk [vmem:[#allocation2 + $0xd8] sm:$0x1] %vm337, 0.0
      %348 = vst.msk [vmem:[#allocation2 + $0x11] sm:$0x1] %vm337, 0.0
      %349 = vst.msk [vmem:[#allocation2 + $0x29] sm:$0x1] %vm337, 0.0
      %350 = vst.msk [vmem:[#allocation2 + $0x41] sm:$0x1] %vm337, 0.0
      %351 = vst.msk [vmem:[#allocation2 + $0x59] sm:$0x1] %vm337, 0.0
      %352 = vst.msk [vmem:[#allocation2 + $0x71] sm:$0x1] %vm337, 0.0
      %353 = vst.msk [vmem:[#allocation2 + $0x89] sm:$0x1] %vm337, 0.0
      %354 = vst.msk [vmem:[#allocation2 + $0xa1] sm:$0x1] %vm337, 0.0
      %355 = vst.msk [vmem:[#allocation2 + $0xb9] sm:$0x1] %vm337, 0.0
      %356 = vst.msk [vmem:[#allocation2 + $0xd1] sm:$0x1] %vm337, 0.0
      %357 = vst.msk [vmem:[#allocation2 + $0xe9] sm:$0x1] %vm337, 0.0
      %p358 = scmp.eq.s32.totalorder %s23, 0
      // Predicated region
      $region41: #{styled_conv_block.2} parent=39 // pred_check
        %p359 = pneg %p358
      $region42: #{styled_conv_block.2} parent=39 // pred_check_branch
        %361 = sbr.rel (%p359) target = $region44
      $region43: #{styled_conv_block.2} parent=39 // pred_region
        %vm362 = vcmask 31744
        %363 = vst.msk [vmem:[#allocation2] sm:$0xff] %vm362, 0.0
        %364 = vst.msk [vmem:[#allocation2 + $0x8] sm:$0xff] %vm362, 0.0
        %vm365 = vcmask 25600
        %366 = vst.msk [vmem:[#allocation2 + $0x10] sm:$0x3] %vm365, 0.0
      $region44: #{styled_conv_block.2} parent=39 // pred_fallthru
        _
      %p367 = scmp.eq.s32.totalorder %s23, 1
      // Predicated region
      $region45: #{styled_conv_block.2} parent=39 // pred_check
        %p368 = pneg %p367
      $region46: #{styled_conv_block.2} parent=39 // pred_check_branch
        %370 = sbr.rel (%p368) target = $region48
      $region47: #{styled_conv_block.2} parent=39 // pred_region
        %s371 = scalar_lea.vmem [#allocation2], 216
        %vm372 = vcmask 31744
        %373 = vst.msk [vmem:[%s371] sm:$0xff] %vm372, 0.0
        %374 = vst.msk [vmem:[%s371 + $0x8] sm:$0xff] %vm372, 0.0
        %vm375 = vcmask 25600
        %376 = vst.msk [vmem:[%s371 + $0x10] sm:$0x3] %vm375, 0.0
      $region48: #{styled_conv_block.2} parent=39 // pred_fallthru
        _
      %s377 = smul.u32 %s335, 16
      %s378 = scalar_lea.vmem %s304, %s377
      %v379 = vld [vmem:[%s378] sm:$0xff]
      %v380 = vld [vmem:[%s378 + $0x8] sm:$0xff]
      %v381 = vld [vmem:[%s378 + $0x10] sm:$0xff]
      %v382 = vld [vmem:[%s378 + $0x18] sm:$0xff]
      %v383 = vld [vmem:[%s378 + $0x20] sm:$0xff]
      %v384 = vld [vmem:[%s378 + $0x28] sm:$0xff]
      %v385 = vld [vmem:[%s378 + $0x30] sm:$0xff]
      %v386 = vld [vmem:[%s378 + $0x38] sm:$0xff]
      %v387 = vld [vmem:[%s378 + $0x40] sm:$0xff]
      %v388 = vld [vmem:[%s378 + $0x48] sm:$0xff]
      %v389 = vld [vmem:[%s378 + $0x50] sm:$0xff]
      %v390 = vld [vmem:[%s378 + $0x58] sm:$0xff]
      %v391 = vld [vmem:[%s378 + $0x60] sm:$0xff]
      %v392 = vld [vmem:[%s378 + $0x68] sm:$0xff]
      %v393 = vld [vmem:[%s378 + $0x70] sm:$0xff]
      %v394 = vld [vmem:[%s378 + $0x78] sm:$0xff]
      %v396 = vlaneseq
      %v397 = vshrl.u32 %v396, 7
      %v398 = vsub.s32 0, %v397
      %v399 = vrot.slane %v336, %v398
      %v401 = vmul.f32 %v379, %v399
      %v402 = vmul.f32 %v380, %v399
      %v403 = vmul.f32 %v381, %v399
      %v404 = vmul.f32 %v382, %v399
      %v405 = vmul.f32 %v383, %v399
      %v406 = vmul.f32 %v384, %v399
      %v407 = vmul.f32 %v385, %v399
      %v408 = vmul.f32 %v386, %v399
      %v409 = vmul.f32 %v387, %v399
      %v410 = vmul.f32 %v388, %v399
      %v411 = vmul.f32 %v389, %v399
      %v412 = vmul.f32 %v390, %v399
      %v413 = vmul.f32 %v391, %v399
      %v414 = vmul.f32 %v392, %v399
      %v415 = vmul.f32 %v393, %v399
      %v416 = vmul.f32 %v394, %v399
      %s417 = scalar_lea.vmem [#allocation2], 24
      %vm418 = vcmask 31744
      %419 = vst.msk [vmem:[%s417 + $0x1] sm:$0xff] %vm418, %v401
      %420 = vst.msk [vmem:[%s417 + $0x9] sm:$0xff] %vm418, %v402
      %421 = vst.msk [vmem:[%s417 + $0x19] sm:$0xff] %vm418, %v403
      %422 = vst.msk [vmem:[%s417 + $0x21] sm:$0xff] %vm418, %v404
      %423 = vst.msk [vmem:[%s417 + $0x31] sm:$0xff] %vm418, %v405
      %424 = vst.msk [vmem:[%s417 + $0x39] sm:$0xff] %vm418, %v406
      %425 = vst.msk [vmem:[%s417 + $0x49] sm:$0xff] %vm418, %v407
      %426 = vst.msk [vmem:[%s417 + $0x51] sm:$0xff] %vm418, %v408
      %427 = vst.msk [vmem:[%s417 + $0x61] sm:$0xff] %vm418, %v409
      %428 = vst.msk [vmem:[%s417 + $0x69] sm:$0xff] %vm418, %v410
      %429 = vst.msk [vmem:[%s417 + $0x79] sm:$0xff] %vm418, %v411
      %430 = vst.msk [vmem:[%s417 + $0x81] sm:$0xff] %vm418, %v412
      %431 = vst.msk [vmem:[%s417 + $0x91] sm:$0xff] %vm418, %v413
      %432 = vst.msk [vmem:[%s417 + $0x99] sm:$0xff] %vm418, %v414
      %433 = vst.msk [vmem:[%s417 + $0xa9] sm:$0xff] %vm418, %v415
      %434 = vst.msk [vmem:[%s417 + $0xb1] sm:$0xff] %vm418, %v416
      %p435 = scmp.gt.s32.totalorder %s23, 0
      // Predicated region
      $region49: #{styled_conv_block.2} parent=39 // pred_check
        %p436 = pneg %p435
      $region50: #{styled_conv_block.2} parent=39 // pred_check_branch
        %438 = sbr.rel (%p436) target = $region52
      $region51: #{styled_conv_block.2} parent=39 // pred_region
        %s439 = ssub.s32 %s335, 1
        %s440 = smul.u32 %s439, 16
        %s441 = scalar_lea.vmem %s304, %s440
        %v442 = vld [vmem:[%s441] sm:$0xff]
        %v443 = vld [vmem:[%s441 + $0x8] sm:$0xff]
        %v444 = vmul.f32 %v442, %v399
        %v445 = vmul.f32 %v443, %v399
        %446 = vst.msk [vmem:[#allocation2 + $0x1] sm:$0xff] %vm418, %v444
        %447 = vst.msk [vmem:[#allocation2 + $0x9] sm:$0xff] %vm418, %v445
      $region52: #{styled_conv_block.2} parent=39 // pred_fallthru
        _
      %p448 = scmp.lt.s32.totalorder %s23, 1
      // Predicated region
      $region53: #{styled_conv_block.2} parent=39 // pred_check
        %p449 = pneg %p448
      $region54: #{styled_conv_block.2} parent=39 // pred_check_branch
        %451 = sbr.rel (%p449) target = $region56
      $region55: #{styled_conv_block.2} parent=39 // pred_region
        %s452 = sadd.s32 %s335, 8
        %s453 = smul.u32 %s452, 16
        %s454 = scalar_lea.vmem %s304, %s453
        %v455 = vld [vmem:[%s454] sm:$0xff]
        %v456 = vld [vmem:[%s454 + $0x8] sm:$0xff]
        %v457 = vmul.f32 %v455, %v399
        %v458 = vmul.f32 %v456, %v399
        %s459 = scalar_lea.vmem [#allocation2], 216
        %460 = vst.msk [vmem:[%s459 + $0x1] sm:$0xff] %vm418, %v457
        %461 = vst.msk [vmem:[%s459 + $0x9] sm:$0xff] %vm418, %v458
      $region56: #{styled_conv_block.2} parent=39 // pred_fallthru
        _
      %v462 = vld [vmem:[#allocation2] sm:$0xff]
      %v463 = vld [vmem:[#allocation2 + $0x8] sm:$0xff]
      %v464 = vld [vmem:[#allocation2 + $0x18] sm:$0xff]
      %v465 = vld [vmem:[#allocation2 + $0x20] sm:$0xff]
      %v466 = vld [vmem:[#allocation2 + $0x30] sm:$0xff]
      %v467 = vld [vmem:[#allocation2 + $0x38] sm:$0xff]
      %v468 = vld [vmem:[#allocation2 + $0x48] sm:$0xff]
      %v469 = vld [vmem:[#allocation2 + $0x50] sm:$0xff]
      %v470 = vld [vmem:[#allocation2 + $0x60] sm:$0xff]
      %v471 = vld [vmem:[#allocation2 + $0x68] sm:$0xff]
      %v472 = vld [vmem:[#allocation2 + $0x78] sm:$0xff]
      %v473 = vld [vmem:[#allocation2 + $0x80] sm:$0xff]
      %v474 = vld [vmem:[#allocation2 + $0x90] sm:$0xff]
      %v475 = vld [vmem:[#allocation2 + $0x98] sm:$0xff]
      %v476 = vld [vmem:[#allocation2 + $0xa8] sm:$0xff]
      %v477 = vld [vmem:[#allocation2 + $0xb0] sm:$0xff]
      %v478 = vld [vmem:[#allocation2 + $0xc0] sm:$0xff]
      %v479 = vld [vmem:[#allocation2 + $0xc8] sm:$0xff]
      %v480 = vld [vmem:[#allocation2 + $0xd8] sm:$0xff]
      %v481 = vld [vmem:[#allocation2 + $0xe0] sm:$0xff]
      %v482 = vld [vmem:[%s308] sm:$0xf]
      %s483 = scalar_lea.vmem %s308, 12
      %v484 = vld [vmem:[%s483] sm:$0xf]
      %v486 = vsel %vm418, %v464, 0
      %v489 = vsel %vm418, %v465, 0
      %v492 = vsel %vm418, %v466, 0
      %v495 = vsel %vm418, %v467, 0
      %v498 = vsel %vm418, %v468, 0
      %v501 = vsel %vm418, %v469, 0
      %v504 = vsel %vm418, %v470, 0
      %v507 = vsel %vm418, %v471, 0
      %v510 = vsel %vm418, %v472, 0
      %v513 = vsel %vm418, %v473, 0
      %v516 = vsel %vm418, %v474, 0
      %v519 = vsel %vm418, %v475, 0
      %v522 = vsel %vm418, %v476, 0
      %v525 = vsel %vm418, %v477, 0
      %v528 = vsel %vm418, %v478, 0
      %v531 = vsel %vm418, %v479, 0
      %vm533 = vcmask 1043456
      %v535 = vsel %vm533, %v484, 0
      %537 = vmatprep.subr.mxu0 0.0
      %538 = vmatpush1.msra.mxu0 0.0
      %539 = vmatprep.subr.mxu0 0.0
      %540 = vmatpush1.msra.mxu0 0.0
      %541 = vmatprep.subr.mxu0 0.0
      %542 = vmatpush1.msra.mxu0 0.0
      %543 = vmatprep.subr.mxu0 0.0
      %544 = vmatpush1.msra.mxu0 0.0
      %545 = vmatprep.subr.mxu0 0.0
      %546 = vmatpush1.msra.mxu0 0.0
      %547 = vmatprep.subr.mxu0 0.0
      %548 = vmatpush1.msra.mxu0 0.0
      %549 = vmatprep.subr.mxu0 0.0
      %550 = vmatpush1.msra.mxu0 0.0
      %551 = vmatprep.subr.mxu0 0.0
      %552 = vmatpush1.msra.mxu0 0.0
      %553 = vmatprep.subr.mxu0 0.0
      %554 = vmatpush1.msra.mxu0 0.0
      %555 = vmatprep.subr.mxu0 0.0
      %556 = vmatpush1.msra.mxu0 0.0
      %557 = vmatprep.subr.mxu0 0.0
      %558 = vmatpush1.msra.mxu0 0.0
      %559 = vmatprep.subr.mxu0 0.0
      %560 = vmatpush1.msra.mxu0 0.0
      %561 = vmatprep.subr.mxu0 0.0
      %562 = vmatpush1.msra.mxu0 0.0
      %563 = vmatprep.subr.mxu0 0.0
      %564 = vmatpush1.msra.mxu0 0.0
      %565 = vmatprep.subr.mxu0 0.0
      %566 = vmatpush1.msra.mxu0 0.0
      %567 = vmatprep.subr.mxu0 0.0
      %568 = vmatpush1.msra.mxu0 %v535
      %569 = vmatprep.subr.mxu0 0.0
      %570 = vmatpush2.msra.mxu0 0.0
      %571 = vmatprep.subr.mxu0 0.0
      %572 = vmatpush2.msra.mxu0 0.0
      %573 = vmatprep.subr.mxu0 0.0
      %574 = vmatpush2.msra.mxu0 0.0
      %575 = vmatprep.subr.mxu0 0.0
      %576 = vmatpush2.msra.mxu0 0.0
      %577 = vmatprep.subr.mxu0 0.0
      %578 = vmatpush2.msra.mxu0 0.0
      %579 = vmatprep.subr.mxu0 0.0
      %580 = vmatpush2.msra.mxu0 0.0
      %581 = vmatprep.subr.mxu0 0.0
      %582 = vmatpush2.msra.mxu0 0.0
      %583 = vmatprep.subr.mxu0 0.0
      %584 = vmatpush2.msra.mxu0 0.0
      %585 = vmatprep.subr.mxu0 0.0
      %586 = vmatpush2.msra.mxu0 0.0
      %587 = vmatprep.subr.mxu0 0.0
      %588 = vmatpush2.msra.mxu0 0.0
      %589 = vmatprep.subr.mxu0 0.0
      %590 = vmatpush2.msra.mxu0 0.0
      %591 = vmatprep.subr.mxu0 0.0
      %592 = vmatpush2.msra.mxu0 0.0
      %593 = vmatprep.subr.mxu0 0.0
      %594 = vmatpush2.msra.mxu0 0.0
      %595 = vmatprep.subr.mxu0 0.0
      %596 = vmatpush2.msra.mxu0 0.0
      %597 = vmatprep.subr.mxu0 0.0
      %598 = vmatpush2.msra.mxu0 0.0
      %599 = vmatprep.subr.mxu0 0.0
      %600 = vmatpush2.msra.mxu0 0.0
      %601 = vmatprep.mubr.f32.mxu0 0.0
      %602 = vmatmul.mubr.f32.gmra.mxu0 %v486
      %v603 = vpop.f32.mrf.mxu0
      %v604 = vadd.f32 0.0, %v603
      %v605 = vpop.f32.mrf.mxu0
      %606 = vmatprep.mubr.f32.mxu0 0.0
      %607 = vmatmul.mubr.f32.gmra.mxu0 %v489
      %v608 = vpop.f32.mrf.mxu0
      %v609 = vadd.f32 0.0, %v608
      %v610 = vpop.f32.mrf.mxu0
      %611 = vmatprep.mubr.f32.mxu0 0.0
      %612 = vmatmul.mubr.f32.gmra.mxu0 %v492
      %v613 = vpop.f32.mrf.mxu0
      %v614 = vadd.f32 0.0, %v613
      %v615 = vpop.f32.mrf.mxu0
      %616 = vmatprep.mubr.f32.mxu0 0.0
      %617 = vmatmul.mubr.f32.gmra.mxu0 %v495
      %v618 = vpop.f32.mrf.mxu0
      %v619 = vadd.f32 0.0, %v618
      %v620 = vpop.f32.mrf.mxu0
      %621 = vmatprep.mubr.f32.mxu0 0.0
      %622 = vmatmul.mubr.f32.gmra.mxu0 %v498
      %v623 = vpop.f32.mrf.mxu0
      %v624 = vadd.f32 0.0, %v623
      %v625 = vpop.f32.mrf.mxu0
      %626 = vmatprep.mubr.f32.mxu0 0.0
      %627 = vmatmul.mubr.f32.gmra.mxu0 %v501
      %v628 = vpop.f32.mrf.mxu0
      %v629 = vadd.f32 0.0, %v628
      %v630 = vpop.f32.mrf.mxu0
      %631 = vmatprep.mubr.f32.mxu0 0.0
      %632 = vmatmul.mubr.f32.gmra.mxu0 %v504
      %v633 = vpop.f32.mrf.mxu0
      %v634 = vadd.f32 0.0, %v633
      %v635 = vpop.f32.mrf.mxu0
      %636 = vmatprep.mubr.f32.mxu0 0.0
      %637 = vmatmul.mubr.f32.gmra.mxu0 %v507
      %v638 = vpop.f32.mrf.mxu0
      %v639 = vadd.f32 0.0, %v638
      %v640 = vpop.f32.mrf.mxu0
      %641 = vmatprep.mubr.f32.mxu0 0.0
      %642 = vmatmul.mubr.f32.gmra.mxu0 %v510
      %v643 = vpop.f32.mrf.mxu0
      %v644 = vadd.f32 0.0, %v643
      %v645 = vpop.f32.mrf.mxu0
      %646 = vmatprep.mubr.f32.mxu0 0.0
      %647 = vmatmul.mubr.f32.gmra.mxu0 %v513
      %v648 = vpop.f32.mrf.mxu0
      %v649 = vadd.f32 0.0, %v648
      %v650 = vpop.f32.mrf.mxu0
      %651 = vmatprep.mubr.f32.mxu0 0.0
      %652 = vmatmul.mubr.f32.gmra.mxu0 %v516
      %v653 = vpop.f32.mrf.mxu0
      %v654 = vadd.f32 0.0, %v653
      %v655 = vpop.f32.mrf.mxu0
      %656 = vmatprep.mubr.f32.mxu0 0.0
      %657 = vmatmul.mubr.f32.gmra.mxu0 %v519
      %v658 = vpop.f32.mrf.mxu0
      %v659 = vadd.f32 0.0, %v658
      %v660 = vpop.f32.mrf.mxu0
      %661 = vmatprep.mubr.f32.mxu0 0.0
      %662 = vmatmul.mubr.f32.gmra.mxu0 %v522
      %v663 = vpop.f32.mrf.mxu0
      %v664 = vadd.f32 0.0, %v663
      %v665 = vpop.f32.mrf.mxu0
      %666 = vmatprep.mubr.f32.mxu0 0.0
      %667 = vmatmul.mubr.f32.gmra.mxu0 %v525
      %v668 = vpop.f32.mrf.mxu0
      %v669 = vadd.f32 0.0, %v668
      %v670 = vpop.f32.mrf.mxu0
      %671 = vmatprep.mubr.f32.mxu0 0.0
      %672 = vmatmul.mubr.f32.gmra.mxu0 %v528
      %v673 = vpop.f32.mrf.mxu0
      %v674 = vadd.f32 0.0, %v673
      %v675 = vpop.f32.mrf.mxu0
      %676 = vmatprep.mubr.f32.mxu0 0.0
      %677 = vmatmul.mubr.f32.gmra.mxu0 %v531
      %v678 = vpop.f32.mrf.mxu0
      %v679 = vadd.f32 0.0, %v678
      %v680 = vpop.f32.mrf.mxu0
      %681 = vdwg.mxu0
      %v683 = vsel %vm418, %v462, 0
      %v686 = vsel %vm418, %v463, 0
      %v689 = vsel %vm533, %v482, 0
      %691 = vmatprep.subr.mxu0 0.0
      %692 = vmatpush1.msra.mxu0 0.0
      %693 = vmatprep.subr.mxu0 0.0
      %694 = vmatpush1.msra.mxu0 0.0
      %695 = vmatprep.subr.mxu0 0.0
      %696 = vmatpush1.msra.mxu0 0.0
      %697 = vmatprep.subr.mxu0 0.0
      %698 = vmatpush1.msra.mxu0 0.0
      %699 = vmatprep.subr.mxu0 0.0
      %700 = vmatpush1.msra.mxu0 0.0
      %701 = vmatprep.subr.mxu0 0.0
      %702 = vmatpush1.msra.mxu0 0.0
      %703 = vmatprep.subr.mxu0 0.0
      %704 = vmatpush1.msra.mxu0 0.0
      %705 = vmatprep.subr.mxu0 0.0
      %706 = vmatpush1.msra.mxu0 0.0
      %707 = vmatprep.subr.mxu0 0.0
      %708 = vmatpush1.msra.mxu0 0.0
      %709 = vmatprep.subr.mxu0 0.0
      %710 = vmatpush1.msra.mxu0 0.0
      %711 = vmatprep.subr.mxu0 0.0
      %712 = vmatpush1.msra.mxu0 0.0
      %713 = vmatprep.subr.mxu0 0.0
      %714 = vmatpush1.msra.mxu0 0.0
      %715 = vmatprep.subr.mxu0 0.0
      %716 = vmatpush1.msra.mxu0 0.0
      %717 = vmatprep.subr.mxu0 0.0
      %718 = vmatpush1.msra.mxu0 0.0
      %719 = vmatprep.subr.mxu0 0.0
      %720 = vmatpush1.msra.mxu0 0.0
      %721 = vmatprep.subr.mxu0 0.0
      %722 = vmatpush1.msra.mxu0 %v689
      %723 = vmatprep.subr.mxu0 0.0
      %724 = vmatpush2.msra.mxu0 0.0
      %725 = vmatprep.subr.mxu0 0.0
      %726 = vmatpush2.msra.mxu0 0.0
      %727 = vmatprep.subr.mxu0 0.0
      %728 = vmatpush2.msra.mxu0 0.0
      %729 = vmatprep.subr.mxu0 0.0
      %730 = vmatpush2.msra.mxu0 0.0
      %731 = vmatprep.subr.mxu0 0.0
      %732 = vmatpush2.msra.mxu0 0.0
      %733 = vmatprep.subr.mxu0 0.0
      %734 = vmatpush2.msra.mxu0 0.0
      %735 = vmatprep.subr.mxu0 0.0
      %736 = vmatpush2.msra.mxu0 0.0
      %737 = vmatprep.subr.mxu0 0.0
      %738 = vmatpush2.msra.mxu0 0.0
      %739 = vmatprep.subr.mxu0 0.0
      %740 = vmatpush2.msra.mxu0 0.0
      %741 = vmatprep.subr.mxu0 0.0
      %742 = vmatpush2.msra.mxu0 0.0
      %743 = vmatprep.subr.mxu0 0.0
      %744 = vmatpush2.msra.mxu0 0.0
      %745 = vmatprep.subr.mxu0 0.0
      %746 = vmatpush2.msra.mxu0 0.0
      %747 = vmatprep.subr.mxu0 0.0
      %748 = vmatpush2.msra.mxu0 0.0
      %749 = vmatprep.subr.mxu0 0.0
      %750 = vmatpush2.msra.mxu0 0.0
      %751 = vmatprep.subr.mxu0 0.0
      %752 = vmatpush2.msra.mxu0 0.0
      %753 = vmatprep.subr.mxu0 0.0
      %754 = vmatpush2.msra.mxu0 0.0
      %755 = vmatprep.mubr.f32.mxu0 0.0
      %756 = vmatmul.mubr.f32.gmra.mxu0 %v683
      %v757 = vpop.f32.mrf.mxu0
      %v758 = vadd.f32 %v604, %v757
      %v759 = vpop.f32.mrf.mxu0
      %760 = vmatprep.mubr.f32.mxu0 0.0
      %761 = vmatmul.mubr.f32.gmra.mxu0 %v686
      %v762 = vpop.f32.mrf.mxu0
      %v763 = vadd.f32 %v609, %v762
      %v764 = vpop.f32.mrf.mxu0
      %765 = vmatprep.mubr.f32.mxu0 0.0
      %766 = vmatmul.mubr.f32.gmra.mxu0 %v486
      %v767 = vpop.f32.mrf.mxu0
      %v768 = vadd.f32 %v614, %v767
      %v769 = vpop.f32.mrf.mxu0
      %770 = vmatprep.mubr.f32.mxu0 0.0
      %771 = vmatmul.mubr.f32.gmra.mxu0 %v489
      %v772 = vpop.f32.mrf.mxu0
      %v773 = vadd.f32 %v619, %v772
      %v774 = vpop.f32.mrf.mxu0
      %775 = vmatprep.mubr.f32.mxu0 0.0
      %776 = vmatmul.mubr.f32.gmra.mxu0 %v492
      %v777 = vpop.f32.mrf.mxu0
      %v778 = vadd.f32 %v624, %v777
      %v779 = vpop.f32.mrf.mxu0
      %780 = vmatprep.mubr.f32.mxu0 0.0
      %781 = vmatmul.mubr.f32.gmra.mxu0 %v495
      %v782 = vpop.f32.mrf.mxu0
      %v783 = vadd.f32 %v629, %v782
      %v784 = vpop.f32.mrf.mxu0
      %785 = vmatprep.mubr.f32.mxu0 0.0
      %786 = vmatmul.mubr.f32.gmra.mxu0 %v498
      %v787 = vpop.f32.mrf.mxu0
      %v788 = vadd.f32 %v634, %v787
      %v789 = vpop.f32.mrf.mxu0
      %790 = vmatprep.mubr.f32.mxu0 0.0
      %791 = vmatmul.mubr.f32.gmra.mxu0 %v501
      %v792 = vpop.f32.mrf.mxu0
      %v793 = vadd.f32 %v639, %v792
      %v794 = vpop.f32.mrf.mxu0
      %795 = vmatprep.mubr.f32.mxu0 0.0
      %796 = vmatmul.mubr.f32.gmra.mxu0 %v504
      %v797 = vpop.f32.mrf.mxu0
      %v798 = vadd.f32 %v644, %v797
      %v799 = vpop.f32.mrf.mxu0
      %800 = vmatprep.mubr.f32.mxu0 0.0
      %801 = vmatmul.mubr.f32.gmra.mxu0 %v507
      %v802 = vpop.f32.mrf.mxu0
      %v803 = vadd.f32 %v649, %v802
      %v804 = vpop.f32.mrf.mxu0
      %805 = vmatprep.mubr.f32.mxu0 0.0
      %806 = vmatmul.mubr.f32.gmra.mxu0 %v510
      %v807 = vpop.f32.mrf.mxu0
      %v808 = vadd.f32 %v654, %v807
      %v809 = vpop.f32.mrf.mxu0
      %810 = vmatprep.mubr.f32.mxu0 0.0
      %811 = vmatmul.mubr.f32.gmra.mxu0 %v513
      %v812 = vpop.f32.mrf.mxu0
      %v813 = vadd.f32 %v659, %v812
      %v814 = vpop.f32.mrf.mxu0
      %815 = vmatprep.mubr.f32.mxu0 0.0
      %816 = vmatmul.mubr.f32.gmra.mxu0 %v516
      %v817 = vpop.f32.mrf.mxu0
      %v818 = vadd.f32 %v664, %v817
      %v819 = vpop.f32.mrf.mxu0
      %820 = vmatprep.mubr.f32.mxu0 0.0
      %821 = vmatmul.mubr.f32.gmra.mxu0 %v519
      %v822 = vpop.f32.mrf.mxu0
      %v823 = vadd.f32 %v669, %v822
      %v824 = vpop.f32.mrf.mxu0
      %825 = vmatprep.mubr.f32.mxu0 0.0
      %826 = vmatmul.mubr.f32.gmra.mxu0 %v522
      %v827 = vpop.f32.mrf.mxu0
      %v828 = vadd.f32 %v674, %v827
      %v829 = vpop.f32.mrf.mxu0
      %830 = vmatprep.mubr.f32.mxu0 0.0
      %831 = vmatmul.mubr.f32.gmra.mxu0 %v525
      %v832 = vpop.f32.mrf.mxu0
      %v833 = vadd.f32 %v679, %v832
      %v834 = vpop.f32.mrf.mxu0
      %835 = vdwg.mxu0
      %s836 = scalar_lea.vmem %s308, 24
      %v837 = vld [vmem:[%s836] sm:$0xf]
      %v839 = vsel %vm418, %v480, 0
      %v842 = vsel %vm418, %v481, 0
      %v845 = vsel %vm533, %v837, 0
      %847 = vmatprep.subr.mxu0 0.0
      %848 = vmatpush1.msra.mxu0 0.0
      %849 = vmatprep.subr.mxu0 0.0
      %850 = vmatpush1.msra.mxu0 0.0
      %851 = vmatprep.subr.mxu0 0.0
      %852 = vmatpush1.msra.mxu0 0.0
      %853 = vmatprep.subr.mxu0 0.0
      %854 = vmatpush1.msra.mxu0 0.0
      %855 = vmatprep.subr.mxu0 0.0
      %856 = vmatpush1.msra.mxu0 0.0
      %857 = vmatprep.subr.mxu0 0.0
      %858 = vmatpush1.msra.mxu0 0.0
      %859 = vmatprep.subr.mxu0 0.0
      %860 = vmatpush1.msra.mxu0 0.0
      %861 = vmatprep.subr.mxu0 0.0
      %862 = vmatpush1.msra.mxu0 0.0
      %863 = vmatprep.subr.mxu0 0.0
      %864 = vmatpush1.msra.mxu0 0.0
      %865 = vmatprep.subr.mxu0 0.0
      %866 = vmatpush1.msra.mxu0 0.0
      %867 = vmatprep.subr.mxu0 0.0
      %868 = vmatpush1.msra.mxu0 0.0
      %869 = vmatprep.subr.mxu0 0.0
      %870 = vmatpush1.msra.mxu0 0.0
      %871 = vmatprep.subr.mxu0 0.0
      %872 = vmatpush1.msra.mxu0 0.0
      %873 = vmatprep.subr.mxu0 0.0
      %874 = vmatpush1.msra.mxu0 0.0
      %875 = vmatprep.subr.mxu0 0.0
      %876 = vmatpush1.msra.mxu0 0.0
      %877 = vmatprep.subr.mxu0 0.0
      %878 = vmatpush1.msra.mxu0 %v845
      %879 = vmatprep.subr.mxu0 0.0
      %880 = vmatpush2.msra.mxu0 0.0
      %881 = vmatprep.subr.mxu0 0.0
      %882 = vmatpush2.msra.mxu0 0.0
      %883 = vmatprep.subr.mxu0 0.0
      %884 = vmatpush2.msra.mxu0 0.0
      %885 = vmatprep.subr.mxu0 0.0
      %886 = vmatpush2.msra.mxu0 0.0
      %887 = vmatprep.subr.mxu0 0.0
      %888 = vmatpush2.msra.mxu0 0.0
      %889 = vmatprep.subr.mxu0 0.0
      %890 = vmatpush2.msra.mxu0 0.0
      %891 = vmatprep.subr.mxu0 0.0
      %892 = vmatpush2.msra.mxu0 0.0
      %893 = vmatprep.subr.mxu0 0.0
      %894 = vmatpush2.msra.mxu0 0.0
      %895 = vmatprep.subr.mxu0 0.0
      %896 = vmatpush2.msra.mxu0 0.0
      %897 = vmatprep.subr.mxu0 0.0
      %898 = vmatpush2.msra.mxu0 0.0
      %899 = vmatprep.subr.mxu0 0.0
      %900 = vmatpush2.msra.mxu0 0.0
      %901 = vmatprep.subr.mxu0 0.0
      %902 = vmatpush2.msra.mxu0 0.0
      %903 = vmatprep.subr.mxu0 0.0
      %904 = vmatpush2.msra.mxu0 0.0
      %905 = vmatprep.subr.mxu0 0.0
      %906 = vmatpush2.msra.mxu0 0.0
      %907 = vmatprep.subr.mxu0 0.0
      %908 = vmatpush2.msra.mxu0 0.0
      %909 = vmatprep.subr.mxu0 0.0
      %910 = vmatpush2.msra.mxu0 0.0
      %911 = vmatprep.mubr.f32.mxu0 0.0
      %912 = vmatmul.mubr.f32.gmra.mxu0 %v492
      %v913 = vpop.f32.mrf.mxu0
      %v914 = vadd.f32 0.0, %v913
      %v915 = vpop.f32.mrf.mxu0
      %916 = vmatprep.mubr.f32.mxu0 0.0
      %917 = vmatmul.mubr.f32.gmra.mxu0 %v495
      %v918 = vpop.f32.mrf.mxu0
      %v919 = vadd.f32 0.0, %v918
      %v920 = vpop.f32.mrf.mxu0
      %921 = vmatprep.mubr.f32.mxu0 0.0
      %922 = vmatmul.mubr.f32.gmra.mxu0 %v498
      %v923 = vpop.f32.mrf.mxu0
      %v924 = vadd.f32 0.0, %v923
      %v925 = vpop.f32.mrf.mxu0
      %926 = vmatprep.mubr.f32.mxu0 0.0
      %927 = vmatmul.mubr.f32.gmra.mxu0 %v501
      %v928 = vpop.f32.mrf.mxu0
      %v929 = vadd.f32 0.0, %v928
      %v930 = vpop.f32.mrf.mxu0
      %931 = vmatprep.mubr.f32.mxu0 0.0
      %932 = vmatmul.mubr.f32.gmra.mxu0 %v504
      %v933 = vpop.f32.mrf.mxu0
      %v934 = vadd.f32 0.0, %v933
      %v935 = vpop.f32.mrf.mxu0
      %936 = vmatprep.mubr.f32.mxu0 0.0
      %937 = vmatmul.mubr.f32.gmra.mxu0 %v507
      %v938 = vpop.f32.mrf.mxu0
      %v939 = vadd.f32 0.0, %v938
      %v940 = vpop.f32.mrf.mxu0
      %941 = vmatprep.mubr.f32.mxu0 0.0
      %942 = vmatmul.mubr.f32.gmra.mxu0 %v510
      %v943 = vpop.f32.mrf.mxu0
      %v944 = vadd.f32 0.0, %v943
      %v945 = vpop.f32.mrf.mxu0
      %946 = vmatprep.mubr.f32.mxu0 0.0
      %947 = vmatmul.mubr.f32.gmra.mxu0 %v513
      %v948 = vpop.f32.mrf.mxu0
      %v949 = vadd.f32 0.0, %v948
      %v950 = vpop.f32.mrf.mxu0
      %951 = vmatprep.mubr.f32.mxu0 0.0
      %952 = vmatmul.mubr.f32.gmra.mxu0 %v516
      %v953 = vpop.f32.mrf.mxu0
      %v954 = vadd.f32 0.0, %v953
      %v955 = vpop.f32.mrf.mxu0
      %956 = vmatprep.mubr.f32.mxu0 0.0
      %957 = vmatmul.mubr.f32.gmra.mxu0 %v519
      %v958 = vpop.f32.mrf.mxu0
      %v959 = vadd.f32 0.0, %v958
      %v960 = vpop.f32.mrf.mxu0
      %961 = vmatprep.mubr.f32.mxu0 0.0
      %962 = vmatmul.mubr.f32.gmra.mxu0 %v522
      %v963 = vpop.f32.mrf.mxu0
      %v964 = vadd.f32 0.0, %v963
      %v965 = vpop.f32.mrf.mxu0
      %966 = vmatprep.mubr.f32.mxu0 0.0
      %967 = vmatmul.mubr.f32.gmra.mxu0 %v525
      %v968 = vpop.f32.mrf.mxu0
      %v969 = vadd.f32 0.0, %v968
      %v970 = vpop.f32.mrf.mxu0
      %971 = vmatprep.mubr.f32.mxu0 0.0
      %972 = vmatmul.mubr.f32.gmra.mxu0 %v528
      %v973 = vpop.f32.mrf.mxu0
      %v974 = vadd.f32 0.0, %v973
      %v975 = vpop.f32.mrf.mxu0
      %976 = vmatprep.mubr.f32.mxu0 0.0
      %977 = vmatmul.mubr.f32.gmra.mxu0 %v531
      %v978 = vpop.f32.mrf.mxu0
      %v979 = vadd.f32 0.0, %v978
      %v980 = vpop.f32.mrf.mxu0
      %981 = vmatprep.mubr.f32.mxu0 0.0
      %982 = vmatmul.mubr.f32.gmra.mxu0 %v839
      %v983 = vpop.f32.mrf.mxu0
      %v984 = vadd.f32 0.0, %v983
      %v985 = vpop.f32.mrf.mxu0
      %986 = vmatprep.mubr.f32.mxu0 0.0
      %987 = vmatmul.mubr.f32.gmra.mxu0 %v842
      %v988 = vpop.f32.mrf.mxu0
      %v989 = vadd.f32 0.0, %v988
      %v990 = vpop.f32.mrf.mxu0
      %991 = vdwg.mxu0
      %v992 = vadd.f32 %v758, %v914
      %v993 = vadd.f32 %v763, %v919
      %v994 = vadd.f32 %v768, %v924
      %v995 = vadd.f32 %v773, %v929
      %v996 = vadd.f32 %v778, %v934
      %v997 = vadd.f32 %v783, %v939
      %v998 = vadd.f32 %v788, %v944
      %v999 = vadd.f32 %v793, %v949
      %v1000 = vadd.f32 %v798, %v954
      %v1001 = vadd.f32 %v803, %v959
      %v1002 = vadd.f32 %v808, %v964
      %v1003 = vadd.f32 %v813, %v969
      %v1004 = vadd.f32 %v818, %v974
      %v1005 = vadd.f32 %v823, %v979
      %v1006 = vadd.f32 %v828, %v984
      %v1007 = vadd.f32 %v833, %v989
      %v1008 = vld [vmem:[#allocation2 + $0x1] sm:$0xff]
      %v1009 = vld [vmem:[#allocation2 + $0x9] sm:$0xff]
      %v1010 = vld [vmem:[#allocation2 + $0x19] sm:$0xff]
      %v1011 = vld [vmem:[#allocation2 + $0x21] sm:$0xff]
      %v1012 = vld [vmem:[#allocation2 + $0x31] sm:$0xff]
      %v1013 = vld [vmem:[#allocation2 + $0x39] sm:$0xff]
      %v1014 = vld [vmem:[#allocation2 + $0x49] sm:$0xff]
      %v1015 = vld [vmem:[#allocation2 + $0x51] sm:$0xff]
      %v1016 = vld [vmem:[#allocation2 + $0x61] sm:$0xff]
      %v1017 = vld [vmem:[#allocation2 + $0x69] sm:$0xff]
      %v1018 = vld [vmem:[#allocation2 + $0x79] sm:$0xff]
      %v1019 = vld [vmem:[#allocation2 + $0x81] sm:$0xff]
      %v1020 = vld [vmem:[#allocation2 + $0x91] sm:$0xff]
      %v1021 = vld [vmem:[#allocation2 + $0x99] sm:$0xff]
      %v1022 = vld [vmem:[#allocation2 + $0xa9] sm:$0xff]
      %v1023 = vld [vmem:[#allocation2 + $0xb1] sm:$0xff]
      %v1024 = vld [vmem:[#allocation2 + $0xc1] sm:$0xff]
      %v1025 = vld [vmem:[#allocation2 + $0xc9] sm:$0xff]
      %v1026 = vld [vmem:[#allocation2 + $0xd9] sm:$0xff]
      %v1027 = vld [vmem:[#allocation2 + $0xe1] sm:$0xff]
      %s1028 = scalar_lea.vmem %s308, 4
      %v1029 = vld [vmem:[%s1028] sm:$0xf]
      %v1031 = vsel %vm418, %v1008, 0
      %v1034 = vsel %vm418, %v1009, 0
      %v1037 = vsel %vm418, %v1010, 0
      %v1040 = vsel %vm418, %v1011, 0
      %v1043 = vsel %vm418, %v1012, 0
      %v1046 = vsel %vm418, %v1013, 0
      %v1049 = vsel %vm418, %v1014, 0
      %v1052 = vsel %vm418, %v1015, 0
      %v1055 = vsel %vm418, %v1016, 0
      %v1058 = vsel %vm418, %v1017, 0
      %v1061 = vsel %vm418, %v1018, 0
      %v1064 = vsel %vm418, %v1019, 0
      %v1067 = vsel %vm418, %v1020, 0
      %v1070 = vsel %vm418, %v1021, 0
      %v1073 = vsel %vm418, %v1022, 0
      %v1076 = vsel %vm418, %v1023, 0
      %v1079 = vsel %vm533, %v1029, 0
      %1081 = vmatprep.subr.mxu0 0.0
      %1082 = vmatpush1.msra.mxu0 0.0
      %1083 = vmatprep.subr.mxu0 0.0
      %1084 = vmatpush1.msra.mxu0 0.0
      %1085 = vmatprep.subr.mxu0 0.0
      %1086 = vmatpush1.msra.mxu0 0.0
      %1087 = vmatprep.subr.mxu0 0.0
      %1088 = vmatpush1.msra.mxu0 0.0
      %1089 = vmatprep.subr.mxu0 0.0
      %1090 = vmatpush1.msra.mxu0 0.0
      %1091 = vmatprep.subr.mxu0 0.0
      %1092 = vmatpush1.msra.mxu0 0.0
      %1093 = vmatprep.subr.mxu0 0.0
      %1094 = vmatpush1.msra.mxu0 0.0
      %1095 = vmatprep.subr.mxu0 0.0
      %1096 = vmatpush1.msra.mxu0 0.0
      %1097 = vmatprep.subr.mxu0 0.0
      %1098 = vmatpush1.msra.mxu0 0.0
      %1099 = vmatprep.subr.mxu0 0.0
      %1100 = vmatpush1.msra.mxu0 0.0
      %1101 = vmatprep.subr.mxu0 0.0
      %1102 = vmatpush1.msra.mxu0 0.0
      %1103 = vmatprep.subr.mxu0 0.0
      %1104 = vmatpush1.msra.mxu0 0.0
      %1105 = vmatprep.subr.mxu0 0.0
      %1106 = vmatpush1.msra.mxu0 0.0
      %1107 = vmatprep.subr.mxu0 0.0
      %1108 = vmatpush1.msra.mxu0 0.0
      %1109 = vmatprep.subr.mxu0 0.0
      %1110 = vmatpush1.msra.mxu0 0.0
      %1111 = vmatprep.subr.mxu0 0.0
      %1112 = vmatpush1.msra.mxu0 %v1079
      %1113 = vmatprep.subr.mxu0 0.0
      %1114 = vmatpush2.msra.mxu0 0.0
      %1115 = vmatprep.subr.mxu0 0.0
      %1116 = vmatpush2.msra.mxu0 0.0
      %1117 = vmatprep.subr.mxu0 0.0
      %1118 = vmatpush2.msra.mxu0 0.0
      %1119 = vmatprep.subr.mxu0 0.0
      %1120 = vmatpush2.msra.mxu0 0.0
      %1121 = vmatprep.subr.mxu0 0.0
      %1122 = vmatpush2.msra.mxu0 0.0
      %1123 = vmatprep.subr.mxu0 0.0
      %1124 = vmatpush2.msra.mxu0 0.0
      %1125 = vmatprep.subr.mxu0 0.0
      %1126 = vmatpush2.msra.mxu0 0.0
      %1127 = vmatprep.subr.mxu0 0.0
      %1128 = vmatpush2.msra.mxu0 0.0
      %1129 = vmatprep.subr.mxu0 0.0
      %1130 = vmatpush2.msra.mxu0 0.0
      %1131 = vmatprep.subr.mxu0 0.0
      %1132 = vmatpush2.msra.mxu0 0.0
      %1133 = vmatprep.subr.mxu0 0.0
      %1134 = vmatpush2.msra.mxu0 0.0
      %1135 = vmatprep.subr.mxu0 0.0
      %1136 = vmatpush2.msra.mxu0 0.0
      %1137 = vmatprep.subr.mxu0 0.0
      %1138 = vmatpush2.msra.mxu0 0.0
      %1139 = vmatprep.subr.mxu0 0.0
      %1140 = vmatpush2.msra.mxu0 0.0
      %1141 = vmatprep.subr.mxu0 0.0
      %1142 = vmatpush2.msra.mxu0 0.0
      %1143 = vmatprep.subr.mxu0 0.0
      %1144 = vmatpush2.msra.mxu0 0.0
      %1145 = vmatprep.mubr.f32.mxu0 0.0
      %1146 = vmatmul.mubr.f32.gmra.mxu0 %v1031
      %v1147 = vpop.f32.mrf.mxu0
      %v1148 = vadd.f32 0.0, %v1147
      %v1149 = vpop.f32.mrf.mxu0
      %1150 = vmatprep.mubr.f32.mxu0 0.0
      %1151 = vmatmul.mubr.f32.gmra.mxu0 %v1034
      %v1152 = vpop.f32.mrf.mxu0
      %v1153 = vadd.f32 0.0, %v1152
      %v1154 = vpop.f32.mrf.mxu0
      %1155 = vmatprep.mubr.f32.mxu0 0.0
      %1156 = vmatmul.mubr.f32.gmra.mxu0 %v1037
      %v1157 = vpop.f32.mrf.mxu0
      %v1158 = vadd.f32 0.0, %v1157
      %v1159 = vpop.f32.mrf.mxu0
      %1160 = vmatprep.mubr.f32.mxu0 0.0
      %1161 = vmatmul.mubr.f32.gmra.mxu0 %v1040
      %v1162 = vpop.f32.mrf.mxu0
      %v1163 = vadd.f32 0.0, %v1162
      %v1164 = vpop.f32.mrf.mxu0
      %1165 = vmatprep.mubr.f32.mxu0 0.0
      %1166 = vmatmul.mubr.f32.gmra.mxu0 %v1043
      %v1167 = vpop.f32.mrf.mxu0
      %v1168 = vadd.f32 0.0, %v1167
      %v1169 = vpop.f32.mrf.mxu0
      %1170 = vmatprep.mubr.f32.mxu0 0.0
      %1171 = vmatmul.mubr.f32.gmra.mxu0 %v1046
      %v1172 = vpop.f32.mrf.mxu0
      %v1173 = vadd.f32 0.0, %v1172
      %v1174 = vpop.f32.mrf.mxu0
      %1175 = vmatprep.mubr.f32.mxu0 0.0
      %1176 = vmatmul.mubr.f32.gmra.mxu0 %v1049
      %v1177 = vpop.f32.mrf.mxu0
      %v1178 = vadd.f32 0.0, %v1177
      %v1179 = vpop.f32.mrf.mxu0
      %1180 = vmatprep.mubr.f32.mxu0 0.0
      %1181 = vmatmul.mubr.f32.gmra.mxu0 %v1052
      %v1182 = vpop.f32.mrf.mxu0
      %v1183 = vadd.f32 0.0, %v1182
      %v1184 = vpop.f32.mrf.mxu0
      %1185 = vmatprep.mubr.f32.mxu0 0.0
      %1186 = vmatmul.mubr.f32.gmra.mxu0 %v1055
      %v1187 = vpop.f32.mrf.mxu0
      %v1188 = vadd.f32 0.0, %v1187
      %v1189 = vpop.f32.mrf.mxu0
      %1190 = vmatprep.mubr.f32.mxu0 0.0
      %1191 = vmatmul.mubr.f32.gmra.mxu0 %v1058
      %v1192 = vpop.f32.mrf.mxu0
      %v1193 = vadd.f32 0.0, %v1192
      %v1194 = vpop.f32.mrf.mxu0
      %1195 = vmatprep.mubr.f32.mxu0 0.0
      %1196 = vmatmul.mubr.f32.gmra.mxu0 %v1061
      %v1197 = vpop.f32.mrf.mxu0
      %v1198 = vadd.f32 0.0, %v1197
      %v1199 = vpop.f32.mrf.mxu0
      %1200 = vmatprep.mubr.f32.mxu0 0.0
      %1201 = vmatmul.mubr.f32.gmra.mxu0 %v1064
      %v1202 = vpop.f32.mrf.mxu0
      %v1203 = vadd.f32 0.0, %v1202
      %v1204 = vpop.f32.mrf.mxu0
      %1205 = vmatprep.mubr.f32.mxu0 0.0
      %1206 = vmatmul.mubr.f32.gmra.mxu0 %v1067
      %v1207 = vpop.f32.mrf.mxu0
      %v1208 = vadd.f32 0.0, %v1207
      %v1209 = vpop.f32.mrf.mxu0
      %1210 = vmatprep.mubr.f32.mxu0 0.0
      %1211 = vmatmul.mubr.f32.gmra.mxu0 %v1070
      %v1212 = vpop.f32.mrf.mxu0
      %v1213 = vadd.f32 0.0, %v1212
      %v1214 = vpop.f32.mrf.mxu0
      %1215 = vmatprep.mubr.f32.mxu0 0.0
      %1216 = vmatmul.mubr.f32.gmra.mxu0 %v1073
      %v1217 = vpop.f32.mrf.mxu0
      %v1218 = vadd.f32 0.0, %v1217
      %v1219 = vpop.f32.mrf.mxu0
      %1220 = vmatprep.mubr.f32.mxu0 0.0
      %1221 = vmatmul.mubr.f32.gmra.mxu0 %v1076
      %v1222 = vpop.f32.mrf.mxu0
      %v1223 = vadd.f32 0.0, %v1222
      %v1224 = vpop.f32.mrf.mxu0
      %1225 = vdwg.mxu0
      %v1226 = vadd.f32 %v992, %v1148
      %v1227 = vadd.f32 %v993, %v1153
      %v1228 = vadd.f32 %v994, %v1158
      %v1229 = vadd.f32 %v995, %v1163
      %v1230 = vadd.f32 %v996, %v1168
      %v1231 = vadd.f32 %v997, %v1173
      %v1232 = vadd.f32 %v998, %v1178
      %v1233 = vadd.f32 %v999, %v1183
      %v1234 = vadd.f32 %v1000, %v1188
      %v1235 = vadd.f32 %v1001, %v1193
      %v1236 = vadd.f32 %v1002, %v1198
      %v1237 = vadd.f32 %v1003, %v1203
      %v1238 = vadd.f32 %v1004, %v1208
      %v1239 = vadd.f32 %v1005, %v1213
      %v1240 = vadd.f32 %v1006, %v1218
      %v1241 = vadd.f32 %v1007, %v1223
      %s1242 = scalar_lea.vmem %s308, 16
      %v1243 = vld [vmem:[%s1242] sm:$0xf]
      %v1245 = vsel %vm418, %v1024, 0
      %v1248 = vsel %vm418, %v1025, 0
      %v1251 = vsel %vm533, %v1243, 0
      %1253 = vmatprep.subr.mxu0 0.0
      %1254 = vmatpush1.msra.mxu0 0.0
      %1255 = vmatprep.subr.mxu0 0.0
      %1256 = vmatpush1.msra.mxu0 0.0
      %1257 = vmatprep.subr.mxu0 0.0
      %1258 = vmatpush1.msra.mxu0 0.0
      %1259 = vmatprep.subr.mxu0 0.0
      %1260 = vmatpush1.msra.mxu0 0.0
      %1261 = vmatprep.subr.mxu0 0.0
      %1262 = vmatpush1.msra.mxu0 0.0
      %1263 = vmatprep.subr.mxu0 0.0
      %1264 = vmatpush1.msra.mxu0 0.0
      %1265 = vmatprep.subr.mxu0 0.0
      %1266 = vmatpush1.msra.mxu0 0.0
      %1267 = vmatprep.subr.mxu0 0.0
      %1268 = vmatpush1.msra.mxu0 0.0
      %1269 = vmatprep.subr.mxu0 0.0
      %1270 = vmatpush1.msra.mxu0 0.0
      %1271 = vmatprep.subr.mxu0 0.0
      %1272 = vmatpush1.msra.mxu0 0.0
      %1273 = vmatprep.subr.mxu0 0.0
      %1274 = vmatpush1.msra.mxu0 0.0
      %1275 = vmatprep.subr.mxu0 0.0
      %1276 = vmatpush1.msra.mxu0 0.0
      %1277 = vmatprep.subr.mxu0 0.0
      %1278 = vmatpush1.msra.mxu0 0.0
      %1279 = vmatprep.subr.mxu0 0.0
      %1280 = vmatpush1.msra.mxu0 0.0
      %1281 = vmatprep.subr.mxu0 0.0
      %1282 = vmatpush1.msra.mxu0 0.0
      %1283 = vmatprep.subr.mxu0 0.0
      %1284 = vmatpush1.msra.mxu0 %v1251
      %1285 = vmatprep.subr.mxu0 0.0
      %1286 = vmatpush2.msra.mxu0 0.0
      %1287 = vmatprep.subr.mxu0 0.0
      %1288 = vmatpush2.msra.mxu0 0.0
      %1289 = vmatprep.subr.mxu0 0.0
      %1290 = vmatpush2.msra.mxu0 0.0
      %1291 = vmatprep.subr.mxu0 0.0
      %1292 = vmatpush2.msra.mxu0 0.0
      %1293 = vmatprep.subr.mxu0 0.0
      %1294 = vmatpush2.msra.mxu0 0.0
      %1295 = vmatprep.subr.mxu0 0.0
      %1296 = vmatpush2.msra.mxu0 0.0
      %1297 = vmatprep.subr.mxu0 0.0
      %1298 = vmatpush2.msra.mxu0 0.0
      %1299 = vmatprep.subr.mxu0 0.0
      %1300 = vmatpush2.msra.mxu0 0.0
      %1301 = vmatprep.subr.mxu0 0.0
      %1302 = vmatpush2.msra.mxu0 0.0
      %1303 = vmatprep.subr.mxu0 0.0
      %1304 = vmatpush2.msra.mxu0 0.0
      %1305 = vmatprep.subr.mxu0 0.0
      %1306 = vmatpush2.msra.mxu0 0.0
      %1307 = vmatprep.subr.mxu0 0.0
      %1308 = vmatpush2.msra.mxu0 0.0
      %1309 = vmatprep.subr.mxu0 0.0
      %1310 = vmatpush2.msra.mxu0 0.0
      %1311 = vmatprep.subr.mxu0 0.0
      %1312 = vmatpush2.msra.mxu0 0.0
      %1313 = vmatprep.subr.mxu0 0.0
      %1314 = vmatpush2.msra.mxu0 0.0
      %1315 = vmatprep.subr.mxu0 0.0
      %1316 = vmatpush2.msra.mxu0 0.0
      %1317 = vmatprep.mubr.f32.mxu0 0.0
      %1318 = vmatmul.mubr.f32.gmra.mxu0 %v1037
      %v1319 = vpop.f32.mrf.mxu0
      %v1320 = vadd.f32 0.0, %v1319
      %v1321 = vpop.f32.mrf.mxu0
      %1322 = vmatprep.mubr.f32.mxu0 0.0
      %1323 = vmatmul.mubr.f32.gmra.mxu0 %v1040
      %v1324 = vpop.f32.mrf.mxu0
      %v1325 = vadd.f32 0.0, %v1324
      %v1326 = vpop.f32.mrf.mxu0
      %1327 = vmatprep.mubr.f32.mxu0 0.0
      %1328 = vmatmul.mubr.f32.gmra.mxu0 %v1043
      %v1329 = vpop.f32.mrf.mxu0
      %v1330 = vadd.f32 0.0, %v1329
      %v1331 = vpop.f32.mrf.mxu0
      %1332 = vmatprep.mubr.f32.mxu0 0.0
      %1333 = vmatmul.mubr.f32.gmra.mxu0 %v1046
      %v1334 = vpop.f32.mrf.mxu0
      %v1335 = vadd.f32 0.0, %v1334
      %v1336 = vpop.f32.mrf.mxu0
      %1337 = vmatprep.mubr.f32.mxu0 0.0
      %1338 = vmatmul.mubr.f32.gmra.mxu0 %v1049
      %v1339 = vpop.f32.mrf.mxu0
      %v1340 = vadd.f32 0.0, %v1339
      %v1341 = vpop.f32.mrf.mxu0
      %1342 = vmatprep.mubr.f32.mxu0 0.0
      %1343 = vmatmul.mubr.f32.gmra.mxu0 %v1052
      %v1344 = vpop.f32.mrf.mxu0
      %v1345 = vadd.f32 0.0, %v1344
      %v1346 = vpop.f32.mrf.mxu0
      %1347 = vmatprep.mubr.f32.mxu0 0.0
      %1348 = vmatmul.mubr.f32.gmra.mxu0 %v1055
      %v1349 = vpop.f32.mrf.mxu0
      %v1350 = vadd.f32 0.0, %v1349
      %v1351 = vpop.f32.mrf.mxu0
      %1352 = vmatprep.mubr.f32.mxu0 0.0
      %1353 = vmatmul.mubr.f32.gmra.mxu0 %v1058
      %v1354 = vpop.f32.mrf.mxu0
      %v1355 = vadd.f32 0.0, %v1354
      %v1356 = vpop.f32.mrf.mxu0
      %1357 = vmatprep.mubr.f32.mxu0 0.0
      %1358 = vmatmul.mubr.f32.gmra.mxu0 %v1061
      %v1359 = vpop.f32.mrf.mxu0
      %v1360 = vadd.f32 0.0, %v1359
      %v1361 = vpop.f32.mrf.mxu0
      %1362 = vmatprep.mubr.f32.mxu0 0.0
      %1363 = vmatmul.mubr.f32.gmra.mxu0 %v1064
      %v1364 = vpop.f32.mrf.mxu0
      %v1365 = vadd.f32 0.0, %v1364
      %v1366 = vpop.f32.mrf.mxu0
      %1367 = vmatprep.mubr.f32.mxu0 0.0
      %1368 = vmatmul.mubr.f32.gmra.mxu0 %v1067
      %v1369 = vpop.f32.mrf.mxu0
      %v1370 = vadd.f32 0.0, %v1369
      %v1371 = vpop.f32.mrf.mxu0
      %1372 = vmatprep.mubr.f32.mxu0 0.0
      %1373 = vmatmul.mubr.f32.gmra.mxu0 %v1070
      %v1374 = vpop.f32.mrf.mxu0
      %v1375 = vadd.f32 0.0, %v1374
      %v1376 = vpop.f32.mrf.mxu0
      %1377 = vmatprep.mubr.f32.mxu0 0.0
      %1378 = vmatmul.mubr.f32.gmra.mxu0 %v1073
      %v1379 = vpop.f32.mrf.mxu0
      %v1380 = vadd.f32 0.0, %v1379
      %v1381 = vpop.f32.mrf.mxu0
      %1382 = vmatprep.mubr.f32.mxu0 0.0
      %1383 = vmatmul.mubr.f32.gmra.mxu0 %v1076
      %v1384 = vpop.f32.mrf.mxu0
      %v1385 = vadd.f32 0.0, %v1384
      %v1386 = vpop.f32.mrf.mxu0
      %1387 = vmatprep.mubr.f32.mxu0 0.0
      %1388 = vmatmul.mubr.f32.gmra.mxu0 %v1245
      %v1389 = vpop.f32.mrf.mxu0
      %v1390 = vadd.f32 0.0, %v1389
      %v1391 = vpop.f32.mrf.mxu0
      %1392 = vmatprep.mubr.f32.mxu0 0.0
      %1393 = vmatmul.mubr.f32.gmra.mxu0 %v1248
      %v1394 = vpop.f32.mrf.mxu0
      %v1395 = vadd.f32 0.0, %v1394
      %v1396 = vpop.f32.mrf.mxu0
      %1397 = vdwg.mxu0
      %v1398 = vadd.f32 %v1226, %v1320
      %v1399 = vadd.f32 %v1227, %v1325
      %v1400 = vadd.f32 %v1228, %v1330
      %v1401 = vadd.f32 %v1229, %v1335
      %v1402 = vadd.f32 %v1230, %v1340
      %v1403 = vadd.f32 %v1231, %v1345
      %v1404 = vadd.f32 %v1232, %v1350
      %v1405 = vadd.f32 %v1233, %v1355
      %v1406 = vadd.f32 %v1234, %v1360
      %v1407 = vadd.f32 %v1235, %v1365
      %v1408 = vadd.f32 %v1236, %v1370
      %v1409 = vadd.f32 %v1237, %v1375
      %v1410 = vadd.f32 %v1238, %v1380
      %v1411 = vadd.f32 %v1239, %v1385
      %v1412 = vadd.f32 %v1240, %v1390
      %v1413 = vadd.f32 %v1241, %v1395
      %s1414 = scalar_lea.vmem %s308, 28
      %v1415 = vld [vmem:[%s1414] sm:$0xf]
      %v1417 = vsel %vm418, %v1026, 0
      %v1420 = vsel %vm418, %v1027, 0
      %v1423 = vsel %vm533, %v1415, 0
      %1425 = vmatprep.subr.mxu0 0.0
      %1426 = vmatpush1.msra.mxu0 0.0
      %1427 = vmatprep.subr.mxu0 0.0
      %1428 = vmatpush1.msra.mxu0 0.0
      %1429 = vmatprep.subr.mxu0 0.0
      %1430 = vmatpush1.msra.mxu0 0.0
      %1431 = vmatprep.subr.mxu0 0.0
      %1432 = vmatpush1.msra.mxu0 0.0
      %1433 = vmatprep.subr.mxu0 0.0
      %1434 = vmatpush1.msra.mxu0 0.0
      %1435 = vmatprep.subr.mxu0 0.0
      %1436 = vmatpush1.msra.mxu0 0.0
      %1437 = vmatprep.subr.mxu0 0.0
      %1438 = vmatpush1.msra.mxu0 0.0
      %1439 = vmatprep.subr.mxu0 0.0
      %1440 = vmatpush1.msra.mxu0 0.0
      %1441 = vmatprep.subr.mxu0 0.0
      %1442 = vmatpush1.msra.mxu0 0.0
      %1443 = vmatprep.subr.mxu0 0.0
      %1444 = vmatpush1.msra.mxu0 0.0
      %1445 = vmatprep.subr.mxu0 0.0
      %1446 = vmatpush1.msra.mxu0 0.0
      %1447 = vmatprep.subr.mxu0 0.0
      %1448 = vmatpush1.msra.mxu0 0.0
      %1449 = vmatprep.subr.mxu0 0.0
      %1450 = vmatpush1.msra.mxu0 0.0
      %1451 = vmatprep.subr.mxu0 0.0
      %1452 = vmatpush1.msra.mxu0 0.0
      %1453 = vmatprep.subr.mxu0 0.0
      %1454 = vmatpush1.msra.mxu0 0.0
      %1455 = vmatprep.subr.mxu0 0.0
      %1456 = vmatpush1.msra.mxu0 %v1423
      %1457 = vmatprep.subr.mxu0 0.0
      %1458 = vmatpush2.msra.mxu0 0.0
      %1459 = vmatprep.subr.mxu0 0.0
      %1460 = vmatpush2.msra.mxu0 0.0
      %1461 = vmatprep.subr.mxu0 0.0
      %1462 = vmatpush2.msra.mxu0 0.0
      %1463 = vmatprep.subr.mxu0 0.0
      %1464 = vmatpush2.msra.mxu0 0.0
      %1465 = vmatprep.subr.mxu0 0.0
      %1466 = vmatpush2.msra.mxu0 0.0
      %1467 = vmatprep.subr.mxu0 0.0
      %1468 = vmatpush2.msra.mxu0 0.0
      %1469 = vmatprep.subr.mxu0 0.0
      %1470 = vmatpush2.msra.mxu0 0.0
      %1471 = vmatprep.subr.mxu0 0.0
      %1472 = vmatpush2.msra.mxu0 0.0
      %1473 = vmatprep.subr.mxu0 0.0
      %1474 = vmatpush2.msra.mxu0 0.0
      %1475 = vmatprep.subr.mxu0 0.0
      %1476 = vmatpush2.msra.mxu0 0.0
      %1477 = vmatprep.subr.mxu0 0.0
      %1478 = vmatpush2.msra.mxu0 0.0
      %1479 = vmatprep.subr.mxu0 0.0
      %1480 = vmatpush2.msra.mxu0 0.0
      %1481 = vmatprep.subr.mxu0 0.0
      %1482 = vmatpush2.msra.mxu0 0.0
      %1483 = vmatprep.subr.mxu0 0.0
      %1484 = vmatpush2.msra.mxu0 0.0
      %1485 = vmatprep.subr.mxu0 0.0
      %1486 = vmatpush2.msra.mxu0 0.0
      %1487 = vmatprep.subr.mxu0 0.0
      %1488 = vmatpush2.msra.mxu0 0.0
      %1489 = vmatprep.mubr.f32.mxu0 0.0
      %1490 = vmatmul.mubr.f32.gmra.mxu0 %v1043
      %v1491 = vpop.f32.mrf.mxu0
      %v1492 = vadd.f32 0.0, %v1491
      %v1493 = vpop.f32.mrf.mxu0
      %1494 = vmatprep.mubr.f32.mxu0 0.0
      %1495 = vmatmul.mubr.f32.gmra.mxu0 %v1046
      %v1496 = vpop.f32.mrf.mxu0
      %v1497 = vadd.f32 0.0, %v1496
      %v1498 = vpop.f32.mrf.mxu0
      %1499 = vmatprep.mubr.f32.mxu0 0.0
      %1500 = vmatmul.mubr.f32.gmra.mxu0 %v1049
      %v1501 = vpop.f32.mrf.mxu0
      %v1502 = vadd.f32 0.0, %v1501
      %v1503 = vpop.f32.mrf.mxu0
      %1504 = vmatprep.mubr.f32.mxu0 0.0
      %1505 = vmatmul.mubr.f32.gmra.mxu0 %v1052
      %v1506 = vpop.f32.mrf.mxu0
      %v1507 = vadd.f32 0.0, %v1506
      %v1508 = vpop.f32.mrf.mxu0
      %1509 = vmatprep.mubr.f32.mxu0 0.0
      %1510 = vmatmul.mubr.f32.gmra.mxu0 %v1055
      %v1511 = vpop.f32.mrf.mxu0
      %v1512 = vadd.f32 0.0, %v1511
      %v1513 = vpop.f32.mrf.mxu0
      %1514 = vmatprep.mubr.f32.mxu0 0.0
      %1515 = vmatmul.mubr.f32.gmra.mxu0 %v1058
      %v1516 = vpop.f32.mrf.mxu0
      %v1517 = vadd.f32 0.0, %v1516
      %v1518 = vpop.f32.mrf.mxu0
      %1519 = vmatprep.mubr.f32.mxu0 0.0
      %1520 = vmatmul.mubr.f32.gmra.mxu0 %v1061
      %v1521 = vpop.f32.mrf.mxu0
      %v1522 = vadd.f32 0.0, %v1521
      %v1523 = vpop.f32.mrf.mxu0
      %1524 = vmatprep.mubr.f32.mxu0 0.0
      %1525 = vmatmul.mubr.f32.gmra.mxu0 %v1064
      %v1526 = vpop.f32.mrf.mxu0
      %v1527 = vadd.f32 0.0, %v1526
      %v1528 = vpop.f32.mrf.mxu0
      %1529 = vmatprep.mubr.f32.mxu0 0.0
      %1530 = vmatmul.mubr.f32.gmra.mxu0 %v1067
      %v1531 = vpop.f32.mrf.mxu0
      %v1532 = vadd.f32 0.0, %v1531
      %v1533 = vpop.f32.mrf.mxu0
      %1534 = vmatprep.mubr.f32.mxu0 0.0
      %1535 = vmatmul.mubr.f32.gmra.mxu0 %v1070
      %v1536 = vpop.f32.mrf.mxu0
      %v1537 = vadd.f32 0.0, %v1536
      %v1538 = vpop.f32.mrf.mxu0
      %1539 = vmatprep.mubr.f32.mxu0 0.0
      %1540 = vmatmul.mubr.f32.gmra.mxu0 %v1073
      %v1541 = vpop.f32.mrf.mxu0
      %v1542 = vadd.f32 0.0, %v1541
      %v1543 = vpop.f32.mrf.mxu0
      %1544 = vmatprep.mubr.f32.mxu0 0.0
      %1545 = vmatmul.mubr.f32.gmra.mxu0 %v1076
      %v1546 = vpop.f32.mrf.mxu0
      %v1547 = vadd.f32 0.0, %v1546
      %v1548 = vpop.f32.mrf.mxu0
      %1549 = vmatprep.mubr.f32.mxu0 0.0
      %1550 = vmatmul.mubr.f32.gmra.mxu0 %v1245
      %v1551 = vpop.f32.mrf.mxu0
      %v1552 = vadd.f32 0.0, %v1551
      %v1553 = vpop.f32.mrf.mxu0
      %1554 = vmatprep.mubr.f32.mxu0 0.0
      %1555 = vmatmul.mubr.f32.gmra.mxu0 %v1248
      %v1556 = vpop.f32.mrf.mxu0
      %v1557 = vadd.f32 0.0, %v1556
      %v1558 = vpop.f32.mrf.mxu0
      %1559 = vmatprep.mubr.f32.mxu0 0.0
      %1560 = vmatmul.mubr.f32.gmra.mxu0 %v1417
      %v1561 = vpop.f32.mrf.mxu0
      %v1562 = vadd.f32 0.0, %v1561
      %v1563 = vpop.f32.mrf.mxu0
      %1564 = vmatprep.mubr.f32.mxu0 0.0
      %1565 = vmatmul.mubr.f32.gmra.mxu0 %v1420
      %v1566 = vpop.f32.mrf.mxu0
      %v1567 = vadd.f32 0.0, %v1566
      %v1568 = vpop.f32.mrf.mxu0
      %1569 = vdwg.mxu0
      %v1570 = vadd.f32 %v1398, %v1492
      %v1571 = vadd.f32 %v1399, %v1497
      %v1572 = vadd.f32 %v1400, %v1502
      %v1573 = vadd.f32 %v1401, %v1507
      %v1574 = vadd.f32 %v1402, %v1512
      %v1575 = vadd.f32 %v1403, %v1517
      %v1576 = vadd.f32 %v1404, %v1522
      %v1577 = vadd.f32 %v1405, %v1527
      %v1578 = vadd.f32 %v1406, %v1532
      %v1579 = vadd.f32 %v1407, %v1537
      %v1580 = vadd.f32 %v1408, %v1542
      %v1581 = vadd.f32 %v1409, %v1547
      %v1582 = vadd.f32 %v1410, %v1552
      %v1583 = vadd.f32 %v1411, %v1557
      %v1584 = vadd.f32 %v1412, %v1562
      %v1585 = vadd.f32 %v1413, %v1567
      %v1586 = vld [vmem:[#allocation2 + $0x2] sm:$0xff]
      %v1587 = vld [vmem:[#allocation2 + $0xa] sm:$0xff]
      %v1588 = vld [vmem:[#allocation2 + $0x1a] sm:$0xff]
      %v1589 = vld [vmem:[#allocation2 + $0x22] sm:$0xff]
      %v1590 = vld [vmem:[#allocation2 + $0x32] sm:$0xff]
      %v1591 = vld [vmem:[#allocation2 + $0x3a] sm:$0xff]
      %v1592 = vld [vmem:[#allocation2 + $0x4a] sm:$0xff]
      %v1593 = vld [vmem:[#allocation2 + $0x52] sm:$0xff]
      %v1594 = vld [vmem:[#allocation2 + $0x62] sm:$0xff]
      %v1595 = vld [vmem:[#allocation2 + $0x6a] sm:$0xff]
      %v1596 = vld [vmem:[#allocation2 + $0x7a] sm:$0xff]
      %v1597 = vld [vmem:[#allocation2 + $0x82] sm:$0xff]
      %v1598 = vld [vmem:[#allocation2 + $0x92] sm:$0xff]
      %v1599 = vld [vmem:[#allocation2 + $0x9a] sm:$0xff]
      %v1600 = vld [vmem:[#allocation2 + $0xaa] sm:$0xff]
      %v1601 = vld [vmem:[#allocation2 + $0xb2] sm:$0xff]
      %v1602 = vld [vmem:[#allocation2 + $0xc2] sm:$0xff]
      %v1603 = vld [vmem:[#allocation2 + $0xca] sm:$0xff]
      %v1604 = vld [vmem:[#allocation2 + $0xda] sm:$0xff]
      %v1605 = vld [vmem:[#allocation2 + $0xe2] sm:$0xff]
      %s1606 = scalar_lea.vmem %s308, 8
      %v1607 = vld [vmem:[%s1606] sm:$0xf]
      %v1609 = vsel %vm418, %v1586, 0
      %v1612 = vsel %vm418, %v1587, 0
      %v1615 = vsel %vm418, %v1588, 0
      %v1618 = vsel %vm418, %v1589, 0
      %v1621 = vsel %vm418, %v1590, 0
      %v1624 = vsel %vm418, %v1591, 0
      %v1627 = vsel %vm418, %v1592, 0
      %v1630 = vsel %vm418, %v1593, 0
      %v1633 = vsel %vm418, %v1594, 0
      %v1636 = vsel %vm418, %v1595, 0
      %v1639 = vsel %vm418, %v1596, 0
      %v1642 = vsel %vm418, %v1597, 0
      %v1645 = vsel %vm418, %v1598, 0
      %v1648 = vsel %vm418, %v1599, 0
      %v1651 = vsel %vm418, %v1600, 0
      %v1654 = vsel %vm418, %v1601, 0
      %v1657 = vsel %vm533, %v1607, 0
      %1659 = vmatprep.subr.mxu0 0.0
      %1660 = vmatpush1.msra.mxu0 0.0
      %1661 = vmatprep.subr.mxu0 0.0
      %1662 = vmatpush1.msra.mxu0 0.0
      %1663 = vmatprep.subr.mxu0 0.0
      %1664 = vmatpush1.msra.mxu0 0.0
      %1665 = vmatprep.subr.mxu0 0.0
      %1666 = vmatpush1.msra.mxu0 0.0
      %1667 = vmatprep.subr.mxu0 0.0
      %1668 = vmatpush1.msra.mxu0 0.0
      %1669 = vmatprep.subr.mxu0 0.0
      %1670 = vmatpush1.msra.mxu0 0.0
      %1671 = vmatprep.subr.mxu0 0.0
      %1672 = vmatpush1.msra.mxu0 0.0
      %1673 = vmatprep.subr.mxu0 0.0
      %1674 = vmatpush1.msra.mxu0 0.0
      %1675 = vmatprep.subr.mxu0 0.0
      %1676 = vmatpush1.msra.mxu0 0.0
      %1677 = vmatprep.subr.mxu0 0.0
      %1678 = vmatpush1.msra.mxu0 0.0
      %1679 = vmatprep.subr.mxu0 0.0
      %1680 = vmatpush1.msra.mxu0 0.0
      %1681 = vmatprep.subr.mxu0 0.0
      %1682 = vmatpush1.msra.mxu0 0.0
      %1683 = vmatprep.subr.mxu0 0.0
      %1684 = vmatpush1.msra.mxu0 0.0
      %1685 = vmatprep.subr.mxu0 0.0
      %1686 = vmatpush1.msra.mxu0 0.0
      %1687 = vmatprep.subr.mxu0 0.0
      %1688 = vmatpush1.msra.mxu0 0.0
      %1689 = vmatprep.subr.mxu0 0.0
      %1690 = vmatpush1.msra.mxu0 %v1657
      %1691 = vmatprep.subr.mxu0 0.0
      %1692 = vmatpush2.msra.mxu0 0.0
      %1693 = vmatprep.subr.mxu0 0.0
      %1694 = vmatpush2.msra.mxu0 0.0
      %1695 = vmatprep.subr.mxu0 0.0
      %1696 = vmatpush2.msra.mxu0 0.0
      %1697 = vmatprep.subr.mxu0 0.0
      %1698 = vmatpush2.msra.mxu0 0.0
      %1699 = vmatprep.subr.mxu0 0.0
      %1700 = vmatpush2.msra.mxu0 0.0
      %1701 = vmatprep.subr.mxu0 0.0
      %1702 = vmatpush2.msra.mxu0 0.0
      %1703 = vmatprep.subr.mxu0 0.0
      %1704 = vmatpush2.msra.mxu0 0.0
      %1705 = vmatprep.subr.mxu0 0.0
      %1706 = vmatpush2.msra.mxu0 0.0
      %1707 = vmatprep.subr.mxu0 0.0
      %1708 = vmatpush2.msra.mxu0 0.0
      %1709 = vmatprep.subr.mxu0 0.0
      %1710 = vmatpush2.msra.mxu0 0.0
      %1711 = vmatprep.subr.mxu0 0.0
      %1712 = vmatpush2.msra.mxu0 0.0
      %1713 = vmatprep.subr.mxu0 0.0
      %1714 = vmatpush2.msra.mxu0 0.0
      %1715 = vmatprep.subr.mxu0 0.0
      %1716 = vmatpush2.msra.mxu0 0.0
      %1717 = vmatprep.subr.mxu0 0.0
      %1718 = vmatpush2.msra.mxu0 0.0
      %1719 = vmatprep.subr.mxu0 0.0
      %1720 = vmatpush2.msra.mxu0 0.0
      %1721 = vmatprep.subr.mxu0 0.0
      %1722 = vmatpush2.msra.mxu0 0.0
      %1723 = vmatprep.mubr.f32.mxu0 0.0
      %1724 = vmatmul.mubr.f32.gmra.mxu0 %v1609
      %v1725 = vpop.f32.mrf.mxu0
      %v1726 = vadd.f32 0.0, %v1725
      %v1727 = vpop.f32.mrf.mxu0
      %1728 = vmatprep.mubr.f32.mxu0 0.0
      %1729 = vmatmul.mubr.f32.gmra.mxu0 %v1612
      %v1730 = vpop.f32.mrf.mxu0
      %v1731 = vadd.f32 0.0, %v1730
      %v1732 = vpop.f32.mrf.mxu0
      %1733 = vmatprep.mubr.f32.mxu0 0.0
      %1734 = vmatmul.mubr.f32.gmra.mxu0 %v1615
      %v1735 = vpop.f32.mrf.mxu0
      %v1736 = vadd.f32 0.0, %v1735
      %v1737 = vpop.f32.mrf.mxu0
      %1738 = vmatprep.mubr.f32.mxu0 0.0
      %1739 = vmatmul.mubr.f32.gmra.mxu0 %v1618
      %v1740 = vpop.f32.mrf.mxu0
      %v1741 = vadd.f32 0.0, %v1740
      %v1742 = vpop.f32.mrf.mxu0
      %1743 = vmatprep.mubr.f32.mxu0 0.0
      %1744 = vmatmul.mubr.f32.gmra.mxu0 %v1621
      %v1745 = vpop.f32.mrf.mxu0
      %v1746 = vadd.f32 0.0, %v1745
      %v1747 = vpop.f32.mrf.mxu0
      %1748 = vmatprep.mubr.f32.mxu0 0.0
      %1749 = vmatmul.mubr.f32.gmra.mxu0 %v1624
      %v1750 = vpop.f32.mrf.mxu0
      %v1751 = vadd.f32 0.0, %v1750
      %v1752 = vpop.f32.mrf.mxu0
      %1753 = vmatprep.mubr.f32.mxu0 0.0
      %1754 = vmatmul.mubr.f32.gmra.mxu0 %v1627
      %v1755 = vpop.f32.mrf.mxu0
      %v1756 = vadd.f32 0.0, %v1755
      %v1757 = vpop.f32.mrf.mxu0
      %1758 = vmatprep.mubr.f32.mxu0 0.0
      %1759 = vmatmul.mubr.f32.gmra.mxu0 %v1630
      %v1760 = vpop.f32.mrf.mxu0
      %v1761 = vadd.f32 0.0, %v1760
      %v1762 = vpop.f32.mrf.mxu0
      %1763 = vmatprep.mubr.f32.mxu0 0.0
      %1764 = vmatmul.mubr.f32.gmra.mxu0 %v1633
      %v1765 = vpop.f32.mrf.mxu0
      %v1766 = vadd.f32 0.0, %v1765
      %v1767 = vpop.f32.mrf.mxu0
      %1768 = vmatprep.mubr.f32.mxu0 0.0
      %1769 = vmatmul.mubr.f32.gmra.mxu0 %v1636
      %v1770 = vpop.f32.mrf.mxu0
      %v1771 = vadd.f32 0.0, %v1770
      %v1772 = vpop.f32.mrf.mxu0
      %1773 = vmatprep.mubr.f32.mxu0 0.0
      %1774 = vmatmul.mubr.f32.gmra.mxu0 %v1639
      %v1775 = vpop.f32.mrf.mxu0
      %v1776 = vadd.f32 0.0, %v1775
      %v1777 = vpop.f32.mrf.mxu0
      %1778 = vmatprep.mubr.f32.mxu0 0.0
      %1779 = vmatmul.mubr.f32.gmra.mxu0 %v1642
      %v1780 = vpop.f32.mrf.mxu0
      %v1781 = vadd.f32 0.0, %v1780
      %v1782 = vpop.f32.mrf.mxu0
      %1783 = vmatprep.mubr.f32.mxu0 0.0
      %1784 = vmatmul.mubr.f32.gmra.mxu0 %v1645
      %v1785 = vpop.f32.mrf.mxu0
      %v1786 = vadd.f32 0.0, %v1785
      %v1787 = vpop.f32.mrf.mxu0
      %1788 = vmatprep.mubr.f32.mxu0 0.0
      %1789 = vmatmul.mubr.f32.gmra.mxu0 %v1648
      %v1790 = vpop.f32.mrf.mxu0
      %v1791 = vadd.f32 0.0, %v1790
      %v1792 = vpop.f32.mrf.mxu0
      %1793 = vmatprep.mubr.f32.mxu0 0.0
      %1794 = vmatmul.mubr.f32.gmra.mxu0 %v1651
      %v1795 = vpop.f32.mrf.mxu0
      %v1796 = vadd.f32 0.0, %v1795
      %v1797 = vpop.f32.mrf.mxu0
      %1798 = vmatprep.mubr.f32.mxu0 0.0
      %1799 = vmatmul.mubr.f32.gmra.mxu0 %v1654
      %v1800 = vpop.f32.mrf.mxu0
      %v1801 = vadd.f32 0.0, %v1800
      %v1802 = vpop.f32.mrf.mxu0
      %1803 = vdwg.mxu0
      %v1804 = vadd.f32 %v1570, %v1726
      %v1805 = vadd.f32 %v1571, %v1731
      %v1806 = vadd.f32 %v1572, %v1736
      %v1807 = vadd.f32 %v1573, %v1741
      %v1808 = vadd.f32 %v1574, %v1746
      %v1809 = vadd.f32 %v1575, %v1751
      %v1810 = vadd.f32 %v1576, %v1756
      %v1811 = vadd.f32 %v1577, %v1761
      %v1812 = vadd.f32 %v1578, %v1766
      %v1813 = vadd.f32 %v1579, %v1771
      %v1814 = vadd.f32 %v1580, %v1776
      %v1815 = vadd.f32 %v1581, %v1781
      %v1816 = vadd.f32 %v1582, %v1786
      %v1817 = vadd.f32 %v1583, %v1791
      %v1818 = vadd.f32 %v1584, %v1796
      %v1819 = vadd.f32 %v1585, %v1801
      %s1820 = scalar_lea.vmem %s308, 20
      %v1821 = vld [vmem:[%s1820] sm:$0xf]
      %v1823 = vsel %vm418, %v1602, 0
      %v1826 = vsel %vm418, %v1603, 0
      %v1829 = vsel %vm533, %v1821, 0
      %1831 = vmatprep.subr.mxu0 0.0
      %1832 = vmatpush1.msra.mxu0 0.0
      %1833 = vmatprep.subr.mxu0 0.0
      %1834 = vmatpush1.msra.mxu0 0.0
      %1835 = vmatprep.subr.mxu0 0.0
      %1836 = vmatpush1.msra.mxu0 0.0
      %1837 = vmatprep.subr.mxu0 0.0
      %1838 = vmatpush1.msra.mxu0 0.0
      %1839 = vmatprep.subr.mxu0 0.0
      %1840 = vmatpush1.msra.mxu0 0.0
      %1841 = vmatprep.subr.mxu0 0.0
      %1842 = vmatpush1.msra.mxu0 0.0
      %1843 = vmatprep.subr.mxu0 0.0
      %1844 = vmatpush1.msra.mxu0 0.0
      %1845 = vmatprep.subr.mxu0 0.0
      %1846 = vmatpush1.msra.mxu0 0.0
      %1847 = vmatprep.subr.mxu0 0.0
      %1848 = vmatpush1.msra.mxu0 0.0
      %1849 = vmatprep.subr.mxu0 0.0
      %1850 = vmatpush1.msra.mxu0 0.0
      %1851 = vmatprep.subr.mxu0 0.0
      %1852 = vmatpush1.msra.mxu0 0.0
      %1853 = vmatprep.subr.mxu0 0.0
      %1854 = vmatpush1.msra.mxu0 0.0
      %1855 = vmatprep.subr.mxu0 0.0
      %1856 = vmatpush1.msra.mxu0 0.0
      %1857 = vmatprep.subr.mxu0 0.0
      %1858 = vmatpush1.msra.mxu0 0.0
      %1859 = vmatprep.subr.mxu0 0.0
      %1860 = vmatpush1.msra.mxu0 0.0
      %1861 = vmatprep.subr.mxu0 0.0
      %1862 = vmatpush1.msra.mxu0 %v1829
      %1863 = vmatprep.subr.mxu0 0.0
      %1864 = vmatpush2.msra.mxu0 0.0
      %1865 = vmatprep.subr.mxu0 0.0
      %1866 = vmatpush2.msra.mxu0 0.0
      %1867 = vmatprep.subr.mxu0 0.0
      %1868 = vmatpush2.msra.mxu0 0.0
      %1869 = vmatprep.subr.mxu0 0.0
      %1870 = vmatpush2.msra.mxu0 0.0
      %1871 = vmatprep.subr.mxu0 0.0
      %1872 = vmatpush2.msra.mxu0 0.0
      %1873 = vmatprep.subr.mxu0 0.0
      %1874 = vmatpush2.msra.mxu0 0.0
      %1875 = vmatprep.subr.mxu0 0.0
      %1876 = vmatpush2.msra.mxu0 0.0
      %1877 = vmatprep.subr.mxu0 0.0
      %1878 = vmatpush2.msra.mxu0 0.0
      %1879 = vmatprep.subr.mxu0 0.0
      %1880 = vmatpush2.msra.mxu0 0.0
      %1881 = vmatprep.subr.mxu0 0.0
      %1882 = vmatpush2.msra.mxu0 0.0
      %1883 = vmatprep.subr.mxu0 0.0
      %1884 = vmatpush2.msra.mxu0 0.0
      %1885 = vmatprep.subr.mxu0 0.0
      %1886 = vmatpush2.msra.mxu0 0.0
      %1887 = vmatprep.subr.mxu0 0.0
      %1888 = vmatpush2.msra.mxu0 0.0
      %1889 = vmatprep.subr.mxu0 0.0
      %1890 = vmatpush2.msra.mxu0 0.0
      %1891 = vmatprep.subr.mxu0 0.0
      %1892 = vmatpush2.msra.mxu0 0.0
      %1893 = vmatprep.subr.mxu0 0.0
      %1894 = vmatpush2.msra.mxu0 0.0
      %1895 = vmatprep.mubr.f32.mxu0 0.0
      %1896 = vmatmul.mubr.f32.gmra.mxu0 %v1615
      %v1897 = vpop.f32.mrf.mxu0
      %v1898 = vadd.f32 0.0, %v1897
      %v1899 = vpop.f32.mrf.mxu0
      %1900 = vmatprep.mubr.f32.mxu0 0.0
      %1901 = vmatmul.mubr.f32.gmra.mxu0 %v1618
      %v1902 = vpop.f32.mrf.mxu0
      %v1903 = vadd.f32 0.0, %v1902
      %v1904 = vpop.f32.mrf.mxu0
      %1905 = vmatprep.mubr.f32.mxu0 0.0
      %1906 = vmatmul.mubr.f32.gmra.mxu0 %v1621
      %v1907 = vpop.f32.mrf.mxu0
      %v1908 = vadd.f32 0.0, %v1907
      %v1909 = vpop.f32.mrf.mxu0
      %1910 = vmatprep.mubr.f32.mxu0 0.0
      %1911 = vmatmul.mubr.f32.gmra.mxu0 %v1624
      %v1912 = vpop.f32.mrf.mxu0
      %v1913 = vadd.f32 0.0, %v1912
      %v1914 = vpop.f32.mrf.mxu0
      %1915 = vmatprep.mubr.f32.mxu0 0.0
      %1916 = vmatmul.mubr.f32.gmra.mxu0 %v1627
      %v1917 = vpop.f32.mrf.mxu0
      %v1918 = vadd.f32 0.0, %v1917
      %v1919 = vpop.f32.mrf.mxu0
      %1920 = vmatprep.mubr.f32.mxu0 0.0
      %1921 = vmatmul.mubr.f32.gmra.mxu0 %v1630
      %v1922 = vpop.f32.mrf.mxu0
      %v1923 = vadd.f32 0.0, %v1922
      %v1924 = vpop.f32.mrf.mxu0
      %1925 = vmatprep.mubr.f32.mxu0 0.0
      %1926 = vmatmul.mubr.f32.gmra.mxu0 %v1633
      %v1927 = vpop.f32.mrf.mxu0
      %v1928 = vadd.f32 0.0, %v1927
      %v1929 = vpop.f32.mrf.mxu0
      %1930 = vmatprep.mubr.f32.mxu0 0.0
      %1931 = vmatmul.mubr.f32.gmra.mxu0 %v1636
      %v1932 = vpop.f32.mrf.mxu0
      %v1933 = vadd.f32 0.0, %v1932
      %v1934 = vpop.f32.mrf.mxu0
      %1935 = vmatprep.mubr.f32.mxu0 0.0
      %1936 = vmatmul.mubr.f32.gmra.mxu0 %v1639
      %v1937 = vpop.f32.mrf.mxu0
      %v1938 = vadd.f32 0.0, %v1937
      %v1939 = vpop.f32.mrf.mxu0
      %1940 = vmatprep.mubr.f32.mxu0 0.0
      %1941 = vmatmul.mubr.f32.gmra.mxu0 %v1642
      %v1942 = vpop.f32.mrf.mxu0
      %v1943 = vadd.f32 0.0, %v1942
      %v1944 = vpop.f32.mrf.mxu0
      %1945 = vmatprep.mubr.f32.mxu0 0.0
      %1946 = vmatmul.mubr.f32.gmra.mxu0 %v1645
      %v1947 = vpop.f32.mrf.mxu0
      %v1948 = vadd.f32 0.0, %v1947
      %v1949 = vpop.f32.mrf.mxu0
      %1950 = vmatprep.mubr.f32.mxu0 0.0
      %1951 = vmatmul.mubr.f32.gmra.mxu0 %v1648
      %v1952 = vpop.f32.mrf.mxu0
      %v1953 = vadd.f32 0.0, %v1952
      %v1954 = vpop.f32.mrf.mxu0
      %1955 = vmatprep.mubr.f32.mxu0 0.0
      %1956 = vmatmul.mubr.f32.gmra.mxu0 %v1651
      %v1957 = vpop.f32.mrf.mxu0
      %v1958 = vadd.f32 0.0, %v1957
      %v1959 = vpop.f32.mrf.mxu0
      %1960 = vmatprep.mubr.f32.mxu0 0.0
      %1961 = vmatmul.mubr.f32.gmra.mxu0 %v1654
      %v1962 = vpop.f32.mrf.mxu0
      %v1963 = vadd.f32 0.0, %v1962
      %v1964 = vpop.f32.mrf.mxu0
      %1965 = vmatprep.mubr.f32.mxu0 0.0
      %1966 = vmatmul.mubr.f32.gmra.mxu0 %v1823
      %v1967 = vpop.f32.mrf.mxu0
      %v1968 = vadd.f32 0.0, %v1967
      %v1969 = vpop.f32.mrf.mxu0
      %1970 = vmatprep.mubr.f32.mxu0 0.0
      %1971 = vmatmul.mubr.f32.gmra.mxu0 %v1826
      %v1972 = vpop.f32.mrf.mxu0
      %v1973 = vadd.f32 0.0, %v1972
      %v1974 = vpop.f32.mrf.mxu0
      %1975 = vdwg.mxu0
      %v1976 = vadd.f32 %v1804, %v1898
      %v1977 = vadd.f32 %v1805, %v1903
      %v1978 = vadd.f32 %v1806, %v1908
      %v1979 = vadd.f32 %v1807, %v1913
      %v1980 = vadd.f32 %v1808, %v1918
      %v1981 = vadd.f32 %v1809, %v1923
      %v1982 = vadd.f32 %v1810, %v1928
      %v1983 = vadd.f32 %v1811, %v1933
      %v1984 = vadd.f32 %v1812, %v1938
      %v1985 = vadd.f32 %v1813, %v1943
      %v1986 = vadd.f32 %v1814, %v1948
      %v1987 = vadd.f32 %v1815, %v1953
      %v1988 = vadd.f32 %v1816, %v1958
      %v1989 = vadd.f32 %v1817, %v1963
      %v1990 = vadd.f32 %v1818, %v1968
      %v1991 = vadd.f32 %v1819, %v1973
      %s1992 = scalar_lea.vmem %s308, 32
      %v1993 = vld [vmem:[%s1992] sm:$0xf]
      %v1995 = vsel %vm418, %v1604, 0
      %v1998 = vsel %vm418, %v1605, 0
      %v2001 = vsel %vm533, %v1993, 0
      %2003 = vmatprep.subr.mxu0 0.0
      %2004 = vmatpush1.msra.mxu0 0.0
      %2005 = vmatprep.subr.mxu0 0.0
      %2006 = vmatpush1.msra.mxu0 0.0
      %2007 = vmatprep.subr.mxu0 0.0
      %2008 = vmatpush1.msra.mxu0 0.0
      %2009 = vmatprep.subr.mxu0 0.0
      %2010 = vmatpush1.msra.mxu0 0.0
      %2011 = vmatprep.subr.mxu0 0.0
      %2012 = vmatpush1.msra.mxu0 0.0
      %2013 = vmatprep.subr.mxu0 0.0
      %2014 = vmatpush1.msra.mxu0 0.0
      %2015 = vmatprep.subr.mxu0 0.0
      %2016 = vmatpush1.msra.mxu0 0.0
      %2017 = vmatprep.subr.mxu0 0.0
      %2018 = vmatpush1.msra.mxu0 0.0
      %2019 = vmatprep.subr.mxu0 0.0
      %2020 = vmatpush1.msra.mxu0 0.0
      %2021 = vmatprep.subr.mxu0 0.0
      %2022 = vmatpush1.msra.mxu0 0.0
      %2023 = vmatprep.subr.mxu0 0.0
      %2024 = vmatpush1.msra.mxu0 0.0
      %2025 = vmatprep.subr.mxu0 0.0
      %2026 = vmatpush1.msra.mxu0 0.0
      %2027 = vmatprep.subr.mxu0 0.0
      %2028 = vmatpush1.msra.mxu0 0.0
      %2029 = vmatprep.subr.mxu0 0.0
      %2030 = vmatpush1.msra.mxu0 0.0
      %2031 = vmatprep.subr.mxu0 0.0
      %2032 = vmatpush1.msra.mxu0 0.0
      %2033 = vmatprep.subr.mxu0 0.0
      %2034 = vmatpush1.msra.mxu0 %v2001
      %2035 = vmatprep.subr.mxu0 0.0
      %2036 = vmatpush2.msra.mxu0 0.0
      %2037 = vmatprep.subr.mxu0 0.0
      %2038 = vmatpush2.msra.mxu0 0.0
      %2039 = vmatprep.subr.mxu0 0.0
      %2040 = vmatpush2.msra.mxu0 0.0
      %2041 = vmatprep.subr.mxu0 0.0
      %2042 = vmatpush2.msra.mxu0 0.0
      %2043 = vmatprep.subr.mxu0 0.0
      %2044 = vmatpush2.msra.mxu0 0.0
      %2045 = vmatprep.subr.mxu0 0.0
      %2046 = vmatpush2.msra.mxu0 0.0
      %2047 = vmatprep.subr.mxu0 0.0
      %2048 = vmatpush2.msra.mxu0 0.0
      %2049 = vmatprep.subr.mxu0 0.0
      %2050 = vmatpush2.msra.mxu0 0.0
      %2051 = vmatprep.subr.mxu0 0.0
      %2052 = vmatpush2.msra.mxu0 0.0
      %2053 = vmatprep.subr.mxu0 0.0
      %2054 = vmatpush2.msra.mxu0 0.0
      %2055 = vmatprep.subr.mxu0 0.0
      %2056 = vmatpush2.msra.mxu0 0.0
      %2057 = vmatprep.subr.mxu0 0.0
      %2058 = vmatpush2.msra.mxu0 0.0
      %2059 = vmatprep.subr.mxu0 0.0
      %2060 = vmatpush2.msra.mxu0 0.0
      %2061 = vmatprep.subr.mxu0 0.0
      %2062 = vmatpush2.msra.mxu0 0.0
      %2063 = vmatprep.subr.mxu0 0.0
      %2064 = vmatpush2.msra.mxu0 0.0
      %2065 = vmatprep.subr.mxu0 0.0
      %2066 = vmatpush2.msra.mxu0 0.0
      %2067 = vmatprep.mubr.f32.mxu0 0.0
      %2068 = vmatmul.mubr.f32.gmra.mxu0 %v1621
      %v2069 = vpop.f32.mrf.mxu0
      %v2070 = vadd.f32 0.0, %v2069
      %v2071 = vpop.f32.mrf.mxu0
      %2072 = vmatprep.mubr.f32.mxu0 0.0
      %2073 = vmatmul.mubr.f32.gmra.mxu0 %v1624
      %v2074 = vpop.f32.mrf.mxu0
      %v2075 = vadd.f32 0.0, %v2074
      %v2076 = vpop.f32.mrf.mxu0
      %2077 = vmatprep.mubr.f32.mxu0 0.0
      %2078 = vmatmul.mubr.f32.gmra.mxu0 %v1627
      %v2079 = vpop.f32.mrf.mxu0
      %v2080 = vadd.f32 0.0, %v2079
      %v2081 = vpop.f32.mrf.mxu0
      %2082 = vmatprep.mubr.f32.mxu0 0.0
      %2083 = vmatmul.mubr.f32.gmra.mxu0 %v1630
      %v2084 = vpop.f32.mrf.mxu0
      %v2085 = vadd.f32 0.0, %v2084
      %v2086 = vpop.f32.mrf.mxu0
      %2087 = vmatprep.mubr.f32.mxu0 0.0
      %2088 = vmatmul.mubr.f32.gmra.mxu0 %v1633
      %v2089 = vpop.f32.mrf.mxu0
      %v2090 = vadd.f32 0.0, %v2089
      %v2091 = vpop.f32.mrf.mxu0
      %2092 = vmatprep.mubr.f32.mxu0 0.0
      %2093 = vmatmul.mubr.f32.gmra.mxu0 %v1636
      %v2094 = vpop.f32.mrf.mxu0
      %v2095 = vadd.f32 0.0, %v2094
      %v2096 = vpop.f32.mrf.mxu0
      %2097 = vmatprep.mubr.f32.mxu0 0.0
      %2098 = vmatmul.mubr.f32.gmra.mxu0 %v1639
      %v2099 = vpop.f32.mrf.mxu0
      %v2100 = vadd.f32 0.0, %v2099
      %v2101 = vpop.f32.mrf.mxu0
      %2102 = vmatprep.mubr.f32.mxu0 0.0
      %2103 = vmatmul.mubr.f32.gmra.mxu0 %v1642
      %v2104 = vpop.f32.mrf.mxu0
      %v2105 = vadd.f32 0.0, %v2104
      %v2106 = vpop.f32.mrf.mxu0
      %2107 = vmatprep.mubr.f32.mxu0 0.0
      %2108 = vmatmul.mubr.f32.gmra.mxu0 %v1645
      %v2109 = vpop.f32.mrf.mxu0
      %v2110 = vadd.f32 0.0, %v2109
      %v2111 = vpop.f32.mrf.mxu0
      %2112 = vmatprep.mubr.f32.mxu0 0.0
      %2113 = vmatmul.mubr.f32.gmra.mxu0 %v1648
      %v2114 = vpop.f32.mrf.mxu0
      %v2115 = vadd.f32 0.0, %v2114
      %v2116 = vpop.f32.mrf.mxu0
      %2117 = vmatprep.mubr.f32.mxu0 0.0
      %2118 = vmatmul.mubr.f32.gmra.mxu0 %v1651
      %v2119 = vpop.f32.mrf.mxu0
      %v2120 = vadd.f32 0.0, %v2119
      %v2121 = vpop.f32.mrf.mxu0
      %2122 = vmatprep.mubr.f32.mxu0 0.0
      %2123 = vmatmul.mubr.f32.gmra.mxu0 %v1654
      %v2124 = vpop.f32.mrf.mxu0
      %v2125 = vadd.f32 0.0, %v2124
      %v2126 = vpop.f32.mrf.mxu0
      %2127 = vmatprep.mubr.f32.mxu0 0.0
      %2128 = vmatmul.mubr.f32.gmra.mxu0 %v1823
      %v2129 = vpop.f32.mrf.mxu0
      %v2130 = vadd.f32 0.0, %v2129
      %v2131 = vpop.f32.mrf.mxu0
      %2132 = vmatprep.mubr.f32.mxu0 0.0
      %2133 = vmatmul.mubr.f32.gmra.mxu0 %v1826
      %v2134 = vpop.f32.mrf.mxu0
      %v2135 = vadd.f32 0.0, %v2134
      %v2136 = vpop.f32.mrf.mxu0
      %2137 = vmatprep.mubr.f32.mxu0 0.0
      %2138 = vmatmul.mubr.f32.gmra.mxu0 %v1995
      %v2139 = vpop.f32.mrf.mxu0
      %v2140 = vadd.f32 0.0, %v2139
      %v2141 = vpop.f32.mrf.mxu0
      %2142 = vmatprep.mubr.f32.mxu0 0.0
      %2143 = vmatmul.mubr.f32.gmra.mxu0 %v1998
      %v2144 = vpop.f32.mrf.mxu0
      %v2145 = vadd.f32 0.0, %v2144
      %v2146 = vpop.f32.mrf.mxu0
      %2147 = vdwg.mxu0
      %v2148 = vadd.f32 %v1976, %v2070
      %v2149 = vadd.f32 %v1977, %v2075
      %v2150 = vadd.f32 %v1978, %v2080
      %v2151 = vadd.f32 %v1979, %v2085
      %v2152 = vadd.f32 %v1980, %v2090
      %v2153 = vadd.f32 %v1981, %v2095
      %v2154 = vadd.f32 %v1982, %v2100
      %v2155 = vadd.f32 %v1983, %v2105
      %v2156 = vadd.f32 %v1984, %v2110
      %v2157 = vadd.f32 %v1985, %v2115
      %v2158 = vadd.f32 %v1986, %v2120
      %v2159 = vadd.f32 %v1987, %v2125
      %v2160 = vadd.f32 %v1988, %v2130
      %v2161 = vadd.f32 %v1989, %v2135
      %v2162 = vadd.f32 %v1990, %v2140
      %v2163 = vadd.f32 %v1991, %v2145
      %v2164 = vld [vmem:[%s317] sm:$0x1]
      %v2166 = vlaneseq
      %v2167 = vshrl.u32 %v2166, 7
      %v2168 = vsub.s32 0, %v2167
      %v2169 = vrot.slane %v2164, %v2168
      %v2171 = vmul.f32 %v2148, %v2169
      %v2172 = vmul.f32 %v2149, %v2169
      %v2173 = vmul.f32 %v2150, %v2169
      %v2174 = vmul.f32 %v2151, %v2169
      %v2175 = vmul.f32 %v2152, %v2169
      %v2176 = vmul.f32 %v2153, %v2169
      %v2177 = vmul.f32 %v2154, %v2169
      %v2178 = vmul.f32 %v2155, %v2169
      %v2179 = vmul.f32 %v2156, %v2169
      %v2180 = vmul.f32 %v2157, %v2169
      %v2181 = vmul.f32 %v2158, %v2169
      %v2182 = vmul.f32 %v2159, %v2169
      %v2183 = vmul.f32 %v2160, %v2169
      %v2184 = vmul.f32 %v2161, %v2169
      %v2185 = vmul.f32 %v2162, %v2169
      %v2186 = vmul.f32 %v2163, %v2169
      %v2187 = vld [vmem:[%s320] sm:$0x1]
      %v2189 = vlaneseq
      %v2190 = vshrl.u32 %v2189, 7
      %v2191 = vsub.s32 0, %v2190
      %v2192 = vrot.slane %v2187, %v2191
      %v2194 = vadd.f32 %v2171, %v2192
      %v2195 = vadd.f32 %v2172, %v2192
      %v2196 = vadd.f32 %v2173, %v2192
      %v2197 = vadd.f32 %v2174, %v2192
      %v2198 = vadd.f32 %v2175, %v2192
      %v2199 = vadd.f32 %v2176, %v2192
      %v2200 = vadd.f32 %v2177, %v2192
      %v2201 = vadd.f32 %v2178, %v2192
      %v2202 = vadd.f32 %v2179, %v2192
      %v2203 = vadd.f32 %v2180, %v2192
      %v2204 = vadd.f32 %v2181, %v2192
      %v2205 = vadd.f32 %v2182, %v2192
      %v2206 = vadd.f32 %v2183, %v2192
      %v2207 = vadd.f32 %v2184, %v2192
      %v2208 = vadd.f32 %v2185, %v2192
      %v2209 = vadd.f32 %v2186, %v2192
      %vm2210 = vcmp.ge.f32.partialorder %v2194, 0.0
      %vm2211 = vcmp.ge.f32.partialorder %v2195, 0.0
      %vm2212 = vcmp.ge.f32.partialorder %v2196, 0.0
      %vm2213 = vcmp.ge.f32.partialorder %v2197, 0.0
      %vm2214 = vcmp.ge.f32.partialorder %v2198, 0.0
      %vm2215 = vcmp.ge.f32.partialorder %v2199, 0.0
      %vm2216 = vcmp.ge.f32.partialorder %v2200, 0.0
      %vm2217 = vcmp.ge.f32.partialorder %v2201, 0.0
      %vm2218 = vcmp.ge.f32.partialorder %v2202, 0.0
      %vm2219 = vcmp.ge.f32.partialorder %v2203, 0.0
      %vm2220 = vcmp.ge.f32.partialorder %v2204, 0.0
      %vm2221 = vcmp.ge.f32.partialorder %v2205, 0.0
      %vm2222 = vcmp.ge.f32.partialorder %v2206, 0.0
      %vm2223 = vcmp.ge.f32.partialorder %v2207, 0.0
      %vm2224 = vcmp.ge.f32.partialorder %v2208, 0.0
      %vm2225 = vcmp.ge.f32.partialorder %v2209, 0.0
      %v2226 = vsel %vm2210, 1.4142135, 0.28284273
      %v2227 = vsel %vm2211, 1.4142135, 0.28284273
      %v2228 = vsel %vm2212, 1.4142135, 0.28284273
      %v2229 = vsel %vm2213, 1.4142135, 0.28284273
      %v2230 = vsel %vm2214, 1.4142135, 0.28284273
      %v2231 = vsel %vm2215, 1.4142135, 0.28284273
      %v2232 = vsel %vm2216, 1.4142135, 0.28284273
      %v2233 = vsel %vm2217, 1.4142135, 0.28284273
      %v2234 = vsel %vm2218, 1.4142135, 0.28284273
      %v2235 = vsel %vm2219, 1.4142135, 0.28284273
      %v2236 = vsel %vm2220, 1.4142135, 0.28284273
      %v2237 = vsel %vm2221, 1.4142135, 0.28284273
      %v2238 = vsel %vm2222, 1.4142135, 0.28284273
      %v2239 = vsel %vm2223, 1.4142135, 0.28284273
      %v2240 = vsel %vm2224, 1.4142135, 0.28284273
      %v2241 = vsel %vm2225, 1.4142135, 0.28284273
      %v2242 = vmul.f32 %v2194, %v2226
      %v2243 = vmul.f32 %v2195, %v2227
      %v2244 = vmul.f32 %v2196, %v2228
      %v2245 = vmul.f32 %v2197, %v2229
      %v2246 = vmul.f32 %v2198, %v2230
      %v2247 = vmul.f32 %v2199, %v2231
      %v2248 = vmul.f32 %v2200, %v2232
      %v2249 = vmul.f32 %v2201, %v2233
      %v2250 = vmul.f32 %v2202, %v2234
      %v2251 = vmul.f32 %v2203, %v2235
      %v2252 = vmul.f32 %v2204, %v2236
      %v2253 = vmul.f32 %v2205, %v2237
      %v2254 = vmul.f32 %v2206, %v2238
      %v2255 = vmul.f32 %v2207, %v2239
      %v2256 = vmul.f32 %v2208, %v2240
      %v2257 = vmul.f32 %v2209, %v2241
      %vm2258 = vcmask 64512
      %2259 = vst.msk [vmem:[%s333] sm:$0xff] %vm2258, %v2242
      %2260 = vst.msk [vmem:[%s333 + $0x8] sm:$0xff] %vm2258, %v2243
      %2261 = vst.msk [vmem:[%s333 + $0x10] sm:$0xff] %vm2258, %v2244
      %2262 = vst.msk [vmem:[%s333 + $0x18] sm:$0xff] %vm2258, %v2245
      %2263 = vst.msk [vmem:[%s333 + $0x20] sm:$0xff] %vm2258, %v2246
      %2264 = vst.msk [vmem:[%s333 + $0x28] sm:$0xff] %vm2258, %v2247
      %2265 = vst.msk [vmem:[%s333 + $0x30] sm:$0xff] %vm2258, %v2248
      %2266 = vst.msk [vmem:[%s333 + $0x38] sm:$0xff] %vm2258, %v2249
      %2267 = vst.msk [vmem:[%s333 + $0x40] sm:$0xff] %vm2258, %v2250
      %2268 = vst.msk [vmem:[%s333 + $0x48] sm:$0xff] %vm2258, %v2251
      %2269 = vst.msk [vmem:[%s333 + $0x50] sm:$0xff] %vm2258, %v2252
      %2270 = vst.msk [vmem:[%s333 + $0x58] sm:$0xff] %vm2258, %v2253
      %2271 = vst.msk [vmem:[%s333 + $0x60] sm:$0xff] %vm2258, %v2254
      %2272 = vst.msk [vmem:[%s333 + $0x68] sm:$0xff] %vm2258, %v2255
      %2273 = vst.msk [vmem:[%s333 + $0x70] sm:$0xff] %vm2258, %v2256
      %2274 = vst.msk [vmem:[%s333 + $0x78] sm:$0xff] %vm2258, %v2257
      %s2275 = smul.u32 8, %s23
      %p2276 = scmp.lt.s32.totalorder %s21, 1
      %s2277 = scalar_select %p2276, %s21, 1
      %p2278 = scmp.lt.s32.totalorder %s2275, 15
      %s2279 = scalar_select %p2278, %s2275, 15
      %p2280 = scmp.lt.s32.totalorder %s22, 0
      %s2281 = scalar_select %p2280, %s22, 0
      %s2282 = smul.addr %s2279, 2
      %s2283 = sadd.s32 %s2281, %s2282
      %s2284 = smul.addr %s2277, 32
      %s2285 = sadd.s32 %s2283, %s2284
      %s2286 = smul.addr %s2285, 8
      %s2287 = scalar_lea.vmem %s5, %s2286
      // Predicated region
      $region57: #{styled_conv_block.2} parent=39 // pred_check
        %p2288 = pneg %p189
      $region58: #{styled_conv_block.2} parent=39 // pred_check_branch
        %2290 = sbr.rel (%p2288) target = $region60
      $region59: #{styled_conv_block.2} parent=39 // pred_region
        %s2291 = smul.u32 8, %s23
      $region60: #{styled_conv_block.2} parent=39 // pred_fallthru
        _
    $region40: #{styled_conv_block.2} parent=5 // pred_fallthru
      _
    %p2292 = scmp.le.s32.totalorder 2, %s11
    // Predicated region
    $region61: #{styled_conv_block.2} parent=5 // pred_check
      %p2293 = pneg %p2292
    $region62: #{styled_conv_block.2} parent=5 // pred_check_branch
      %2295 = sbr.rel (%p2293) target = $region64
    $region63: #{styled_conv_block.2} parent=5 // pred_region
      %s2296 = ssub.s32 %s11, 2
      // Predicated region
      $region65: #{styled_conv_block.2} parent=63 // pred_check
        %p2297 = pneg %p195
      $region66: #{styled_conv_block.2} parent=63 // pred_check_branch
        %2299 = sbr.rel (%p2297) target = $region68
      $region67: #{styled_conv_block.2} parent=63 // pred_region
        %s2300 = smul.u32 8, %s26
        %p2301 = scmp.lt.s32.totalorder %s24, 1
        %s2302 = scalar_select %p2301, %s24, 1
        %p2303 = scmp.lt.s32.totalorder %s2300, 15
        %s2304 = scalar_select %p2303, %s2300, 15
        %p2305 = scmp.lt.s32.totalorder %s25, 0
        %s2306 = scalar_select %p2305, %s25, 0
        %s2307 = smul.addr %s2304, 2
        %s2308 = sadd.s32 %s2306, %s2307
        %s2309 = smul.addr %s2302, 32
        %s2310 = sadd.s32 %s2308, %s2309
        %s2311 = smul.addr %s2310, 8
        %s2312 = scalar_lea.vmem %s5, %s2311
      $region68: #{styled_conv_block.2} parent=63 // pred_fallthru
        _
    $region64: #{styled_conv_block.2} parent=5 // pred_fallthru
      _
  $region6: #{styled_conv_block.2} parent=0 // loop_footer
    %s15 = sadd.s32 1, %s11
  $region7: #{styled_conv_block.2} parent=0 // loop_footer_branch
    %10 = sbr.rel target = $region3
  $region8: #{styled_conv_block.2} parent=0 // loop_exit
    _

</llo_original>
